<compile_context>
chip_gen: v7x
topology: tpu7x:2x2x1
jax: 0.10.0
libtpu: 0.0.40
codegen_flags: <defaults>
</compile_context>

<pallas_src>
import functools
import numpy as np
import jax
import jax.numpy as jnp
from jax.experimental import pallas as pl
from jax.experimental.pallas import tpu as pltpu

BN_EPS = 1e-5
NORM_EPS = 1e-12  # F.normalize default eps


def tnet_kernel(pts_ref,
                w1_ref, t1_ref, w2_ref, t2_ref, w3_ref, t3_ref,
                w4_ref, t4_ref, w5_ref, t5_ref,
                w6a_ref, b6a_ref, w6b_ref, b6b_ref,
                m1_ref, m2_ref,
                out_ref, *, block_b):
    # ---- encoder (channel-first: (3,N) -> (256,N)) + global max pool --------
    # Per-element static loop; pooled features collected as lane columns.
    g_cols = []
    for b in range(block_b):
        x = pts_ref[b]                                              # (3, N) f32
        h = jnp.dot(w1_ref[...], x.astype(w1_ref.dtype),
                    preferred_element_type=jnp.float32)
        h = jnp.maximum(h + t1_ref[...], 0.0)                       # (64, N)
        h = jnp.dot(w2_ref[...], h.astype(w2_ref.dtype),
                    preferred_element_type=jnp.float32)
        h = jnp.maximum(h + t2_ref[...], 0.0)                       # (128, N)
        h = jnp.dot(w3_ref[...], h.astype(w3_ref.dtype),
                    preferred_element_type=jnp.float32)
        h = jnp.maximum(h + t3_ref[...], 0.0)                       # (256, N)
        g_cols.append(jnp.max(h, axis=-1, keepdims=True))           # (256, 1)
    g = g_cols[0] if block_b == 1 else jnp.concatenate(g_cols, axis=-1)  # (256, Bb)

    # ---- decoder (channel-first, batched over the Bb pooled columns) --------
    h = jnp.maximum(jnp.dot(w4_ref[...], g, preferred_element_type=jnp.float32)
                    + t4_ref[...], 0.0)                             # (128, Bb)
    h = jnp.maximum(jnp.dot(w5_ref[...], h, preferred_element_type=jnp.float32)
                    + t5_ref[...], 0.0)                             # (64, Bb)
    a = jnp.dot(w6a_ref[...], h, preferred_element_type=jnp.float32) + b6a_ref[...]  # (3, Bb)
    c = jnp.dot(w6b_ref[...], h, preferred_element_type=jnp.float32) + b6b_ref[...]  # (3, Bb)

    # ---- f2R: Gram-Schmidt + cross product (xyz on sublanes, batch on lanes) --
    n1 = jnp.maximum(jnp.sqrt(jnp.sum(a * a, axis=0, keepdims=True)), NORM_EPS)
    r1 = a / n1                                                     # (3, Bb)
    proj = jnp.sum(r1 * c, axis=0, keepdims=True)                   # (1, Bb)
    r2u = c - proj * r1
    n2 = jnp.maximum(jnp.sqrt(jnp.sum(r2u * r2u, axis=0, keepdims=True)), NORM_EPS)
    r2 = r2u / n2                                                   # (3, Bb)
    # cross(r1, r2) via cyclic row-permutation matmuls (no sublane gathers)
    r1a = jnp.dot(m1_ref[...], r1, preferred_element_type=jnp.float32)
    r1b = jnp.dot(m2_ref[...], r1, preferred_element_type=jnp.float32)
    r2a = jnp.dot(m1_ref[...], r2, preferred_element_type=jnp.float32)
    r2b = jnp.dot(m2_ref[...], r2, preferred_element_type=jnp.float32)
    r3 = r1a * r2b - r1b * r2a                                      # (3, Bb)

    # ---- out[b] = R_b @ pts_b, written channel-first (3, N): lane-dense -----
    # out[i, n] = r1[i]*x[0,n] + r2[i]*x[1,n] + r3[i]*x[2,n]
    for b in range(block_b):
        x = pts_ref[b]                                              # (3, N)
        out_ref[b] = (r1[:, b:b + 1] * x[0:1, :]
                      + r2[:, b:b + 1] * x[1:2, :]
                      + r3[:, b:b + 1] * x[2:3, :])


def _fold_bn_cf(w, bn):
    """Channel-first weight with BN scale folded in: returns (Wf (O,I), t (O,1))."""
    g, b, m, v = bn
    s = g / jnp.sqrt(v + BN_EPS)
    wf = w.T * s[:, None]            # exact: scale per output channel row
    t = (b - m * s)[:, None]
    return wf, t


def tnet_forward(pts, params, *, block_b=8, compute_dtype=jnp.float32):
    """pts: (B, 3, N) float32 (PyTorch NCW). Returns (B, 3, N)."""
    B, C, N = pts.shape
    assert C == 3
    x = pts.astype(jnp.float32)

    w1f, t1 = _fold_bn_cf(params['w1'], params['bn1'])
    w2f, t2 = _fold_bn_cf(params['w2'], params['bn2'])
    w3f, t3 = _fold_bn_cf(params['w3'], params['bn3'])
    w4f, t4 = _fold_bn_cf(params['w4'], params['bn4'])
    w5f, t5 = _fold_bn_cf(params['w5'], params['bn5'])
    # Encoder matmuls may run in bf16 on v6e/v7x (f32 accumulation in-kernel).
    w1f = w1f.astype(compute_dtype)
    w2f = w2f.astype(compute_dtype)
    w3f = w3f.astype(compute_dtype)

    w6, b6 = params['w6'], params['b6']
    w6a, b6a = w6[:, :3].T, b6[:3].reshape(3, 1)
    w6b, b6b = w6[:, 3:].T, b6[3:].reshape(3, 1)

    # Cyclic row-shift permutations: (M1 v)[i] = v[(i+1)%3], (M2 v)[i] = v[(i+2)%3].
    M1 = jnp.array([[0., 1., 0.], [0., 0., 1.], [1., 0., 0.]], jnp.float32)
    M2 = jnp.array([[0., 0., 1.], [1., 0., 0.], [0., 1., 0.]], jnp.float32)

    # Batch blocking: amortize per-step pipeline overhead while keeping >= 2
    # grid steps whenever B >= 2 (v7x has 2 TensorCores on the parallel axis).
    bb = max(1, min(block_b, B // 2 if B >= 2 else 1))
    n_blocks = -(-B // bb)
    B_pad = n_blocks * bb
    if B_pad != B:
        x = jnp.pad(x, ((0, B_pad - B), (0, 0), (0, 0)))

    inputs = [x,
              w1f, t1, w2f, t2, w3f, t3,
              w4f, t4, w5f, t5,
              w6a, b6a, w6b, b6b,
              M1, M2]

    def full_spec(arr):
        nd = arr.ndim
        return pl.BlockSpec(arr.shape, lambda i, _nd=nd: (0,) * _nd)

    in_specs = ([pl.BlockSpec((bb, 3, N), lambda i: (i, 0, 0))]
                + [full_spec(a) for a in inputs[1:]])

    flops = int(B_pad) * (2 * N * (3 * 64 + 64 * 128 + 128 * 256)   # encoder
                          + 2 * (256 * 128 + 128 * 64 + 2 * 64 * 3)  # decoder
                          + 8 * N * 3)                               # apply R
    bytes_accessed = (int(B_pad) * 3 * N * 4 * 2
                      + sum(int(np.prod(a.shape)) * a.dtype.itemsize
                            for a in inputs[1:]))

    out = pl.pallas_call(
        functools.partial(tnet_kernel, block_b=bb),
        out_shape=jax.ShapeDtypeStruct((B_pad, 3, N), jnp.float32),
        grid_spec=pltpu.PrefetchScalarGridSpec(
            num_scalar_prefetch=0,
            grid=(n_blocks,),
            in_specs=in_specs,
            out_specs=pl.BlockSpec((bb, 3, N), lambda i: (i, 0, 0)),
        ),
        compiler_params=pltpu.CompilerParams(
            dimension_semantics=("parallel",)),
        cost_estimate=pl.CostEstimate(
            flops=flops,
            transcendentals=2 * int(B_pad),
            bytes_accessed=bytes_accessed),
    )(*inputs)

    return out[:B] if B_pad != B else out


# ---------------- pure-JAX reference (mirrors the PyTorch module) ----------------
def tnet_reference(pts, params):
    x = jnp.transpose(pts, (0, 2, 1))  # (B, N, 3)

    def layer(h, w, bn):
        g, b, m, v = bn
        y = h @ w
        y = g * (y - m) / jnp.sqrt(v + BN_EPS) + b
        return jnp.maximum(y, 0.0)

    h = layer(x, params['w1'], params['bn1'])
    h = layer(h, params['w2'], params['bn2'])
    h = layer(h, params['w3'], params['bn3'])
    f = jnp.max(h, axis=1)                                   # (B, 256)
    f = layer(f, params['w4'], params['bn4'])
    f = layer(f, params['w5'], params['bn5'])
    f = f @ params['w6'] + params['b6']                      # (B, 6)

    a, b = f[:, :3], f[:, 3:]
    r1 = a / jnp.maximum(jnp.linalg.norm(a, axis=1, keepdims=True), NORM_EPS)
    proj = jnp.sum(r1 * b, axis=1, keepdims=True)
    r2u = b - proj * r1
    r2 = r2u / jnp.maximum(jnp.linalg.norm(r2u, axis=1, keepdims=True), NORM_EPS)
    r3 = jnp.cross(r1, r2)
    R = jnp.stack([r1, r2, r3], axis=2)                      # (B, 3, 3)
    return jnp.einsum('bij,bjn->bin', R, pts)


def init_params(key):
    dims = [(3, 64), (64, 128), (128, 256), (256, 128), (128, 64), (64, 6)]
    bn_ch = [64, 128, 256, 128, 64]
    keys = jax.random.split(key, 32)
    ki = 0
    p = {}
    for li, (fi, fo) in enumerate(dims, start=1):
        p[f'w{li}'] = (jax.random.normal(keys[ki], (fi, fo), jnp.float32)
                       / jnp.sqrt(float(fi)))
        ki += 1
    for li, c in enumerate(bn_ch, start=1):
        g = 0.5 + jax.random.uniform(keys[ki], (c,), jnp.float32); ki += 1
        b = 0.1 * jax.random.normal(keys[ki], (c,), jnp.float32); ki += 1
        m = 0.1 * jax.random.normal(keys[ki], (c,), jnp.float32); ki += 1
        v = 0.5 + jax.random.uniform(keys[ki], (c,), jnp.float32); ki += 1
        p[f'bn{li}'] = (g, b, m, v)
    p['b6'] = 0.1 * jax.random.normal(keys[ki], (6,), jnp.float32)
    return p


if __name__ == "__main__":
    key = jax.random.PRNGKey(0)
    k_pts, k_par = jax.random.split(key)

    B, N = 4, 128
    pts = jax.random.normal(k_pts, (B, 3, N), dtype=jnp.float32)  # PyTorch NCW layout
    params = init_params(k_par)

    out = tnet_forward(pts, params)           # f32 everywhere -> exact-ish match
    out = jax.block_until_ready(out)

    ref = tnet_reference(pts, params)
    assert out.shape == (B, 3, N)
    np.testing.assert_allclose(np.asarray(out), np.asarray(ref), rtol=2e-3, atol=2e-3)
    print("KERNEL_OK")
</pallas_src>

<mosaic_0001>
module attributes {stable_mosaic.version = 11 : i64} {
  func.func @tnet_kernel(%arg0: i32, %arg1: memref<2x3x128xf32, #tpu.memory_space<vmem>>, %arg2: memref<64x3xf32, #tpu.memory_space<vmem>>, %arg3: memref<64x1xf32, #tpu.memory_space<vmem>>, %arg4: memref<128x64xf32, #tpu.memory_space<vmem>>, %arg5: memref<128x1xf32, #tpu.memory_space<vmem>>, %arg6: memref<256x128xf32, #tpu.memory_space<vmem>>, %arg7: memref<256x1xf32, #tpu.memory_space<vmem>>, %arg8: memref<128x256xf32, #tpu.memory_space<vmem>>, %arg9: memref<128x1xf32, #tpu.memory_space<vmem>>, %arg10: memref<64x128xf32, #tpu.memory_space<vmem>>, %arg11: memref<64x1xf32, #tpu.memory_space<vmem>>, %arg12: memref<3x64xf32, #tpu.memory_space<vmem>>, %arg13: memref<3x1xf32, #tpu.memory_space<vmem>>, %arg14: memref<3x64xf32, #tpu.memory_space<vmem>>, %arg15: memref<3x1xf32, #tpu.memory_space<vmem>>, %arg16: memref<3x3xf32, #tpu.memory_space<vmem>>, %arg17: memref<3x3xf32, #tpu.memory_space<vmem>>, %arg18: memref<2x3x128xf32, #tpu.memory_space<vmem>>) attributes {dimension_semantics = [#tpu.dimension_semantics<parallel>], iteration_bounds = array<i64: 2>, scalar_prefetch = 0 : i64, scratch_operands = 0 : i64, tpu.core_type = #tpu.core_type<tc>, window_params = [{transform_indices = @transform_0, window_bounds = array<i64: 2, 3, 128>}, {pipeline_mode = #tpu.pipeline_mode<synchronous>, transform_indices = @transform_1, window_bounds = array<i64: 64, 3>}, {pipeline_mode = #tpu.pipeline_mode<synchronous>, transform_indices = @transform_2, window_bounds = array<i64: 64, 1>}, {pipeline_mode = #tpu.pipeline_mode<synchronous>, transform_indices = @transform_3, window_bounds = array<i64: 128, 64>}, {pipeline_mode = #tpu.pipeline_mode<synchronous>, transform_indices = @transform_4, window_bounds = array<i64: 128, 1>}, {pipeline_mode = #tpu.pipeline_mode<synchronous>, transform_indices = @transform_5, window_bounds = array<i64: 256, 128>}, {pipeline_mode = #tpu.pipeline_mode<synchronous>, transform_indices = @transform_6, window_bounds = array<i64: 256, 1>}, {pipeline_mode = #tpu.pipeline_mode<synchronous>, transform_indices = @transform_7, window_bounds = array<i64: 128, 256>}, {pipeline_mode = #tpu.pipeline_mode<synchronous>, transform_indices = @transform_8, window_bounds = array<i64: 128, 1>}, {pipeline_mode = #tpu.pipeline_mode<synchronous>, transform_indices = @transform_9, window_bounds = array<i64: 64, 128>}, {pipeline_mode = #tpu.pipeline_mode<synchronous>, transform_indices = @transform_10, window_bounds = array<i64: 64, 1>}, {pipeline_mode = #tpu.pipeline_mode<synchronous>, transform_indices = @transform_11, window_bounds = array<i64: 3, 64>}, {pipeline_mode = #tpu.pipeline_mode<synchronous>, transform_indices = @transform_12, window_bounds = array<i64: 3, 1>}, {pipeline_mode = #tpu.pipeline_mode<synchronous>, transform_indices = @transform_13, window_bounds = array<i64: 3, 64>}, {pipeline_mode = #tpu.pipeline_mode<synchronous>, transform_indices = @transform_14, window_bounds = array<i64: 3, 1>}, {pipeline_mode = #tpu.pipeline_mode<synchronous>, transform_indices = @transform_15, window_bounds = array<i64: 3, 3>}, {pipeline_mode = #tpu.pipeline_mode<synchronous>, transform_indices = @transform_16, window_bounds = array<i64: 3, 3>}, {transform_indices = @transform_17, window_bounds = array<i64: 2, 3, 128>}]} {
    %c0 = arith.constant 0 : index
    %c0_0 = arith.constant 0 : index
    %c0_1 = arith.constant 0 : index
    %0 = vector.load %arg1[%c0, %c0_0, %c0_1] : memref<2x3x128xf32, #tpu.memory_space<vmem>>, vector<1x3x128xf32>
    %1 = vector.shape_cast %0 : vector<1x3x128xf32> to vector<3x128xf32>
    %c0_2 = arith.constant 0 : index
    %c0_3 = arith.constant 0 : index
    %2 = vector.load %arg2[%c0_2, %c0_3] : memref<64x3xf32, #tpu.memory_space<vmem>>, vector<64x3xf32>
    %cst = arith.constant dense<0.000000e+00> : vector<64x128xf32>
    %3 = tpu.matmul %2, %1, %cst {dimension_numbers = #tpu.dot_dimension_numbers<[1], [0], [0], [1], [0, 0, 1, 1], [], []>} : vector<64x3xf32>, vector<3x128xf32>, vector<64x128xf32> -> vector<64x128xf32>
    %c0_4 = arith.constant 0 : index
    %c0_5 = arith.constant 0 : index
    %4 = vector.load %arg3[%c0_4, %c0_5] : memref<64x1xf32, #tpu.memory_space<vmem>>, vector<64x1xf32>
    %5 = vector.broadcast %4 : vector<64x1xf32> to vector<64x128xf32>
    %6 = arith.addf %3, %5 : vector<64x128xf32>
    %cst_6 = arith.constant 0.000000e+00 : f32
    %7 = vector.broadcast %cst_6 : f32 to vector<64x128xf32>
    %8 = arith.maximumf %6, %7 : vector<64x128xf32>
    %c0_7 = arith.constant 0 : index
    %c0_8 = arith.constant 0 : index
    %9 = vector.load %arg4[%c0_7, %c0_8] : memref<128x64xf32, #tpu.memory_space<vmem>>, vector<128x64xf32>
    %cst_9 = arith.constant dense<0.000000e+00> : vector<128x128xf32>
    %10 = tpu.matmul %9, %8, %cst_9 {dimension_numbers = #tpu.dot_dimension_numbers<[1], [0], [0], [1], [0, 0, 1, 1], [], []>} : vector<128x64xf32>, vector<64x128xf32>, vector<128x128xf32> -> vector<128x128xf32>
    %c0_10 = arith.constant 0 : index
    %c0_11 = arith.constant 0 : index
    %11 = vector.load %arg5[%c0_10, %c0_11] : memref<128x1xf32, #tpu.memory_space<vmem>>, vector<128x1xf32>
    %12 = vector.broadcast %11 : vector<128x1xf32> to vector<128x128xf32>
    %13 = arith.addf %10, %12 : vector<128x128xf32>
    %cst_12 = arith.constant 0.000000e+00 : f32
    %14 = vector.broadcast %cst_12 : f32 to vector<128x128xf32>
    %15 = arith.maximumf %13, %14 : vector<128x128xf32>
    %c0_13 = arith.constant 0 : index
    %c0_14 = arith.constant 0 : index
    %16 = vector.load %arg6[%c0_13, %c0_14] : memref<256x128xf32, #tpu.memory_space<vmem>>, vector<256x128xf32>
    %cst_15 = arith.constant dense<0.000000e+00> : vector<256x128xf32>
    %17 = tpu.matmul %16, %15, %cst_15 {dimension_numbers = #tpu.dot_dimension_numbers<[1], [0], [0], [1], [0, 0, 1, 1], [], []>} : vector<256x128xf32>, vector<128x128xf32>, vector<256x128xf32> -> vector<256x128xf32>
    %c0_16 = arith.constant 0 : index
    %c0_17 = arith.constant 0 : index
    %18 = vector.load %arg7[%c0_16, %c0_17] : memref<256x1xf32, #tpu.memory_space<vmem>>, vector<256x1xf32>
    %19 = vector.broadcast %18 : vector<256x1xf32> to vector<256x128xf32>
    %20 = arith.addf %17, %19 : vector<256x128xf32>
    %cst_18 = arith.constant 0.000000e+00 : f32
    %21 = vector.broadcast %cst_18 : f32 to vector<256x128xf32>
    %22 = arith.maximumf %20, %21 : vector<256x128xf32>
    %cst_19 = arith.constant dense<0xFF800000> : vector<256xf32>
    %23 = vector.multi_reduction <maximumf>, %22, %cst_19 [1] : vector<256x128xf32> to vector<256xf32>
    %24 = vector.shape_cast %23 : vector<256xf32> to vector<256x1xf32>
    %c1 = arith.constant 1 : index
    %c0_20 = arith.constant 0 : index
    %c0_21 = arith.constant 0 : index
    %25 = vector.load %arg1[%c1, %c0_20, %c0_21] : memref<2x3x128xf32, #tpu.memory_space<vmem>>, vector<1x3x128xf32>
    %26 = vector.shape_cast %25 : vector<1x3x128xf32> to vector<3x128xf32>
    %c0_22 = arith.constant 0 : index
    %c0_23 = arith.constant 0 : index
    %27 = vector.load %arg2[%c0_22, %c0_23] : memref<64x3xf32, #tpu.memory_space<vmem>>, vector<64x3xf32>
    %cst_24 = arith.constant dense<0.000000e+00> : vector<64x128xf32>
    %28 = tpu.matmul %27, %26, %cst_24 {dimension_numbers = #tpu.dot_dimension_numbers<[1], [0], [0], [1], [0, 0, 1, 1], [], []>} : vector<64x3xf32>, vector<3x128xf32>, vector<64x128xf32> -> vector<64x128xf32>
    %c0_25 = arith.constant 0 : index
    %c0_26 = arith.constant 0 : index
    %29 = vector.load %arg3[%c0_25, %c0_26] : memref<64x1xf32, #tpu.memory_space<vmem>>, vector<64x1xf32>
    %30 = vector.broadcast %29 : vector<64x1xf32> to vector<64x128xf32>
    %31 = arith.addf %28, %30 : vector<64x128xf32>
    %cst_27 = arith.constant 0.000000e+00 : f32
    %32 = vector.broadcast %cst_27 : f32 to vector<64x128xf32>
    %33 = arith.maximumf %31, %32 : vector<64x128xf32>
    %c0_28 = arith.constant 0 : index
    %c0_29 = arith.constant 0 : index
    %34 = vector.load %arg4[%c0_28, %c0_29] : memref<128x64xf32, #tpu.memory_space<vmem>>, vector<128x64xf32>
    %cst_30 = arith.constant dense<0.000000e+00> : vector<128x128xf32>
    %35 = tpu.matmul %34, %33, %cst_30 {dimension_numbers = #tpu.dot_dimension_numbers<[1], [0], [0], [1], [0, 0, 1, 1], [], []>} : vector<128x64xf32>, vector<64x128xf32>, vector<128x128xf32> -> vector<128x128xf32>
    %c0_31 = arith.constant 0 : index
    %c0_32 = arith.constant 0 : index
    %36 = vector.load %arg5[%c0_31, %c0_32] : memref<128x1xf32, #tpu.memory_space<vmem>>, vector<128x1xf32>
    %37 = vector.broadcast %36 : vector<128x1xf32> to vector<128x128xf32>
    %38 = arith.addf %35, %37 : vector<128x128xf32>
    %cst_33 = arith.constant 0.000000e+00 : f32
    %39 = vector.broadcast %cst_33 : f32 to vector<128x128xf32>
    %40 = arith.maximumf %38, %39 : vector<128x128xf32>
    %c0_34 = arith.constant 0 : index
    %c0_35 = arith.constant 0 : index
    %41 = vector.load %arg6[%c0_34, %c0_35] : memref<256x128xf32, #tpu.memory_space<vmem>>, vector<256x128xf32>
    %cst_36 = arith.constant dense<0.000000e+00> : vector<256x128xf32>
    %42 = tpu.matmul %41, %40, %cst_36 {dimension_numbers = #tpu.dot_dimension_numbers<[1], [0], [0], [1], [0, 0, 1, 1], [], []>} : vector<256x128xf32>, vector<128x128xf32>, vector<256x128xf32> -> vector<256x128xf32>
    %c0_37 = arith.constant 0 : index
    %c0_38 = arith.constant 0 : index
    %43 = vector.load %arg7[%c0_37, %c0_38] : memref<256x1xf32, #tpu.memory_space<vmem>>, vector<256x1xf32>
    %44 = vector.broadcast %43 : vector<256x1xf32> to vector<256x128xf32>
    %45 = arith.addf %42, %44 : vector<256x128xf32>
    %cst_39 = arith.constant 0.000000e+00 : f32
    %46 = vector.broadcast %cst_39 : f32 to vector<256x128xf32>
    %47 = arith.maximumf %45, %46 : vector<256x128xf32>
    %cst_40 = arith.constant dense<0xFF800000> : vector<256xf32>
    %48 = vector.multi_reduction <maximumf>, %47, %cst_40 [1] : vector<256x128xf32> to vector<256xf32>
    %49 = vector.shape_cast %48 : vector<256xf32> to vector<256x1xf32>
    %50 = tpu.concatenate %24, %49 in 1 : vector<256x1xf32>, vector<256x1xf32> -> vector<256x2xf32>
    %c0_41 = arith.constant 0 : index
    %c0_42 = arith.constant 0 : index
    %51 = vector.load %arg8[%c0_41, %c0_42] : memref<128x256xf32, #tpu.memory_space<vmem>>, vector<128x256xf32>
    %cst_43 = arith.constant dense<0.000000e+00> : vector<128x2xf32>
    %52 = tpu.matmul %51, %50, %cst_43 {dimension_numbers = #tpu.dot_dimension_numbers<[1], [0], [0], [1], [0, 0, 1, 1], [], []>} : vector<128x256xf32>, vector<256x2xf32>, vector<128x2xf32> -> vector<128x2xf32>
    %c0_44 = arith.constant 0 : index
    %c0_45 = arith.constant 0 : index
    %53 = vector.load %arg9[%c0_44, %c0_45] : memref<128x1xf32, #tpu.memory_space<vmem>>, vector<128x1xf32>
    %54 = vector.broadcast %53 : vector<128x1xf32> to vector<128x2xf32>
    %55 = arith.addf %52, %54 : vector<128x2xf32>
    %cst_46 = arith.constant 0.000000e+00 : f32
    %56 = vector.broadcast %cst_46 : f32 to vector<128x2xf32>
    %57 = arith.maximumf %55, %56 : vector<128x2xf32>
    %c0_47 = arith.constant 0 : index
    %c0_48 = arith.constant 0 : index
    %58 = vector.load %arg10[%c0_47, %c0_48] : memref<64x128xf32, #tpu.memory_space<vmem>>, vector<64x128xf32>
    %cst_49 = arith.constant dense<0.000000e+00> : vector<64x2xf32>
    %59 = tpu.matmul %58, %57, %cst_49 {dimension_numbers = #tpu.dot_dimension_numbers<[1], [0], [0], [1], [0, 0, 1, 1], [], []>} : vector<64x128xf32>, vector<128x2xf32>, vector<64x2xf32> -> vector<64x2xf32>
    %c0_50 = arith.constant 0 : index
    %c0_51 = arith.constant 0 : index
    %60 = vector.load %arg11[%c0_50, %c0_51] : memref<64x1xf32, #tpu.memory_space<vmem>>, vector<64x1xf32>
    %61 = vector.broadcast %60 : vector<64x1xf32> to vector<64x2xf32>
    %62 = arith.addf %59, %61 : vector<64x2xf32>
    %cst_52 = arith.constant 0.000000e+00 : f32
    %63 = vector.broadcast %cst_52 : f32 to vector<64x2xf32>
    %64 = arith.maximumf %62, %63 : vector<64x2xf32>
    %c0_53 = arith.constant 0 : index
    %c0_54 = arith.constant 0 : index
    %65 = vector.load %arg12[%c0_53, %c0_54] : memref<3x64xf32, #tpu.memory_space<vmem>>, vector<3x64xf32>
    %cst_55 = arith.constant dense<0.000000e+00> : vector<3x2xf32>
    %66 = tpu.matmul %65, %64, %cst_55 {dimension_numbers = #tpu.dot_dimension_numbers<[1], [0], [0], [1], [0, 0, 1, 1], [], []>} : vector<3x64xf32>, vector<64x2xf32>, vector<3x2xf32> -> vector<3x2xf32>
    %c0_56 = arith.constant 0 : index
    %c0_57 = arith.constant 0 : index
    %67 = vector.load %arg13[%c0_56, %c0_57] : memref<3x1xf32, #tpu.memory_space<vmem>>, vector<3x1xf32>
    %68 = vector.broadcast %67 : vector<3x1xf32> to vector<3x2xf32>
    %69 = arith.addf %66, %68 : vector<3x2xf32>
    %c0_58 = arith.constant 0 : index
    %c0_59 = arith.constant 0 : index
    %70 = vector.load %arg14[%c0_58, %c0_59] : memref<3x64xf32, #tpu.memory_space<vmem>>, vector<3x64xf32>
    %cst_60 = arith.constant dense<0.000000e+00> : vector<3x2xf32>
    %71 = tpu.matmul %70, %64, %cst_60 {dimension_numbers = #tpu.dot_dimension_numbers<[1], [0], [0], [1], [0, 0, 1, 1], [], []>} : vector<3x64xf32>, vector<64x2xf32>, vector<3x2xf32> -> vector<3x2xf32>
    %c0_61 = arith.constant 0 : index
    %c0_62 = arith.constant 0 : index
    %72 = vector.load %arg15[%c0_61, %c0_62] : memref<3x1xf32, #tpu.memory_space<vmem>>, vector<3x1xf32>
    %73 = vector.broadcast %72 : vector<3x1xf32> to vector<3x2xf32>
    %74 = arith.addf %71, %73 : vector<3x2xf32>
    %75 = arith.mulf %69, %69 : vector<3x2xf32>
    %cst_63 = arith.constant dense<0.000000e+00> : vector<2xf32>
    %76 = vector.multi_reduction <add>, %75, %cst_63 [0] : vector<3x2xf32> to vector<2xf32>
    %77 = vector.shape_cast %76 : vector<2xf32> to vector<1x2xf32>
    %78 = math.sqrt %77 : vector<1x2xf32>
    %cst_64 = arith.constant 9.99999996E-13 : f32
    %79 = vector.broadcast %cst_64 : f32 to vector<1x2xf32>
    %80 = arith.maximumf %78, %79 : vector<1x2xf32>
    %81 = vector.broadcast %80 : vector<1x2xf32> to vector<3x2xf32>
    %82 = arith.divf %69, %81 : vector<3x2xf32>
    %83 = arith.mulf %82, %74 : vector<3x2xf32>
    %cst_65 = arith.constant dense<0.000000e+00> : vector<2xf32>
    %84 = vector.multi_reduction <add>, %83, %cst_65 [0] : vector<3x2xf32> to vector<2xf32>
    %85 = vector.shape_cast %84 : vector<2xf32> to vector<1x2xf32>
    %86 = vector.broadcast %85 : vector<1x2xf32> to vector<3x2xf32>
    %87 = arith.mulf %86, %82 : vector<3x2xf32>
    %88 = arith.subf %74, %87 : vector<3x2xf32>
    %89 = arith.mulf %88, %88 : vector<3x2xf32>
    %cst_66 = arith.constant dense<0.000000e+00> : vector<2xf32>
    %90 = vector.multi_reduction <add>, %89, %cst_66 [0] : vector<3x2xf32> to vector<2xf32>
    %91 = vector.shape_cast %90 : vector<2xf32> to vector<1x2xf32>
    %92 = math.sqrt %91 : vector<1x2xf32>
    %cst_67 = arith.constant 9.99999996E-13 : f32
    %93 = vector.broadcast %cst_67 : f32 to vector<1x2xf32>
    %94 = arith.maximumf %92, %93 : vector<1x2xf32>
    %95 = vector.broadcast %94 : vector<1x2xf32> to vector<3x2xf32>
    %96 = arith.divf %88, %95 : vector<3x2xf32>
    %c0_68 = arith.constant 0 : index
    %c0_69 = arith.constant 0 : index
    %97 = vector.load %arg16[%c0_68, %c0_69] : memref<3x3xf32, #tpu.memory_space<vmem>>, vector<3x3xf32>
    %cst_70 = arith.constant dense<0.000000e+00> : vector<3x2xf32>
    %98 = tpu.matmul %97, %82, %cst_70 {dimension_numbers = #tpu.dot_dimension_numbers<[1], [0], [0], [1], [0, 0, 1, 1], [], []>} : vector<3x3xf32>, vector<3x2xf32>, vector<3x2xf32> -> vector<3x2xf32>
    %c0_71 = arith.constant 0 : index
    %c0_72 = arith.constant 0 : index
    %99 = vector.load %arg17[%c0_71, %c0_72] : memref<3x3xf32, #tpu.memory_space<vmem>>, vector<3x3xf32>
    %cst_73 = arith.constant dense<0.000000e+00> : vector<3x2xf32>
    %100 = tpu.matmul %99, %82, %cst_73 {dimension_numbers = #tpu.dot_dimension_numbers<[1], [0], [0], [1], [0, 0, 1, 1], [], []>} : vector<3x3xf32>, vector<3x2xf32>, vector<3x2xf32> -> vector<3x2xf32>
    %c0_74 = arith.constant 0 : index
    %c0_75 = arith.constant 0 : index
    %101 = vector.load %arg16[%c0_74, %c0_75] : memref<3x3xf32, #tpu.memory_space<vmem>>, vector<3x3xf32>
    %cst_76 = arith.constant dense<0.000000e+00> : vector<3x2xf32>
    %102 = tpu.matmul %101, %96, %cst_76 {dimension_numbers = #tpu.dot_dimension_numbers<[1], [0], [0], [1], [0, 0, 1, 1], [], []>} : vector<3x3xf32>, vector<3x2xf32>, vector<3x2xf32> -> vector<3x2xf32>
    %c0_77 = arith.constant 0 : index
    %c0_78 = arith.constant 0 : index
    %103 = vector.load %arg17[%c0_77, %c0_78] : memref<3x3xf32, #tpu.memory_space<vmem>>, vector<3x3xf32>
    %cst_79 = arith.constant dense<0.000000e+00> : vector<3x2xf32>
    %104 = tpu.matmul %103, %96, %cst_79 {dimension_numbers = #tpu.dot_dimension_numbers<[1], [0], [0], [1], [0, 0, 1, 1], [], []>} : vector<3x3xf32>, vector<3x2xf32>, vector<3x2xf32> -> vector<3x2xf32>
    %105 = arith.mulf %98, %104 : vector<3x2xf32>
    %106 = arith.mulf %100, %102 : vector<3x2xf32>
    %107 = arith.subf %105, %106 : vector<3x2xf32>
    %c0_80 = arith.constant 0 : index
    %c0_81 = arith.constant 0 : index
    %c0_82 = arith.constant 0 : index
    %108 = vector.load %arg1[%c0_80, %c0_81, %c0_82] : memref<2x3x128xf32, #tpu.memory_space<vmem>>, vector<1x3x128xf32>
    %109 = vector.shape_cast %108 : vector<1x3x128xf32> to vector<3x128xf32>
    %110 = vector.extract_strided_slice %82 {offsets = [0, 0], sizes = [3, 1], strides = [1, 1]} : vector<3x2xf32> to vector<3x1xf32>
    %111 = vector.extract_strided_slice %109 {offsets = [0, 0], sizes = [1, 128], strides = [1, 1]} : vector<3x128xf32> to vector<1x128xf32>
    %112 = vector.broadcast %110 : vector<3x1xf32> to vector<3x128xf32>
    %113 = vector.broadcast %111 : vector<1x128xf32> to vector<3x128xf32>
    %114 = arith.mulf %112, %113 : vector<3x128xf32>
    %115 = vector.extract_strided_slice %96 {offsets = [0, 0], sizes = [3, 1], strides = [1, 1]} : vector<3x2xf32> to vector<3x1xf32>
    %116 = vector.extract_strided_slice %109 {offsets = [1, 0], sizes = [1, 128], strides = [1, 1]} : vector<3x128xf32> to vector<1x128xf32>
    %117 = vector.broadcast %115 : vector<3x1xf32> to vector<3x128xf32>
    %118 = vector.broadcast %116 : vector<1x128xf32> to vector<3x128xf32>
    %119 = arith.mulf %117, %118 : vector<3x128xf32>
    %120 = arith.addf %114, %119 : vector<3x128xf32>
    %121 = vector.extract_strided_slice %107 {offsets = [0, 0], sizes = [3, 1], strides = [1, 1]} : vector<3x2xf32> to vector<3x1xf32>
    %122 = vector.extract_strided_slice %109 {offsets = [2, 0], sizes = [1, 128], strides = [1, 1]} : vector<3x128xf32> to vector<1x128xf32>
    %123 = vector.broadcast %121 : vector<3x1xf32> to vector<3x128xf32>
    %124 = vector.broadcast %122 : vector<1x128xf32> to vector<3x128xf32>
    %125 = arith.mulf %123, %124 : vector<3x128xf32>
    %126 = arith.addf %120, %125 : vector<3x128xf32>
    %c0_83 = arith.constant 0 : index
    %c0_84 = arith.constant 0 : index
    %c0_85 = arith.constant 0 : index
    %127 = vector.load %arg18[%c0_83, %c0_84, %c0_85] : memref<2x3x128xf32, #tpu.memory_space<vmem>>, vector<1x3x128xf32>
    %128 = vector.shape_cast %127 : vector<1x3x128xf32> to vector<3x128xf32>
    %129 = vector.shape_cast %126 : vector<3x128xf32> to vector<1x3x128xf32>
    tpu.vector_store %arg18[%c0_83, %c0_84, %c0_85], %129 {strides = array<i32>} : memref<2x3x128xf32, #tpu.memory_space<vmem>>, vector<1x3x128xf32>,
    %c1_86 = arith.constant 1 : index
    %c0_87 = arith.constant 0 : index
    %c0_88 = arith.constant 0 : index
    %130 = vector.load %arg1[%c1_86, %c0_87, %c0_88] : memref<2x3x128xf32, #tpu.memory_space<vmem>>, vector<1x3x128xf32>
    %131 = vector.shape_cast %130 : vector<1x3x128xf32> to vector<3x128xf32>
    %132 = vector.extract_strided_slice %82 {offsets = [0, 1], sizes = [3, 1], strides = [1, 1]} : vector<3x2xf32> to vector<3x1xf32>
    %133 = vector.extract_strided_slice %131 {offsets = [0, 0], sizes = [1, 128], strides = [1, 1]} : vector<3x128xf32> to vector<1x128xf32>
    %134 = vector.broadcast %132 : vector<3x1xf32> to vector<3x128xf32>
    %135 = vector.broadcast %133 : vector<1x128xf32> to vector<3x128xf32>
    %136 = arith.mulf %134, %135 : vector<3x128xf32>
    %137 = vector.extract_strided_slice %96 {offsets = [0, 1], sizes = [3, 1], strides = [1, 1]} : vector<3x2xf32> to vector<3x1xf32>
    %138 = vector.extract_strided_slice %131 {offsets = [1, 0], sizes = [1, 128], strides = [1, 1]} : vector<3x128xf32> to vector<1x128xf32>
    %139 = vector.broadcast %137 : vector<3x1xf32> to vector<3x128xf32>
    %140 = vector.broadcast %138 : vector<1x128xf32> to vector<3x128xf32>
    %141 = arith.mulf %139, %140 : vector<3x128xf32>
    %142 = arith.addf %136, %141 : vector<3x128xf32>
    %143 = vector.extract_strided_slice %107 {offsets = [0, 1], sizes = [3, 1], strides = [1, 1]} : vector<3x2xf32> to vector<3x1xf32>
    %144 = vector.extract_strided_slice %131 {offsets = [2, 0], sizes = [1, 128], strides = [1, 1]} : vector<3x128xf32> to vector<1x128xf32>
    %145 = vector.broadcast %143 : vector<3x1xf32> to vector<3x128xf32>
    %146 = vector.broadcast %144 : vector<1x128xf32> to vector<3x128xf32>
    %147 = arith.mulf %145, %146 : vector<3x128xf32>
    %148 = arith.addf %142, %147 : vector<3x128xf32>
    %c1_89 = arith.constant 1 : index
    %c0_90 = arith.constant 0 : index
    %c0_91 = arith.constant 0 : index
    %149 = vector.load %arg18[%c1_89, %c0_90, %c0_91] : memref<2x3x128xf32, #tpu.memory_space<vmem>>, vector<1x3x128xf32>
    %150 = vector.shape_cast %149 : vector<1x3x128xf32> to vector<3x128xf32>
    %151 = vector.shape_cast %148 : vector<3x128xf32> to vector<1x3x128xf32>
    tpu.vector_store %arg18[%c1_89, %c0_90, %c0_91], %151 {strides = array<i32>} : memref<2x3x128xf32, #tpu.memory_space<vmem>>, vector<1x3x128xf32>,
    return
  }
  func.func @transform_0(%arg0: i32) -> (i32, i32, i32) {
    %c0_i32 = arith.constant 0 : i32
    %c0_i32_0 = arith.constant 0 : i32
    %c0_i32_1 = arith.constant 0 : i32
    return %arg0, %c0_i32, %c0_i32_0 : i32, i32, i32
  }
  func.func @transform_1(%arg0: i32) -> (i32, i32) {
    %c0_i32 = arith.constant 0 : i32
    %c0_i32_0 = arith.constant 0 : i32
    %c0_i32_1 = arith.constant 0 : i32
    return %c0_i32, %c0_i32_0 : i32, i32
  }
  func.func @transform_2(%arg0: i32) -> (i32, i32) {
    %c0_i32 = arith.constant 0 : i32
    %c0_i32_0 = arith.constant 0 : i32
    %c0_i32_1 = arith.constant 0 : i32
    return %c0_i32, %c0_i32_0 : i32, i32
  }
  func.func @transform_3(%arg0: i32) -> (i32, i32) {
    %c0_i32 = arith.constant 0 : i32
    %c0_i32_0 = arith.constant 0 : i32
    %c0_i32_1 = arith.constant 0 : i32
    return %c0_i32, %c0_i32_0 : i32, i32
  }
  func.func @transform_4(%arg0: i32) -> (i32, i32) {
    %c0_i32 = arith.constant 0 : i32
    %c0_i32_0 = arith.constant 0 : i32
    %c0_i32_1 = arith.constant 0 : i32
    return %c0_i32, %c0_i32_0 : i32, i32
  }
  func.func @transform_5(%arg0: i32) -> (i32, i32) {
    %c0_i32 = arith.constant 0 : i32
    %c0_i32_0 = arith.constant 0 : i32
    %c0_i32_1 = arith.constant 0 : i32
    return %c0_i32, %c0_i32_0 : i32, i32
  }
  func.func @transform_6(%arg0: i32) -> (i32, i32) {
    %c0_i32 = arith.constant 0 : i32
    %c0_i32_0 = arith.constant 0 : i32
    %c0_i32_1 = arith.constant 0 : i32
    return %c0_i32, %c0_i32_0 : i32, i32
  }
  func.func @transform_7(%arg0: i32) -> (i32, i32) {
    %c0_i32 = arith.constant 0 : i32
    %c0_i32_0 = arith.constant 0 : i32
    %c0_i32_1 = arith.constant 0 : i32
    return %c0_i32, %c0_i32_0 : i32, i32
  }
  func.func @transform_8(%arg0: i32) -> (i32, i32) {
    %c0_i32 = arith.constant 0 : i32
    %c0_i32_0 = arith.constant 0 : i32
    %c0_i32_1 = arith.constant 0 : i32
    return %c0_i32, %c0_i32_0 : i32, i32
  }
  func.func @transform_9(%arg0: i32) -> (i32, i32) {
    %c0_i32 = arith.constant 0 : i32
    %c0_i32_0 = arith.constant 0 : i32
    %c0_i32_1 = arith.constant 0 : i32
    return %c0_i32, %c0_i32_0 : i32, i32
  }
  func.func @transform_10(%arg0: i32) -> (i32, i32) {
    %c0_i32 = arith.constant 0 : i32
    %c0_i32_0 = arith.constant 0 : i32
    %c0_i32_1 = arith.constant 0 : i32
    return %c0_i32, %c0_i32_0 : i32, i32
  }
  func.func @transform_11(%arg0: i32) -> (i32, i32) {
    %c0_i32 = arith.constant 0 : i32
    %c0_i32_0 = arith.constant 0 : i32
    %c0_i32_1 = arith.constant 0 : i32
    return %c0_i32, %c0_i32_0 : i32, i32
  }
  func.func @transform_12(%arg0: i32) -> (i32, i32) {
    %c0_i32 = arith.constant 0 : i32
    %c0_i32_0 = arith.constant 0 : i32
    %c0_i32_1 = arith.constant 0 : i32
    return %c0_i32, %c0_i32_0 : i32, i32
  }
  func.func @transform_13(%arg0: i32) -> (i32, i32) {
    %c0_i32 = arith.constant 0 : i32
    %c0_i32_0 = arith.constant 0 : i32
    %c0_i32_1 = arith.constant 0 : i32
    return %c0_i32, %c0_i32_0 : i32, i32
  }
  func.func @transform_14(%arg0: i32) -> (i32, i32) {
    %c0_i32 = arith.constant 0 : i32
    %c0_i32_0 = arith.constant 0 : i32
    %c0_i32_1 = arith.constant 0 : i32
    return %c0_i32, %c0_i32_0 : i32, i32
  }
  func.func @transform_15(%arg0: i32) -> (i32, i32) {
    %c0_i32 = arith.constant 0 : i32
    %c0_i32_0 = arith.constant 0 : i32
    %c0_i32_1 = arith.constant 0 : i32
    return %c0_i32, %c0_i32_0 : i32, i32
  }
  func.func @transform_16(%arg0: i32) -> (i32, i32) {
    %c0_i32 = arith.constant 0 : i32
    %c0_i32_0 = arith.constant 0 : i32
    %c0_i32_1 = arith.constant 0 : i32
    return %c0_i32, %c0_i32_0 : i32, i32
  }
  func.func @transform_17(%arg0: i32) -> (i32, i32, i32) {
    %c0_i32 = arith.constant 0 : i32
    %c0_i32_0 = arith.constant 0 : i32
    %c0_i32_1 = arith.constant 0 : i32
    return %arg0, %c0_i32, %c0_i32_0 : i32, i32, i32
  }
}

</mosaic_0001>

<llo_original>
// kernel: tpu_custom_call.1
$region0: #{tpu_custom_call.1}
  #allocation0 [shape = 'u32[]', space=smem, size = 0x4, offset = 0x4, fixed_abs, tag = 'smem constant byte address 0x4 - core index']
  #allocation1 [shape = 'u32[144,128]{1,0:T(1,128)}', space=vmem, size = 0x12000, scoped, tag = 'internal scratch']
  %s0 = inlined_call_operand.vmem [shape: f32[4,3,128], index: 0, kind: input, shape index: {}]
  %s1 = inlined_call_operand.vmem [shape: f32[64,3], index: 1, kind: input, shape index: {}]
  %s2 = inlined_call_operand.vmem [shape: f32[64,1], index: 2, kind: input, shape index: {}]
  %s3 = inlined_call_operand.vmem [shape: f32[128,64], index: 3, kind: input, shape index: {}]
  %s4 = inlined_call_operand.vmem [shape: f32[128,1], index: 4, kind: input, shape index: {}]
  %s5 = inlined_call_operand.vmem [shape: f32[256,128], index: 5, kind: input, shape index: {}]
  %s6 = inlined_call_operand.vmem [shape: f32[256,1], index: 6, kind: input, shape index: {}]
  %s7 = inlined_call_operand.vmem [shape: f32[128,256], index: 7, kind: input, shape index: {}]
  %s8 = inlined_call_operand.vmem [shape: f32[128,1], index: 8, kind: input, shape index: {}]
  %s9 = inlined_call_operand.vmem [shape: f32[64,128], index: 9, kind: input, shape index: {}]
  %s10 = inlined_call_operand.vmem [shape: f32[64,1], index: 10, kind: input, shape index: {}]
  %s11 = inlined_call_operand.vmem [shape: f32[3,64], index: 11, kind: input, shape index: {}]
  %s12 = inlined_call_operand.vmem [shape: f32[3,1], index: 12, kind: input, shape index: {}]
  %s13 = inlined_call_operand.vmem [shape: f32[3,64], index: 13, kind: input, shape index: {}]
  %s14 = inlined_call_operand.vmem [shape: f32[3,1], index: 14, kind: input, shape index: {}]
  %s15 = inlined_call_operand.vmem [shape: f32[3,3], index: 15, kind: input, shape index: {}]
  %s16 = inlined_call_operand.vmem [shape: f32[3,3], index: 16, kind: input, shape index: {}]
  %s17 = inlined_call_operand.vmem [shape: f32[4,3,128], index: 17, kind: output, shape index: {}]
  %s18 = sld [smem:[#allocation0]]
  $region101: #{tpu_custom_call.1} parent=0
    _
  %s20 = ssub.s32 1, %s18
  %s21 = scalar_select 0, %s20, %s18
  loop: start=0, step=1, limit=4
  $region2: #{tpu_custom_call.1} parent=0 // loop_pre_header
    _
  $region3: #{tpu_custom_call.1} parent=0 // loop_header
    %s23 = sphi 0, %s27
    %p24 = scmp.ge.s32.totalorder %s23, 4
    %s33 = sphi 0, %s35
    %s36 = sphi 0, %s33
    %s37 = sphi 0, %s36
    %s53 = sphi 0, %s37
    %s57 = sphi 0, %s57
    %s59 = sphi 0, %s57
    %s60 = sphi 0, %s59
    %s74 = sphi 0, %s60
    %s78 = sphi 0, %s78
    %s80 = sphi 0, %s78
    %s81 = sphi 0, %s80
    %s95 = sphi 0, %s81
    %s99 = sphi 0, %s99
    %s101 = sphi 0, %s99
    %s102 = sphi 0, %s101
    %s116 = sphi 0, %s102
    %s120 = sphi 0, %s120
    %s122 = sphi 0, %s120
    %s123 = sphi 0, %s122
    %s137 = sphi 0, %s123
    %s141 = sphi 0, %s141
    %s143 = sphi 0, %s141
    %s144 = sphi 0, %s143
    %s158 = sphi 0, %s144
    %s162 = sphi 0, %s162
    %s164 = sphi 0, %s162
    %s165 = sphi 0, %s164
    %s179 = sphi 0, %s165
    %s183 = sphi 0, %s183
    %s185 = sphi 0, %s183
    %s186 = sphi 0, %s185
    %s200 = sphi 0, %s186
    %s204 = sphi 0, %s204
    %s206 = sphi 0, %s204
    %s207 = sphi 0, %s206
    %s221 = sphi 0, %s207
    %s225 = sphi 0, %s225
    %s227 = sphi 0, %s225
    %s228 = sphi 0, %s227
    %s242 = sphi 0, %s228
    %s246 = sphi 0, %s246
    %s248 = sphi 0, %s246
    %s249 = sphi 0, %s248
    %s263 = sphi 0, %s249
    %s267 = sphi 0, %s267
    %s269 = sphi 0, %s267
    %s270 = sphi 0, %s269
    %s284 = sphi 0, %s270
    %s288 = sphi 0, %s288
    %s290 = sphi 0, %s288
    %s291 = sphi 0, %s290
    %s305 = sphi 0, %s291
    %s309 = sphi 0, %s309
    %s311 = sphi 0, %s309
    %s312 = sphi 0, %s311
    %s326 = sphi 0, %s312
    %s330 = sphi 0, %s330
    %s332 = sphi 0, %s330
    %s333 = sphi 0, %s332
    %s347 = sphi 0, %s333
    %s351 = sphi 0, %s351
    %s353 = sphi 0, %s351
    %s354 = sphi 0, %s353
    %s368 = sphi 0, %s354
    %s372 = sphi 0, %s372
    %s374 = sphi 0, %s372
    %s375 = sphi 0, %s374
    %s389 = sphi 0, %s375
    %s395 = sphi 0, %s397
    %s398 = sphi 0, %s395
    %s399 = sphi 0, %s398
    %s415 = sphi 0, %s399
  $region4: #{tpu_custom_call.1} parent=0 // loop_header_branch
    %26 = sbr.rel (%p24) target = $region8
  $region5: #{tpu_custom_call.1} parent=0 // loop_body
    %s28 = ssub.s32 %s23, 1
    %s29 = ssub.s32 %s23, 2
    %s30 = sadd.s32 %s23, 1
    %s31 = ssub.s32 %s23, %s30
    %p32 = scmp.eq.s32.totalorder %s31, 0
    %s34 = sadd.s32 %s33, 1
    %s35 = scalar_select %p32, %s33, %s34
    %p38 = pneg %p32
    %p39 = scmp.eq.s32.totalorder %s23, 1
    %p40 = por %p38, %p39
    %p41 = scmp.ne.s32.totalorder %s33, %s36
    %p42 = scmp.eq.s32.totalorder %s23, 0
    %p43 = por %p41, %p42
    %p44 = scmp.ne.s32.totalorder %s33, %s36
    %p45 = scmp.eq.s32.totalorder %s28, 1
    %p46 = por %p44, %p45
    %p47 = scmp.ne.s32.totalorder %s36, %s37
    %p48 = scmp.eq.s32.totalorder %s28, 0
    %p49 = por %p47, %p48
    %p50 = scmp.ne.s32.totalorder %s36, %s37
    %p51 = scmp.eq.s32.totalorder %s29, 1
    %p52 = por %p50, %p51
    %p54 = scmp.ne.s32.totalorder %s37, %s53
    %p55 = scmp.eq.s32.totalorder %s29, 0
    %p56 = por %p54, %p55
    %s58 = sadd.s32 %s57, 1
    %p61 = scmp.eq.s32.totalorder %s23, 1
    %p62 = scmp.ne.s32.totalorder %s57, %s59
    %p63 = scmp.eq.s32.totalorder %s23, 0
    %p64 = por %p62, %p63
    %p65 = scmp.ne.s32.totalorder %s57, %s59
    %p66 = scmp.eq.s32.totalorder %s28, 1
    %p67 = por %p65, %p66
    %p68 = scmp.ne.s32.totalorder %s59, %s60
    %p69 = scmp.eq.s32.totalorder %s28, 0
    %p70 = por %p68, %p69
    %p71 = scmp.ne.s32.totalorder %s59, %s60
    %p72 = scmp.eq.s32.totalorder %s29, 1
    %p73 = por %p71, %p72
    %p75 = scmp.ne.s32.totalorder %s60, %s74
    %p76 = scmp.eq.s32.totalorder %s29, 0
    %p77 = por %p75, %p76
    %s79 = sadd.s32 %s78, 1
    %p82 = scmp.eq.s32.totalorder %s23, 1
    %p83 = scmp.ne.s32.totalorder %s78, %s80
    %p84 = scmp.eq.s32.totalorder %s23, 0
    %p85 = por %p83, %p84
    %p86 = scmp.ne.s32.totalorder %s78, %s80
    %p87 = scmp.eq.s32.totalorder %s28, 1
    %p88 = por %p86, %p87
    %p89 = scmp.ne.s32.totalorder %s80, %s81
    %p90 = scmp.eq.s32.totalorder %s28, 0
    %p91 = por %p89, %p90
    %p92 = scmp.ne.s32.totalorder %s80, %s81
    %p93 = scmp.eq.s32.totalorder %s29, 1
    %p94 = por %p92, %p93
    %p96 = scmp.ne.s32.totalorder %s81, %s95
    %p97 = scmp.eq.s32.totalorder %s29, 0
    %p98 = por %p96, %p97
    %s100 = sadd.s32 %s99, 1
    %p103 = scmp.eq.s32.totalorder %s23, 1
    %p104 = scmp.ne.s32.totalorder %s99, %s101
    %p105 = scmp.eq.s32.totalorder %s23, 0
    %p106 = por %p104, %p105
    %p107 = scmp.ne.s32.totalorder %s99, %s101
    %p108 = scmp.eq.s32.totalorder %s28, 1
    %p109 = por %p107, %p108
    %p110 = scmp.ne.s32.totalorder %s101, %s102
    %p111 = scmp.eq.s32.totalorder %s28, 0
    %p112 = por %p110, %p111
    %p113 = scmp.ne.s32.totalorder %s101, %s102
    %p114 = scmp.eq.s32.totalorder %s29, 1
    %p115 = por %p113, %p114
    %p117 = scmp.ne.s32.totalorder %s102, %s116
    %p118 = scmp.eq.s32.totalorder %s29, 0
    %p119 = por %p117, %p118
    %s121 = sadd.s32 %s120, 1
    %p124 = scmp.eq.s32.totalorder %s23, 1
    %p125 = scmp.ne.s32.totalorder %s120, %s122
    %p126 = scmp.eq.s32.totalorder %s23, 0
    %p127 = por %p125, %p126
    %p128 = scmp.ne.s32.totalorder %s120, %s122
    %p129 = scmp.eq.s32.totalorder %s28, 1
    %p130 = por %p128, %p129
    %p131 = scmp.ne.s32.totalorder %s122, %s123
    %p132 = scmp.eq.s32.totalorder %s28, 0
    %p133 = por %p131, %p132
    %p134 = scmp.ne.s32.totalorder %s122, %s123
    %p135 = scmp.eq.s32.totalorder %s29, 1
    %p136 = por %p134, %p135
    %p138 = scmp.ne.s32.totalorder %s123, %s137
    %p139 = scmp.eq.s32.totalorder %s29, 0
    %p140 = por %p138, %p139
    %s142 = sadd.s32 %s141, 1
    %p145 = scmp.eq.s32.totalorder %s23, 1
    %p146 = scmp.ne.s32.totalorder %s141, %s143
    %p147 = scmp.eq.s32.totalorder %s23, 0
    %p148 = por %p146, %p147
    %p149 = scmp.ne.s32.totalorder %s141, %s143
    %p150 = scmp.eq.s32.totalorder %s28, 1
    %p151 = por %p149, %p150
    %p152 = scmp.ne.s32.totalorder %s143, %s144
    %p153 = scmp.eq.s32.totalorder %s28, 0
    %p154 = por %p152, %p153
    %p155 = scmp.ne.s32.totalorder %s143, %s144
    %p156 = scmp.eq.s32.totalorder %s29, 1
    %p157 = por %p155, %p156
    %p159 = scmp.ne.s32.totalorder %s144, %s158
    %p160 = scmp.eq.s32.totalorder %s29, 0
    %p161 = por %p159, %p160
    %s163 = sadd.s32 %s162, 1
    %p166 = scmp.eq.s32.totalorder %s23, 1
    %p167 = scmp.ne.s32.totalorder %s162, %s164
    %p168 = scmp.eq.s32.totalorder %s23, 0
    %p169 = por %p167, %p168
    %p170 = scmp.ne.s32.totalorder %s162, %s164
    %p171 = scmp.eq.s32.totalorder %s28, 1
    %p172 = por %p170, %p171
    %p173 = scmp.ne.s32.totalorder %s164, %s165
    %p174 = scmp.eq.s32.totalorder %s28, 0
    %p175 = por %p173, %p174
    %p176 = scmp.ne.s32.totalorder %s164, %s165
    %p177 = scmp.eq.s32.totalorder %s29, 1
    %p178 = por %p176, %p177
    %p180 = scmp.ne.s32.totalorder %s165, %s179
    %p181 = scmp.eq.s32.totalorder %s29, 0
    %p182 = por %p180, %p181
    %s184 = sadd.s32 %s183, 1
    %p187 = scmp.eq.s32.totalorder %s23, 1
    %p188 = scmp.ne.s32.totalorder %s183, %s185
    %p189 = scmp.eq.s32.totalorder %s23, 0
    %p190 = por %p188, %p189
    %p191 = scmp.ne.s32.totalorder %s183, %s185
    %p192 = scmp.eq.s32.totalorder %s28, 1
    %p193 = por %p191, %p192
    %p194 = scmp.ne.s32.totalorder %s185, %s186
    %p195 = scmp.eq.s32.totalorder %s28, 0
    %p196 = por %p194, %p195
    %p197 = scmp.ne.s32.totalorder %s185, %s186
    %p198 = scmp.eq.s32.totalorder %s29, 1
    %p199 = por %p197, %p198
    %p201 = scmp.ne.s32.totalorder %s186, %s200
    %p202 = scmp.eq.s32.totalorder %s29, 0
    %p203 = por %p201, %p202
    %s205 = sadd.s32 %s204, 1
    %p208 = scmp.eq.s32.totalorder %s23, 1
    %p209 = scmp.ne.s32.totalorder %s204, %s206
    %p210 = scmp.eq.s32.totalorder %s23, 0
    %p211 = por %p209, %p210
    %p212 = scmp.ne.s32.totalorder %s204, %s206
    %p213 = scmp.eq.s32.totalorder %s28, 1
    %p214 = por %p212, %p213
    %p215 = scmp.ne.s32.totalorder %s206, %s207
    %p216 = scmp.eq.s32.totalorder %s28, 0
    %p217 = por %p215, %p216
    %p218 = scmp.ne.s32.totalorder %s206, %s207
    %p219 = scmp.eq.s32.totalorder %s29, 1
    %p220 = por %p218, %p219
    %p222 = scmp.ne.s32.totalorder %s207, %s221
    %p223 = scmp.eq.s32.totalorder %s29, 0
    %p224 = por %p222, %p223
    %s226 = sadd.s32 %s225, 1
    %p229 = scmp.eq.s32.totalorder %s23, 1
    %p230 = scmp.ne.s32.totalorder %s225, %s227
    %p231 = scmp.eq.s32.totalorder %s23, 0
    %p232 = por %p230, %p231
    %p233 = scmp.ne.s32.totalorder %s225, %s227
    %p234 = scmp.eq.s32.totalorder %s28, 1
    %p235 = por %p233, %p234
    %p236 = scmp.ne.s32.totalorder %s227, %s228
    %p237 = scmp.eq.s32.totalorder %s28, 0
    %p238 = por %p236, %p237
    %p239 = scmp.ne.s32.totalorder %s227, %s228
    %p240 = scmp.eq.s32.totalorder %s29, 1
    %p241 = por %p239, %p240
    %p243 = scmp.ne.s32.totalorder %s228, %s242
    %p244 = scmp.eq.s32.totalorder %s29, 0
    %p245 = por %p243, %p244
    %s247 = sadd.s32 %s246, 1
    %p250 = scmp.eq.s32.totalorder %s23, 1
    %p251 = scmp.ne.s32.totalorder %s246, %s248
    %p252 = scmp.eq.s32.totalorder %s23, 0
    %p253 = por %p251, %p252
    %p254 = scmp.ne.s32.totalorder %s246, %s248
    %p255 = scmp.eq.s32.totalorder %s28, 1
    %p256 = por %p254, %p255
    %p257 = scmp.ne.s32.totalorder %s248, %s249
    %p258 = scmp.eq.s32.totalorder %s28, 0
    %p259 = por %p257, %p258
    %p260 = scmp.ne.s32.totalorder %s248, %s249
    %p261 = scmp.eq.s32.totalorder %s29, 1
    %p262 = por %p260, %p261
    %p264 = scmp.ne.s32.totalorder %s249, %s263
    %p265 = scmp.eq.s32.totalorder %s29, 0
    %p266 = por %p264, %p265
    %s268 = sadd.s32 %s267, 1
    %p271 = scmp.eq.s32.totalorder %s23, 1
    %p272 = scmp.ne.s32.totalorder %s267, %s269
    %p273 = scmp.eq.s32.totalorder %s23, 0
    %p274 = por %p272, %p273
    %p275 = scmp.ne.s32.totalorder %s267, %s269
    %p276 = scmp.eq.s32.totalorder %s28, 1
    %p277 = por %p275, %p276
    %p278 = scmp.ne.s32.totalorder %s269, %s270
    %p279 = scmp.eq.s32.totalorder %s28, 0
    %p280 = por %p278, %p279
    %p281 = scmp.ne.s32.totalorder %s269, %s270
    %p282 = scmp.eq.s32.totalorder %s29, 1
    %p283 = por %p281, %p282
    %p285 = scmp.ne.s32.totalorder %s270, %s284
    %p286 = scmp.eq.s32.totalorder %s29, 0
    %p287 = por %p285, %p286
    %s289 = sadd.s32 %s288, 1
    %p292 = scmp.eq.s32.totalorder %s23, 1
    %p293 = scmp.ne.s32.totalorder %s288, %s290
    %p294 = scmp.eq.s32.totalorder %s23, 0
    %p295 = por %p293, %p294
    %p296 = scmp.ne.s32.totalorder %s288, %s290
    %p297 = scmp.eq.s32.totalorder %s28, 1
    %p298 = por %p296, %p297
    %p299 = scmp.ne.s32.totalorder %s290, %s291
    %p300 = scmp.eq.s32.totalorder %s28, 0
    %p301 = por %p299, %p300
    %p302 = scmp.ne.s32.totalorder %s290, %s291
    %p303 = scmp.eq.s32.totalorder %s29, 1
    %p304 = por %p302, %p303
    %p306 = scmp.ne.s32.totalorder %s291, %s305
    %p307 = scmp.eq.s32.totalorder %s29, 0
    %p308 = por %p306, %p307
    %s310 = sadd.s32 %s309, 1
    %p313 = scmp.eq.s32.totalorder %s23, 1
    %p314 = scmp.ne.s32.totalorder %s309, %s311
    %p315 = scmp.eq.s32.totalorder %s23, 0
    %p316 = por %p314, %p315
    %p317 = scmp.ne.s32.totalorder %s309, %s311
    %p318 = scmp.eq.s32.totalorder %s28, 1
    %p319 = por %p317, %p318
    %p320 = scmp.ne.s32.totalorder %s311, %s312
    %p321 = scmp.eq.s32.totalorder %s28, 0
    %p322 = por %p320, %p321
    %p323 = scmp.ne.s32.totalorder %s311, %s312
    %p324 = scmp.eq.s32.totalorder %s29, 1
    %p325 = por %p323, %p324
    %p327 = scmp.ne.s32.totalorder %s312, %s326
    %p328 = scmp.eq.s32.totalorder %s29, 0
    %p329 = por %p327, %p328
    %s331 = sadd.s32 %s330, 1
    %p334 = scmp.eq.s32.totalorder %s23, 1
    %p335 = scmp.ne.s32.totalorder %s330, %s332
    %p336 = scmp.eq.s32.totalorder %s23, 0
    %p337 = por %p335, %p336
    %p338 = scmp.ne.s32.totalorder %s330, %s332
    %p339 = scmp.eq.s32.totalorder %s28, 1
    %p340 = por %p338, %p339
    %p341 = scmp.ne.s32.totalorder %s332, %s333
    %p342 = scmp.eq.s32.totalorder %s28, 0
    %p343 = por %p341, %p342
    %p344 = scmp.ne.s32.totalorder %s332, %s333
    %p345 = scmp.eq.s32.totalorder %s29, 1
    %p346 = por %p344, %p345
    %p348 = scmp.ne.s32.totalorder %s333, %s347
    %p349 = scmp.eq.s32.totalorder %s29, 0
    %p350 = por %p348, %p349
    %s352 = sadd.s32 %s351, 1
    %p355 = scmp.eq.s32.totalorder %s23, 1
    %p356 = scmp.ne.s32.totalorder %s351, %s353
    %p357 = scmp.eq.s32.totalorder %s23, 0
    %p358 = por %p356, %p357
    %p359 = scmp.ne.s32.totalorder %s351, %s353
    %p360 = scmp.eq.s32.totalorder %s28, 1
    %p361 = por %p359, %p360
    %p362 = scmp.ne.s32.totalorder %s353, %s354
    %p363 = scmp.eq.s32.totalorder %s28, 0
    %p364 = por %p362, %p363
    %p365 = scmp.ne.s32.totalorder %s353, %s354
    %p366 = scmp.eq.s32.totalorder %s29, 1
    %p367 = por %p365, %p366
    %p369 = scmp.ne.s32.totalorder %s354, %s368
    %p370 = scmp.eq.s32.totalorder %s29, 0
    %p371 = por %p369, %p370
    %s373 = sadd.s32 %s372, 1
    %p376 = scmp.eq.s32.totalorder %s23, 1
    %p377 = scmp.ne.s32.totalorder %s372, %s374
    %p378 = scmp.eq.s32.totalorder %s23, 0
    %p379 = por %p377, %p378
    %p380 = scmp.ne.s32.totalorder %s372, %s374
    %p381 = scmp.eq.s32.totalorder %s28, 1
    %p382 = por %p380, %p381
    %p383 = scmp.ne.s32.totalorder %s374, %s375
    %p384 = scmp.eq.s32.totalorder %s28, 0
    %p385 = por %p383, %p384
    %p386 = scmp.ne.s32.totalorder %s374, %s375
    %p387 = scmp.eq.s32.totalorder %s29, 1
    %p388 = por %p386, %p387
    %p390 = scmp.ne.s32.totalorder %s375, %s389
    %p391 = scmp.eq.s32.totalorder %s29, 0
    %p392 = por %p390, %p391
    %s393 = ssub.s32 %s23, %s30
    %p394 = scmp.eq.s32.totalorder %s393, 0
    %s396 = sadd.s32 %s395, 1
    %s397 = scalar_select %p394, %s395, %s396
    %p400 = pneg %p394
    %p401 = scmp.eq.s32.totalorder %s23, 1
    %p402 = por %p400, %p401
    %p403 = scmp.ne.s32.totalorder %s395, %s398
    %p404 = scmp.eq.s32.totalorder %s23, 0
    %p405 = por %p403, %p404
    %p406 = scmp.ne.s32.totalorder %s395, %s398
    %p407 = scmp.eq.s32.totalorder %s28, 1
    %p408 = por %p406, %p407
    %p409 = scmp.ne.s32.totalorder %s398, %s399
    %p410 = scmp.eq.s32.totalorder %s28, 0
    %p411 = por %p409, %p410
    %p412 = scmp.ne.s32.totalorder %s398, %s399
    %p413 = scmp.eq.s32.totalorder %s29, 1
    %p414 = por %p412, %p413
    %p416 = scmp.ne.s32.totalorder %s399, %s415
    %p417 = scmp.eq.s32.totalorder %s29, 0
    %p418 = por %p416, %p417
    %p419 = scmp.le.s32.totalorder 1, %s23
    %p420 = scmp.lt.s32.totalorder %s23, 3
    %p421 = pnand %p419, %p420
    %p422 = pneg %p421
    // Predicated region
    $region9: #{tpu_custom_call.1} parent=5 // pred_check
      _
    $region10: #{tpu_custom_call.1} parent=5 // pred_check_branch
      %424 = sbr.rel (%p421) target = $region12
    $region11: #{tpu_custom_call.1} parent=5 // pred_region
      %s425 = ssub.s32 %s23, 1
      // Predicated region
      $region13: #{tpu_custom_call.1} parent=11 // pred_check
        %p426 = pneg %p70
      $region14: #{tpu_custom_call.1} parent=11 // pred_check_branch
        %428 = sbr.rel (%p426) target = $region16
      $region15: #{tpu_custom_call.1} parent=11 // pred_region
        _
      $region16: #{tpu_custom_call.1} parent=11 // pred_fallthru
        _
      // Predicated region
      $region17: #{tpu_custom_call.1} parent=11 // pred_check
        %p429 = pneg %p91
      $region18: #{tpu_custom_call.1} parent=11 // pred_check_branch
        %431 = sbr.rel (%p429) target = $region20
      $region19: #{tpu_custom_call.1} parent=11 // pred_region
        _
      $region20: #{tpu_custom_call.1} parent=11 // pred_fallthru
        _
      // Predicated region
      $region21: #{tpu_custom_call.1} parent=11 // pred_check
        %p432 = pneg %p112
      $region22: #{tpu_custom_call.1} parent=11 // pred_check_branch
        %434 = sbr.rel (%p432) target = $region24
      $region23: #{tpu_custom_call.1} parent=11 // pred_region
        _
      $region24: #{tpu_custom_call.1} parent=11 // pred_fallthru
        _
      // Predicated region
      $region25: #{tpu_custom_call.1} parent=11 // pred_check
        %p435 = pneg %p133
      $region26: #{tpu_custom_call.1} parent=11 // pred_check_branch
        %437 = sbr.rel (%p435) target = $region28
      $region27: #{tpu_custom_call.1} parent=11 // pred_region
        _
      $region28: #{tpu_custom_call.1} parent=11 // pred_fallthru
        _
      // Predicated region
      $region29: #{tpu_custom_call.1} parent=11 // pred_check
        %p438 = pneg %p154
      $region30: #{tpu_custom_call.1} parent=11 // pred_check_branch
        %440 = sbr.rel (%p438) target = $region32
      $region31: #{tpu_custom_call.1} parent=11 // pred_region
        _
      $region32: #{tpu_custom_call.1} parent=11 // pred_fallthru
        _
      // Predicated region
      $region33: #{tpu_custom_call.1} parent=11 // pred_check
        %p441 = pneg %p175
      $region34: #{tpu_custom_call.1} parent=11 // pred_check_branch
        %443 = sbr.rel (%p441) target = $region36
      $region35: #{tpu_custom_call.1} parent=11 // pred_region
        _
      $region36: #{tpu_custom_call.1} parent=11 // pred_fallthru
        _
      // Predicated region
      $region37: #{tpu_custom_call.1} parent=11 // pred_check
        %p444 = pneg %p196
      $region38: #{tpu_custom_call.1} parent=11 // pred_check_branch
        %446 = sbr.rel (%p444) target = $region40
      $region39: #{tpu_custom_call.1} parent=11 // pred_region
        _
      $region40: #{tpu_custom_call.1} parent=11 // pred_fallthru
        _
      // Predicated region
      $region41: #{tpu_custom_call.1} parent=11 // pred_check
        %p447 = pneg %p217
      $region42: #{tpu_custom_call.1} parent=11 // pred_check_branch
        %449 = sbr.rel (%p447) target = $region44
      $region43: #{tpu_custom_call.1} parent=11 // pred_region
        _
      $region44: #{tpu_custom_call.1} parent=11 // pred_fallthru
        _
      // Predicated region
      $region45: #{tpu_custom_call.1} parent=11 // pred_check
        %p450 = pneg %p238
      $region46: #{tpu_custom_call.1} parent=11 // pred_check_branch
        %452 = sbr.rel (%p450) target = $region48
      $region47: #{tpu_custom_call.1} parent=11 // pred_region
        _
      $region48: #{tpu_custom_call.1} parent=11 // pred_fallthru
        _
      // Predicated region
      $region49: #{tpu_custom_call.1} parent=11 // pred_check
        %p453 = pneg %p259
      $region50: #{tpu_custom_call.1} parent=11 // pred_check_branch
        %455 = sbr.rel (%p453) target = $region52
      $region51: #{tpu_custom_call.1} parent=11 // pred_region
        _
      $region52: #{tpu_custom_call.1} parent=11 // pred_fallthru
        _
      // Predicated region
      $region53: #{tpu_custom_call.1} parent=11 // pred_check
        %p456 = pneg %p280
      $region54: #{tpu_custom_call.1} parent=11 // pred_check_branch
        %458 = sbr.rel (%p456) target = $region56
      $region55: #{tpu_custom_call.1} parent=11 // pred_region
        _
      $region56: #{tpu_custom_call.1} parent=11 // pred_fallthru
        _
      // Predicated region
      $region57: #{tpu_custom_call.1} parent=11 // pred_check
        %p459 = pneg %p301
      $region58: #{tpu_custom_call.1} parent=11 // pred_check_branch
        %461 = sbr.rel (%p459) target = $region60
      $region59: #{tpu_custom_call.1} parent=11 // pred_region
        _
      $region60: #{tpu_custom_call.1} parent=11 // pred_fallthru
        _
      // Predicated region
      $region61: #{tpu_custom_call.1} parent=11 // pred_check
        %p462 = pneg %p322
      $region62: #{tpu_custom_call.1} parent=11 // pred_check_branch
        %464 = sbr.rel (%p462) target = $region64
      $region63: #{tpu_custom_call.1} parent=11 // pred_region
        _
      $region64: #{tpu_custom_call.1} parent=11 // pred_fallthru
        _
      // Predicated region
      $region65: #{tpu_custom_call.1} parent=11 // pred_check
        %p465 = pneg %p343
      $region66: #{tpu_custom_call.1} parent=11 // pred_check_branch
        %467 = sbr.rel (%p465) target = $region68
      $region67: #{tpu_custom_call.1} parent=11 // pred_region
        _
      $region68: #{tpu_custom_call.1} parent=11 // pred_fallthru
        _
      // Predicated region
      $region69: #{tpu_custom_call.1} parent=11 // pred_check
        %p468 = pneg %p364
      $region70: #{tpu_custom_call.1} parent=11 // pred_check_branch
        %470 = sbr.rel (%p468) target = $region72
      $region71: #{tpu_custom_call.1} parent=11 // pred_region
        _
      $region72: #{tpu_custom_call.1} parent=11 // pred_fallthru
        _
      // Predicated region
      $region73: #{tpu_custom_call.1} parent=11 // pred_check
        %p471 = pneg %p385
      $region74: #{tpu_custom_call.1} parent=11 // pred_check_branch
        %473 = sbr.rel (%p471) target = $region76
      $region75: #{tpu_custom_call.1} parent=11 // pred_region
        _
      $region76: #{tpu_custom_call.1} parent=11 // pred_fallthru
        _
    $region12: #{tpu_custom_call.1} parent=5 // pred_fallthru
      _
    %p474 = scmp.lt.s32.totalorder %s23, 2
    // Predicated region
    $region77: #{tpu_custom_call.1} parent=5 // pred_check
      %p475 = pneg %p474
    $region78: #{tpu_custom_call.1} parent=5 // pred_check_branch
      %477 = sbr.rel (%p475) target = $region80
    $region79: #{tpu_custom_call.1} parent=5 // pred_region
      // Predicated region
      $region81: #{tpu_custom_call.1} parent=79 // pred_check
        %p478 = pneg %p43
      $region82: #{tpu_custom_call.1} parent=79 // pred_check_branch
        %480 = sbr.rel (%p478) target = $region84
      $region83: #{tpu_custom_call.1} parent=79 // pred_region
        %s481 = smul.u32 2, %s23
        %p482 = scmp.lt.s32.totalorder %s481, 3
        %s483 = scalar_select %p482, %s481, 3
        %s484 = smul.addr %s483, 4
        %s485 = scalar_lea.vmem %s0, %s484
        %s486 = smul.u32 2, %s23
      $region84: #{tpu_custom_call.1} parent=79 // pred_fallthru
        _
    $region80: #{tpu_custom_call.1} parent=5 // pred_fallthru
      _
    %p487 = scmp.le.s32.totalorder 1, %s23
    %p488 = scmp.lt.s32.totalorder %s23, 3
    %p489 = pnand %p487, %p488
    %p490 = pneg %p489
    // Predicated region
    $region85: #{tpu_custom_call.1} parent=5 // pred_check
      _
    $region86: #{tpu_custom_call.1} parent=5 // pred_check_branch
      %492 = sbr.rel (%p489) target = $region88
    $region87: #{tpu_custom_call.1} parent=5 // pred_region
      %s493 = ssub.s32 %s23, 1
      %s494 = smul.u32 2, %s28
      %p495 = scmp.lt.s32.totalorder %s494, 3
      %s496 = scalar_select %p495, %s494, 3
      %s497 = smul.addr %s496, 4
      %s498 = scalar_lea.vmem %s0, %s497
      %p499 = pneg %p49
      %p500 = pneg %p46
      %p501 = pneg %p70
      %p502 = pneg %p67
      %p503 = pneg %p91
      %p504 = pneg %p88
      %p505 = pneg %p112
      %p506 = pneg %p109
      %p507 = pneg %p133
      %p508 = pneg %p130
      %p509 = pneg %p154
      %p510 = pneg %p151
      %p511 = pneg %p175
      %p512 = pneg %p172
      %p513 = pneg %p196
      %p514 = pneg %p193
      %p515 = pneg %p217
      %p516 = pneg %p214
      %p517 = pneg %p238
      %p518 = pneg %p235
      %p519 = pneg %p259
      %p520 = pneg %p256
      %p521 = pneg %p280
      %p522 = pneg %p277
      %p523 = pneg %p301
      %p524 = pneg %p298
      %p525 = pneg %p322
      %p526 = pneg %p319
      %p527 = pneg %p343
      %p528 = pneg %p340
      %p529 = pneg %p364
      %p530 = pneg %p361
      %p531 = pneg %p385
      %p532 = pneg %p382
      %p533 = pneg %p411
      %p534 = pneg %p408
      %s535 = smul.u32 2, %s28
      %p536 = scmp.lt.s32.totalorder %s535, 3
      %s537 = scalar_select %p536, %s535, 3
      %s538 = smul.addr %s537, 4
      %s539 = scalar_lea.vmem %s17, %s538
      %s540 = smul.u32 2, %s28
      %p541 = scmp.lt.s32.totalorder %s540, 3
      %s542 = scalar_select %p541, %s540, 3
      %s543 = smul.addr %s542, 4
      %s544 = scalar_lea.vmem %s0, %s543
      %s545 = smul.u32 2, %s28
      %s546 = smul.u32 2, %s28
      %p547 = scmp.lt.s32.totalorder %s546, 3
      %s548 = scalar_select %p547, %s546, 3
      %s549 = smul.addr %s548, 4
      %s550 = scalar_lea.vmem %s17, %s549
      %s551 = smul.u32 2, %s28
      %v552 = vld [vmem:[%s544] sm:$0x7]
      %v553 = vld [vmem:[%s1] sm:$0xff]
      %v554 = vld [vmem:[%s1 + $0x8] sm:$0xff]
      %v555 = vld [vmem:[%s1 + $0x10] sm:$0xff]
      %v556 = vld [vmem:[%s1 + $0x18] sm:$0xff]
      %v557 = vld [vmem:[%s1 + $0x20] sm:$0xff]
      %v558 = vld [vmem:[%s1 + $0x28] sm:$0xff]
      %v559 = vld [vmem:[%s1 + $0x30] sm:$0xff]
      %v560 = vld [vmem:[%s1 + $0x38] sm:$0xff]
      %v561 = vld [vmem:[%s2] sm:$0xff]
      %v562 = vld [vmem:[%s2 + $0x8] sm:$0xff]
      %v563 = vld [vmem:[%s2 + $0x10] sm:$0xff]
      %v564 = vld [vmem:[%s2 + $0x18] sm:$0xff]
      %v565 = vld [vmem:[%s2 + $0x20] sm:$0xff]
      %v566 = vld [vmem:[%s2 + $0x28] sm:$0xff]
      %v567 = vld [vmem:[%s2 + $0x30] sm:$0xff]
      %v568 = vld [vmem:[%s2 + $0x38] sm:$0xff]
      %570 = vset.pattern.permute.xlu0 0
      %571 = vperm.xlu0 %570, %v561
      %v572 = vpop.permute.xlu0 %571
      %575 = vset.pattern.permute.xlu0 0
      %576 = vperm.xlu0 %575, %v562
      %v577 = vpop.permute.xlu0 %576
      %580 = vset.pattern.permute.xlu0 0
      %581 = vperm.xlu0 %580, %v563
      %v582 = vpop.permute.xlu0 %581
      %585 = vset.pattern.permute.xlu0 0
      %586 = vperm.xlu0 %585, %v564
      %v587 = vpop.permute.xlu0 %586
      %590 = vset.pattern.permute.xlu0 0
      %591 = vperm.xlu0 %590, %v565
      %v592 = vpop.permute.xlu0 %591
      %595 = vset.pattern.permute.xlu0 0
      %596 = vperm.xlu0 %595, %v566
      %v597 = vpop.permute.xlu0 %596
      %600 = vset.pattern.permute.xlu0 0
      %601 = vperm.xlu0 %600, %v567
      %v602 = vpop.permute.xlu0 %601
      %605 = vset.pattern.permute.xlu0 0
      %606 = vperm.xlu0 %605, %v568
      %v607 = vpop.permute.xlu0 %606
      %vm609 = vcmask 23552
      %v611 = vsel %vm609, %v553, 0
      %v614 = vsel %vm609, %v554, 0
      %v617 = vsel %vm609, %v555, 0
      %v620 = vsel %vm609, %v556, 0
      %v623 = vsel %vm609, %v557, 0
      %v626 = vsel %vm609, %v558, 0
      %v629 = vsel %vm609, %v559, 0
      %v632 = vsel %vm609, %v560, 0
      %vm634 = vcmask 1042432
      %v636 = vsel %vm634, %v552, 0
      %638 = vmatprep.subr.mxu0 0.0
      %639 = vmatpush1.msra.mxu0 %v636
      %640 = vmatprep.subr.mxu0 0.0
      %641 = vmatpush1.msra.mxu0 0.0
      %642 = vmatprep.subr.mxu0 0.0
      %643 = vmatpush1.msra.mxu0 0.0
      %644 = vmatprep.subr.mxu0 0.0
      %645 = vmatpush1.msra.mxu0 0.0
      %646 = vmatprep.subr.mxu0 0.0
      %647 = vmatpush1.msra.mxu0 0.0
      %648 = vmatprep.subr.mxu0 0.0
      %649 = vmatpush1.msra.mxu0 0.0
      %650 = vmatprep.subr.mxu0 0.0
      %651 = vmatpush1.msra.mxu0 0.0
      %652 = vmatprep.subr.mxu0 0.0
      %653 = vmatpush1.msra.mxu0 0.0
      %654 = vmatprep.subr.mxu0 0.0
      %655 = vmatpush1.msra.mxu0 0.0
      %656 = vmatprep.subr.mxu0 0.0
      %657 = vmatpush1.msra.mxu0 0.0
      %658 = vmatprep.subr.mxu0 0.0
      %659 = vmatpush1.msra.mxu0 0.0
      %660 = vmatprep.subr.mxu0 0.0
      %661 = vmatpush1.msra.mxu0 0.0
      %662 = vmatprep.subr.mxu0 0.0
      %663 = vmatpush1.msra.mxu0 0.0
      %664 = vmatprep.subr.mxu0 0.0
      %665 = vmatpush1.msra.mxu0 0.0
      %666 = vmatprep.subr.mxu0 0.0
      %667 = vmatpush1.msra.mxu0 0.0
      %668 = vmatprep.subr.mxu0 0.0
      %669 = vmatpush1.msra.mxu0 0.0
      %670 = vmatprep.subr.mxu0 0.0
      %671 = vmatpush1.msra.mxu0 0.0
      %672 = vmatprep.subr.mxu0 0.0
      %673 = vmatpush1.msra.mxu0 0.0
      %674 = vmatprep.subr.mxu0 0.0
      %675 = vmatpush1.msra.mxu0 0.0
      %676 = vmatprep.subr.mxu0 0.0
      %677 = vmatpush1.msra.mxu0 0.0
      %678 = vmatprep.subr.mxu0 0.0
      %679 = vmatpush1.msra.mxu0 0.0
      %680 = vmatprep.subr.mxu0 0.0
      %681 = vmatpush1.msra.mxu0 0.0
      %682 = vmatprep.subr.mxu0 0.0
      %683 = vmatpush1.msra.mxu0 0.0
      %684 = vmatprep.subr.mxu0 0.0
      %685 = vmatpush1.msra.mxu0 0.0
      %686 = vmatprep.subr.mxu0 0.0
      %687 = vmatpush1.msra.mxu0 0.0
      %688 = vmatprep.subr.mxu0 0.0
      %689 = vmatpush1.msra.mxu0 0.0
      %690 = vmatprep.subr.mxu0 0.0
      %691 = vmatpush1.msra.mxu0 0.0
      %692 = vmatprep.subr.mxu0 0.0
      %693 = vmatpush1.msra.mxu0 0.0
      %694 = vmatprep.subr.mxu0 0.0
      %695 = vmatpush1.msra.mxu0 0.0
      %696 = vmatprep.subr.mxu0 0.0
      %697 = vmatpush1.msra.mxu0 0.0
      %698 = vmatprep.subr.mxu0 0.0
      %699 = vmatpush1.msra.mxu0 0.0
      %700 = vmatprep.subr.mxu0 0.0
      %701 = vmatpush1.msra.mxu0 0.0
      %702 = vmatprep.mubr.f32.mxu0 0.0
      %703 = vmatmul.mubr.f32.gmra.mrb[0].mxu0 %v611
      %v704 = vpop.f32.mrb[0].mxu0
      %v705 = vadd.f32 %v572, %v704
      %v706 = vpop.f32.mrb[0].mxu0
      %707 = vmatprep.mubr.f32.mxu0 0.0
      %708 = vmatmul.mubr.f32.gmra.mrb[0].mxu0 %v614
      %v709 = vpop.f32.mrb[0].mxu0
      %v710 = vadd.f32 %v577, %v709
      %v711 = vpop.f32.mrb[0].mxu0
      %712 = vmatprep.mubr.f32.mxu0 0.0
      %713 = vmatmul.mubr.f32.gmra.mrb[0].mxu0 %v617
      %v714 = vpop.f32.mrb[0].mxu0
      %v715 = vadd.f32 %v582, %v714
      %v716 = vpop.f32.mrb[0].mxu0
      %717 = vmatprep.mubr.f32.mxu0 0.0
      %718 = vmatmul.mubr.f32.gmra.mrb[0].mxu0 %v620
      %v719 = vpop.f32.mrb[0].mxu0
      %v720 = vadd.f32 %v587, %v719
      %v721 = vpop.f32.mrb[0].mxu0
      %722 = vmatprep.mubr.f32.mxu0 0.0
      %723 = vmatmul.mubr.f32.gmra.mrb[0].mxu0 %v623
      %v724 = vpop.f32.mrb[0].mxu0
      %v725 = vadd.f32 %v592, %v724
      %v726 = vpop.f32.mrb[0].mxu0
      %727 = vmatprep.mubr.f32.mxu0 0.0
      %728 = vmatmul.mubr.f32.gmra.mrb[0].mxu0 %v626
      %v729 = vpop.f32.mrb[0].mxu0
      %v730 = vadd.f32 %v597, %v729
      %v731 = vpop.f32.mrb[0].mxu0
      %732 = vmatprep.mubr.f32.mxu0 0.0
      %733 = vmatmul.mubr.f32.gmra.mrb[0].mxu0 %v629
      %v734 = vpop.f32.mrb[0].mxu0
      %v735 = vadd.f32 %v602, %v734
      %v736 = vpop.f32.mrb[0].mxu0
      %737 = vmatprep.mubr.f32.mxu0 0.0
      %738 = vmatmul.mubr.f32.gmra.mrb[0].mxu0 %v632
      %v739 = vpop.f32.mrb[0].mxu0
      %v740 = vadd.f32 %v607, %v739
      %v741 = vpop.f32.mrb[0].mxu0
      %742 = vdwg.mxu0
      %v743 = vmax.f32 %v705, 0.0
      %v744 = vmax.f32 %v710, 0.0
      %v745 = vmax.f32 %v715, 0.0
      %v746 = vmax.f32 %v720, 0.0
      %v747 = vmax.f32 %v725, 0.0
      %v748 = vmax.f32 %v730, 0.0
      %v749 = vmax.f32 %v735, 0.0
      %v750 = vmax.f32 %v740, 0.0
      %v751 = vld [vmem:[%s3] sm:$0xff]
      %v752 = vld [vmem:[%s3 + $0x8] sm:$0xff]
      %v753 = vld [vmem:[%s3 + $0x10] sm:$0xff]
      %v754 = vld [vmem:[%s3 + $0x18] sm:$0xff]
      %v755 = vld [vmem:[%s3 + $0x20] sm:$0xff]
      %v756 = vld [vmem:[%s3 + $0x28] sm:$0xff]
      %v757 = vld [vmem:[%s3 + $0x30] sm:$0xff]
      %v758 = vld [vmem:[%s3 + $0x38] sm:$0xff]
      %v759 = vld [vmem:[%s3 + $0x40] sm:$0xff]
      %v760 = vld [vmem:[%s3 + $0x48] sm:$0xff]
      %v761 = vld [vmem:[%s3 + $0x50] sm:$0xff]
      %v762 = vld [vmem:[%s3 + $0x58] sm:$0xff]
      %v763 = vld [vmem:[%s3 + $0x60] sm:$0xff]
      %v764 = vld [vmem:[%s3 + $0x68] sm:$0xff]
      %v765 = vld [vmem:[%s3 + $0x70] sm:$0xff]
      %v766 = vld [vmem:[%s3 + $0x78] sm:$0xff]
      %v767 = vld [vmem:[%s4] sm:$0xff]
      %v768 = vld [vmem:[%s4 + $0x8] sm:$0xff]
      %v769 = vld [vmem:[%s4 + $0x10] sm:$0xff]
      %v770 = vld [vmem:[%s4 + $0x18] sm:$0xff]
      %v771 = vld [vmem:[%s4 + $0x20] sm:$0xff]
      %v772 = vld [vmem:[%s4 + $0x28] sm:$0xff]
      %v773 = vld [vmem:[%s4 + $0x30] sm:$0xff]
      %v774 = vld [vmem:[%s4 + $0x38] sm:$0xff]
      %v775 = vld [vmem:[%s4 + $0x40] sm:$0xff]
      %v776 = vld [vmem:[%s4 + $0x48] sm:$0xff]
      %v777 = vld [vmem:[%s4 + $0x50] sm:$0xff]
      %v778 = vld [vmem:[%s4 + $0x58] sm:$0xff]
      %v779 = vld [vmem:[%s4 + $0x60] sm:$0xff]
      %v780 = vld [vmem:[%s4 + $0x68] sm:$0xff]
      %v781 = vld [vmem:[%s4 + $0x70] sm:$0xff]
      %v782 = vld [vmem:[%s4 + $0x78] sm:$0xff]
      %784 = vset.pattern.permute.xlu0 0
      %785 = vperm.xlu0 %784, %v767
      %v786 = vpop.permute.xlu0 %785
      %789 = vset.pattern.permute.xlu0 0
      %790 = vperm.xlu0 %789, %v768
      %v791 = vpop.permute.xlu0 %790
      %794 = vset.pattern.permute.xlu0 0
      %795 = vperm.xlu0 %794, %v769
      %v796 = vpop.permute.xlu0 %795
      %799 = vset.pattern.permute.xlu0 0
      %800 = vperm.xlu0 %799, %v770
      %v801 = vpop.permute.xlu0 %800
      %804 = vset.pattern.permute.xlu0 0
      %805 = vperm.xlu0 %804, %v771
      %v806 = vpop.permute.xlu0 %805
      %809 = vset.pattern.permute.xlu0 0
      %810 = vperm.xlu0 %809, %v772
      %v811 = vpop.permute.xlu0 %810
      %814 = vset.pattern.permute.xlu0 0
      %815 = vperm.xlu0 %814, %v773
      %v816 = vpop.permute.xlu0 %815
      %819 = vset.pattern.permute.xlu0 0
      %820 = vperm.xlu0 %819, %v774
      %v821 = vpop.permute.xlu0 %820
      %824 = vset.pattern.permute.xlu0 0
      %825 = vperm.xlu0 %824, %v775
      %v826 = vpop.permute.xlu0 %825
      %829 = vset.pattern.permute.xlu0 0
      %830 = vperm.xlu0 %829, %v776
      %v831 = vpop.permute.xlu0 %830
      %834 = vset.pattern.permute.xlu0 0
      %835 = vperm.xlu0 %834, %v777
      %v836 = vpop.permute.xlu0 %835
      %839 = vset.pattern.permute.xlu0 0
      %840 = vperm.xlu0 %839, %v778
      %v841 = vpop.permute.xlu0 %840
      %844 = vset.pattern.permute.xlu0 0
      %845 = vperm.xlu0 %844, %v779
      %v846 = vpop.permute.xlu0 %845
      %849 = vset.pattern.permute.xlu0 0
      %850 = vperm.xlu0 %849, %v780
      %v851 = vpop.permute.xlu0 %850
      %854 = vset.pattern.permute.xlu0 0
      %855 = vperm.xlu0 %854, %v781
      %v856 = vpop.permute.xlu0 %855
      %859 = vset.pattern.permute.xlu0 0
      %860 = vperm.xlu0 %859, %v782
      %v861 = vpop.permute.xlu0 %860
      %vm863 = vcmask 523264
      %v865 = vsel %vm863, %v751, 0
      %v868 = vsel %vm863, %v752, 0
      %v871 = vsel %vm863, %v753, 0
      %v874 = vsel %vm863, %v754, 0
      %v877 = vsel %vm863, %v755, 0
      %v880 = vsel %vm863, %v756, 0
      %v883 = vsel %vm863, %v757, 0
      %v886 = vsel %vm863, %v758, 0
      %v889 = vsel %vm863, %v759, 0
      %v892 = vsel %vm863, %v760, 0
      %v895 = vsel %vm863, %v761, 0
      %v898 = vsel %vm863, %v762, 0
      %v901 = vsel %vm863, %v763, 0
      %v904 = vsel %vm863, %v764, 0
      %v907 = vsel %vm863, %v765, 0
      %v910 = vsel %vm863, %v766, 0
      %912 = vmatprep.subr.mxu0 0.0
      %913 = vmatpush1.msra.mxu0 %v743
      %914 = vmatprep.subr.mxu0 0.0
      %915 = vmatpush1.msra.mxu0 %v744
      %916 = vmatprep.subr.mxu0 0.0
      %917 = vmatpush1.msra.mxu0 %v745
      %918 = vmatprep.subr.mxu0 0.0
      %919 = vmatpush1.msra.mxu0 %v746
      %920 = vmatprep.subr.mxu0 0.0
      %921 = vmatpush1.msra.mxu0 %v747
      %922 = vmatprep.subr.mxu0 0.0
      %923 = vmatpush1.msra.mxu0 %v748
      %924 = vmatprep.subr.mxu0 0.0
      %925 = vmatpush1.msra.mxu0 %v749
      %926 = vmatprep.subr.mxu0 0.0
      %927 = vmatpush1.msra.mxu0 %v750
      %928 = vmatprep.subr.mxu0 0.0
      %929 = vmatpush1.msra.mxu0 0.0
      %930 = vmatprep.subr.mxu0 0.0
      %931 = vmatpush1.msra.mxu0 0.0
      %932 = vmatprep.subr.mxu0 0.0
      %933 = vmatpush1.msra.mxu0 0.0
      %934 = vmatprep.subr.mxu0 0.0
      %935 = vmatpush1.msra.mxu0 0.0
      %936 = vmatprep.subr.mxu0 0.0
      %937 = vmatpush1.msra.mxu0 0.0
      %938 = vmatprep.subr.mxu0 0.0
      %939 = vmatpush1.msra.mxu0 0.0
      %940 = vmatprep.subr.mxu0 0.0
      %941 = vmatpush1.msra.mxu0 0.0
      %942 = vmatprep.subr.mxu0 0.0
      %943 = vmatpush1.msra.mxu0 0.0
      %944 = vmatprep.subr.mxu0 0.0
      %945 = vmatpush1.msra.mxu0 0.0
      %946 = vmatprep.subr.mxu0 0.0
      %947 = vmatpush1.msra.mxu0 0.0
      %948 = vmatprep.subr.mxu0 0.0
      %949 = vmatpush1.msra.mxu0 0.0
      %950 = vmatprep.subr.mxu0 0.0
      %951 = vmatpush1.msra.mxu0 0.0
      %952 = vmatprep.subr.mxu0 0.0
      %953 = vmatpush1.msra.mxu0 0.0
      %954 = vmatprep.subr.mxu0 0.0
      %955 = vmatpush1.msra.mxu0 0.0
      %956 = vmatprep.subr.mxu0 0.0
      %957 = vmatpush1.msra.mxu0 0.0
      %958 = vmatprep.subr.mxu0 0.0
      %959 = vmatpush1.msra.mxu0 0.0
      %960 = vmatprep.subr.mxu0 0.0
      %961 = vmatpush1.msra.mxu0 0.0
      %962 = vmatprep.subr.mxu0 0.0
      %963 = vmatpush1.msra.mxu0 0.0
      %964 = vmatprep.subr.mxu0 0.0
      %965 = vmatpush1.msra.mxu0 0.0
      %966 = vmatprep.subr.mxu0 0.0
      %967 = vmatpush1.msra.mxu0 0.0
      %968 = vmatprep.subr.mxu0 0.0
      %969 = vmatpush1.msra.mxu0 0.0
      %970 = vmatprep.subr.mxu0 0.0
      %971 = vmatpush1.msra.mxu0 0.0
      %972 = vmatprep.subr.mxu0 0.0
      %973 = vmatpush1.msra.mxu0 0.0
      %974 = vmatprep.subr.mxu0 0.0
      %975 = vmatpush1.msra.mxu0 0.0
      %976 = vmatprep.mubr.f32.mxu0 0.0
      %977 = vmatmul.mubr.f32.gmra.mrb[0].mxu0 %v865
      %v978 = vpop.f32.mrb[0].mxu0
      %v979 = vadd.f32 %v786, %v978
      %v980 = vpop.f32.mrb[0].mxu0
      %981 = vmatprep.mubr.f32.mxu0 0.0
      %982 = vmatmul.mubr.f32.gmra.mrb[0].mxu0 %v868
      %v983 = vpop.f32.mrb[0].mxu0
      %v984 = vadd.f32 %v791, %v983
      %v985 = vpop.f32.mrb[0].mxu0
      %986 = vmatprep.mubr.f32.mxu0 0.0
      %987 = vmatmul.mubr.f32.gmra.mrb[0].mxu0 %v871
      %v988 = vpop.f32.mrb[0].mxu0
      %v989 = vadd.f32 %v796, %v988
      %v990 = vpop.f32.mrb[0].mxu0
      %991 = vmatprep.mubr.f32.mxu0 0.0
      %992 = vmatmul.mubr.f32.gmra.mrb[0].mxu0 %v874
      %v993 = vpop.f32.mrb[0].mxu0
      %v994 = vadd.f32 %v801, %v993
      %v995 = vpop.f32.mrb[0].mxu0
      %996 = vmatprep.mubr.f32.mxu0 0.0
      %997 = vmatmul.mubr.f32.gmra.mrb[0].mxu0 %v877
      %v998 = vpop.f32.mrb[0].mxu0
      %v999 = vadd.f32 %v806, %v998
      %v1000 = vpop.f32.mrb[0].mxu0
      %1001 = vmatprep.mubr.f32.mxu0 0.0
      %1002 = vmatmul.mubr.f32.gmra.mrb[0].mxu0 %v880
      %v1003 = vpop.f32.mrb[0].mxu0
      %v1004 = vadd.f32 %v811, %v1003
      %v1005 = vpop.f32.mrb[0].mxu0
      %1006 = vmatprep.mubr.f32.mxu0 0.0
      %1007 = vmatmul.mubr.f32.gmra.mrb[0].mxu0 %v883
      %v1008 = vpop.f32.mrb[0].mxu0
      %v1009 = vadd.f32 %v816, %v1008
      %v1010 = vpop.f32.mrb[0].mxu0
      %1011 = vmatprep.mubr.f32.mxu0 0.0
      %1012 = vmatmul.mubr.f32.gmra.mrb[0].mxu0 %v886
      %v1013 = vpop.f32.mrb[0].mxu0
      %v1014 = vadd.f32 %v821, %v1013
      %v1015 = vpop.f32.mrb[0].mxu0
      %1016 = vmatprep.mubr.f32.mxu0 0.0
      %1017 = vmatmul.mubr.f32.gmra.mrb[0].mxu0 %v889
      %v1018 = vpop.f32.mrb[0].mxu0
      %v1019 = vadd.f32 %v826, %v1018
      %v1020 = vpop.f32.mrb[0].mxu0
      %1021 = vmatprep.mubr.f32.mxu0 0.0
      %1022 = vmatmul.mubr.f32.gmra.mrb[0].mxu0 %v892
      %v1023 = vpop.f32.mrb[0].mxu0
      %v1024 = vadd.f32 %v831, %v1023
      %v1025 = vpop.f32.mrb[0].mxu0
      %1026 = vmatprep.mubr.f32.mxu0 0.0
      %1027 = vmatmul.mubr.f32.gmra.mrb[0].mxu0 %v895
      %v1028 = vpop.f32.mrb[0].mxu0
      %v1029 = vadd.f32 %v836, %v1028
      %v1030 = vpop.f32.mrb[0].mxu0
      %1031 = vmatprep.mubr.f32.mxu0 0.0
      %1032 = vmatmul.mubr.f32.gmra.mrb[0].mxu0 %v898
      %v1033 = vpop.f32.mrb[0].mxu0
      %v1034 = vadd.f32 %v841, %v1033
      %v1035 = vpop.f32.mrb[0].mxu0
      %1036 = vmatprep.mubr.f32.mxu0 0.0
      %1037 = vmatmul.mubr.f32.gmra.mrb[0].mxu0 %v901
      %v1038 = vpop.f32.mrb[0].mxu0
      %v1039 = vadd.f32 %v846, %v1038
      %v1040 = vpop.f32.mrb[0].mxu0
      %1041 = vmatprep.mubr.f32.mxu0 0.0
      %1042 = vmatmul.mubr.f32.gmra.mrb[0].mxu0 %v904
      %v1043 = vpop.f32.mrb[0].mxu0
      %v1044 = vadd.f32 %v851, %v1043
      %v1045 = vpop.f32.mrb[0].mxu0
      %1046 = vmatprep.mubr.f32.mxu0 0.0
      %1047 = vmatmul.mubr.f32.gmra.mrb[0].mxu0 %v907
      %v1048 = vpop.f32.mrb[0].mxu0
      %v1049 = vadd.f32 %v856, %v1048
      %v1050 = vpop.f32.mrb[0].mxu0
      %1051 = vmatprep.mubr.f32.mxu0 0.0
      %1052 = vmatmul.mubr.f32.gmra.mrb[0].mxu0 %v910
      %v1053 = vpop.f32.mrb[0].mxu0
      %v1054 = vadd.f32 %v861, %v1053
      %v1055 = vpop.f32.mrb[0].mxu0
      %1056 = vdwg.mxu0
      %v1057 = vmax.f32 %v979, 0.0
      %v1058 = vmax.f32 %v984, 0.0
      %v1059 = vmax.f32 %v989, 0.0
      %v1060 = vmax.f32 %v994, 0.0
      %v1061 = vmax.f32 %v999, 0.0
      %v1062 = vmax.f32 %v1004, 0.0
      %v1063 = vmax.f32 %v1009, 0.0
      %v1064 = vmax.f32 %v1014, 0.0
      %v1065 = vmax.f32 %v1019, 0.0
      %v1066 = vmax.f32 %v1024, 0.0
      %v1067 = vmax.f32 %v1029, 0.0
      %v1068 = vmax.f32 %v1034, 0.0
      %v1069 = vmax.f32 %v1039, 0.0
      %v1070 = vmax.f32 %v1044, 0.0
      %v1071 = vmax.f32 %v1049, 0.0
      %v1072 = vmax.f32 %v1054, 0.0
      %v1073 = vld [vmem:[%s5] sm:$0xff]
      %v1074 = vld [vmem:[%s5 + $0x8] sm:$0xff]
      %v1075 = vld [vmem:[%s5 + $0x10] sm:$0xff]
      %v1076 = vld [vmem:[%s5 + $0x18] sm:$0xff]
      %v1077 = vld [vmem:[%s5 + $0x20] sm:$0xff]
      %v1078 = vld [vmem:[%s5 + $0x28] sm:$0xff]
      %v1079 = vld [vmem:[%s5 + $0x30] sm:$0xff]
      %v1080 = vld [vmem:[%s5 + $0x38] sm:$0xff]
      %v1081 = vld [vmem:[%s5 + $0x40] sm:$0xff]
      %v1082 = vld [vmem:[%s5 + $0x48] sm:$0xff]
      %v1083 = vld [vmem:[%s5 + $0x50] sm:$0xff]
      %v1084 = vld [vmem:[%s5 + $0x58] sm:$0xff]
      %v1085 = vld [vmem:[%s5 + $0x60] sm:$0xff]
      %v1086 = vld [vmem:[%s5 + $0x68] sm:$0xff]
      %v1087 = vld [vmem:[%s5 + $0x70] sm:$0xff]
      %v1088 = vld [vmem:[%s5 + $0x78] sm:$0xff]
      %v1089 = vld [vmem:[%s5 + $0x80] sm:$0xff]
      %v1090 = vld [vmem:[%s5 + $0x88] sm:$0xff]
      %v1091 = vld [vmem:[%s5 + $0x90] sm:$0xff]
      %v1092 = vld [vmem:[%s5 + $0x98] sm:$0xff]
      %v1093 = vld [vmem:[%s5 + $0xa0] sm:$0xff]
      %v1094 = vld [vmem:[%s5 + $0xa8] sm:$0xff]
      %v1095 = vld [vmem:[%s5 + $0xb0] sm:$0xff]
      %v1096 = vld [vmem:[%s5 + $0xb8] sm:$0xff]
      %v1097 = vld [vmem:[%s5 + $0xc0] sm:$0xff]
      %v1098 = vld [vmem:[%s5 + $0xc8] sm:$0xff]
      %v1099 = vld [vmem:[%s5 + $0xd0] sm:$0xff]
      %v1100 = vld [vmem:[%s5 + $0xd8] sm:$0xff]
      %v1101 = vld [vmem:[%s5 + $0xe0] sm:$0xff]
      %v1102 = vld [vmem:[%s5 + $0xe8] sm:$0xff]
      %v1103 = vld [vmem:[%s5 + $0xf0] sm:$0xff]
      %v1104 = vld [vmem:[%s5 + $0xf8] sm:$0xff]
      %v1105 = vld [vmem:[%s6] sm:$0xff]
      %v1106 = vld [vmem:[%s6 + $0x8] sm:$0xff]
      %v1107 = vld [vmem:[%s6 + $0x10] sm:$0xff]
      %v1108 = vld [vmem:[%s6 + $0x18] sm:$0xff]
      %v1109 = vld [vmem:[%s6 + $0x20] sm:$0xff]
      %v1110 = vld [vmem:[%s6 + $0x28] sm:$0xff]
      %v1111 = vld [vmem:[%s6 + $0x30] sm:$0xff]
      %v1112 = vld [vmem:[%s6 + $0x38] sm:$0xff]
      %v1113 = vld [vmem:[%s6 + $0x40] sm:$0xff]
      %v1114 = vld [vmem:[%s6 + $0x48] sm:$0xff]
      %v1115 = vld [vmem:[%s6 + $0x50] sm:$0xff]
      %v1116 = vld [vmem:[%s6 + $0x58] sm:$0xff]
      %v1117 = vld [vmem:[%s6 + $0x60] sm:$0xff]
      %v1118 = vld [vmem:[%s6 + $0x68] sm:$0xff]
      %v1119 = vld [vmem:[%s6 + $0x70] sm:$0xff]
      %v1120 = vld [vmem:[%s6 + $0x78] sm:$0xff]
      %v1121 = vld [vmem:[%s6 + $0x80] sm:$0xff]
      %v1122 = vld [vmem:[%s6 + $0x88] sm:$0xff]
      %v1123 = vld [vmem:[%s6 + $0x90] sm:$0xff]
      %v1124 = vld [vmem:[%s6 + $0x98] sm:$0xff]
      %v1125 = vld [vmem:[%s6 + $0xa0] sm:$0xff]
      %v1126 = vld [vmem:[%s6 + $0xa8] sm:$0xff]
      %v1127 = vld [vmem:[%s6 + $0xb0] sm:$0xff]
      %v1128 = vld [vmem:[%s6 + $0xb8] sm:$0xff]
      %v1129 = vld [vmem:[%s6 + $0xc0] sm:$0xff]
      %v1130 = vld [vmem:[%s6 + $0xc8] sm:$0xff]
      %v1131 = vld [vmem:[%s6 + $0xd0] sm:$0xff]
      %v1132 = vld [vmem:[%s6 + $0xd8] sm:$0xff]
      %v1133 = vld [vmem:[%s6 + $0xe0] sm:$0xff]
      %v1134 = vld [vmem:[%s6 + $0xe8] sm:$0xff]
      %v1135 = vld [vmem:[%s6 + $0xf0] sm:$0xff]
      %v1136 = vld [vmem:[%s6 + $0xf8] sm:$0xff]
      %1138 = vset.pattern.permute.xlu0 0
      %1139 = vperm.xlu0 %1138, %v1105
      %v1140 = vpop.permute.xlu0 %1139
      %1143 = vset.pattern.permute.xlu0 0
      %1144 = vperm.xlu0 %1143, %v1106
      %v1145 = vpop.permute.xlu0 %1144
      %1148 = vset.pattern.permute.xlu0 0
      %1149 = vperm.xlu0 %1148, %v1107
      %v1150 = vpop.permute.xlu0 %1149
      %1153 = vset.pattern.permute.xlu0 0
      %1154 = vperm.xlu0 %1153, %v1108
      %v1155 = vpop.permute.xlu0 %1154
      %1158 = vset.pattern.permute.xlu0 0
      %1159 = vperm.xlu0 %1158, %v1109
      %v1160 = vpop.permute.xlu0 %1159
      %1163 = vset.pattern.permute.xlu0 0
      %1164 = vperm.xlu0 %1163, %v1110
      %v1165 = vpop.permute.xlu0 %1164
      %1168 = vset.pattern.permute.xlu0 0
      %1169 = vperm.xlu0 %1168, %v1111
      %v1170 = vpop.permute.xlu0 %1169
      %1173 = vset.pattern.permute.xlu0 0
      %1174 = vperm.xlu0 %1173, %v1112
      %v1175 = vpop.permute.xlu0 %1174
      %1178 = vset.pattern.permute.xlu0 0
      %1179 = vperm.xlu0 %1178, %v1113
      %v1180 = vpop.permute.xlu0 %1179
      %1183 = vset.pattern.permute.xlu0 0
      %1184 = vperm.xlu0 %1183, %v1114
      %v1185 = vpop.permute.xlu0 %1184
      %1188 = vset.pattern.permute.xlu0 0
      %1189 = vperm.xlu0 %1188, %v1115
      %v1190 = vpop.permute.xlu0 %1189
      %1193 = vset.pattern.permute.xlu0 0
      %1194 = vperm.xlu0 %1193, %v1116
      %v1195 = vpop.permute.xlu0 %1194
      %1198 = vset.pattern.permute.xlu0 0
      %1199 = vperm.xlu0 %1198, %v1117
      %v1200 = vpop.permute.xlu0 %1199
      %1203 = vset.pattern.permute.xlu0 0
      %1204 = vperm.xlu0 %1203, %v1118
      %v1205 = vpop.permute.xlu0 %1204
      %1208 = vset.pattern.permute.xlu0 0
      %1209 = vperm.xlu0 %1208, %v1119
      %v1210 = vpop.permute.xlu0 %1209
      %1213 = vset.pattern.permute.xlu0 0
      %1214 = vperm.xlu0 %1213, %v1120
      %v1215 = vpop.permute.xlu0 %1214
      %1218 = vset.pattern.permute.xlu0 0
      %1219 = vperm.xlu0 %1218, %v1121
      %v1220 = vpop.permute.xlu0 %1219
      %1223 = vset.pattern.permute.xlu0 0
      %1224 = vperm.xlu0 %1223, %v1122
      %v1225 = vpop.permute.xlu0 %1224
      %1228 = vset.pattern.permute.xlu0 0
      %1229 = vperm.xlu0 %1228, %v1123
      %v1230 = vpop.permute.xlu0 %1229
      %1233 = vset.pattern.permute.xlu0 0
      %1234 = vperm.xlu0 %1233, %v1124
      %v1235 = vpop.permute.xlu0 %1234
      %1238 = vset.pattern.permute.xlu0 0
      %1239 = vperm.xlu0 %1238, %v1125
      %v1240 = vpop.permute.xlu0 %1239
      %1243 = vset.pattern.permute.xlu0 0
      %1244 = vperm.xlu0 %1243, %v1126
      %v1245 = vpop.permute.xlu0 %1244
      %1248 = vset.pattern.permute.xlu0 0
      %1249 = vperm.xlu0 %1248, %v1127
      %v1250 = vpop.permute.xlu0 %1249
      %1253 = vset.pattern.permute.xlu0 0
      %1254 = vperm.xlu0 %1253, %v1128
      %v1255 = vpop.permute.xlu0 %1254
      %1258 = vset.pattern.permute.xlu0 0
      %1259 = vperm.xlu0 %1258, %v1129
      %v1260 = vpop.permute.xlu0 %1259
      %1263 = vset.pattern.permute.xlu0 0
      %1264 = vperm.xlu0 %1263, %v1130
      %v1265 = vpop.permute.xlu0 %1264
      %1268 = vset.pattern.permute.xlu0 0
      %1269 = vperm.xlu0 %1268, %v1131
      %v1270 = vpop.permute.xlu0 %1269
      %1273 = vset.pattern.permute.xlu0 0
      %1274 = vperm.xlu0 %1273, %v1132
      %v1275 = vpop.permute.xlu0 %1274
      %1278 = vset.pattern.permute.xlu0 0
      %1279 = vperm.xlu0 %1278, %v1133
      %v1280 = vpop.permute.xlu0 %1279
      %1283 = vset.pattern.permute.xlu0 0
      %1284 = vperm.xlu0 %1283, %v1134
      %v1285 = vpop.permute.xlu0 %1284
      %1288 = vset.pattern.permute.xlu0 0
      %1289 = vperm.xlu0 %1288, %v1135
      %v1290 = vpop.permute.xlu0 %1289
      %1293 = vset.pattern.permute.xlu0 0
      %1294 = vperm.xlu0 %1293, %v1136
      %v1295 = vpop.permute.xlu0 %1294
      %1297 = vmatprep.subr.mxu0 0.0
      %1298 = vmatpush1.msra.mxu0 %v1057
      %1299 = vmatprep.subr.mxu0 0.0
      %1300 = vmatpush1.msra.mxu0 %v1058
      %1301 = vmatprep.subr.mxu0 0.0
      %1302 = vmatpush1.msra.mxu0 %v1059
      %1303 = vmatprep.subr.mxu0 0.0
      %1304 = vmatpush1.msra.mxu0 %v1060
      %1305 = vmatprep.subr.mxu0 0.0
      %1306 = vmatpush1.msra.mxu0 %v1061
      %1307 = vmatprep.subr.mxu0 0.0
      %1308 = vmatpush1.msra.mxu0 %v1062
      %1309 = vmatprep.subr.mxu0 0.0
      %1310 = vmatpush1.msra.mxu0 %v1063
      %1311 = vmatprep.subr.mxu0 0.0
      %1312 = vmatpush1.msra.mxu0 %v1064
      %1313 = vmatprep.subr.mxu0 0.0
      %1314 = vmatpush1.msra.mxu0 %v1065
      %1315 = vmatprep.subr.mxu0 0.0
      %1316 = vmatpush1.msra.mxu0 %v1066
      %1317 = vmatprep.subr.mxu0 0.0
      %1318 = vmatpush1.msra.mxu0 %v1067
      %1319 = vmatprep.subr.mxu0 0.0
      %1320 = vmatpush1.msra.mxu0 %v1068
      %1321 = vmatprep.subr.mxu0 0.0
      %1322 = vmatpush1.msra.mxu0 %v1069
      %1323 = vmatprep.subr.mxu0 0.0
      %1324 = vmatpush1.msra.mxu0 %v1070
      %1325 = vmatprep.subr.mxu0 0.0
      %1326 = vmatpush1.msra.mxu0 %v1071
      %1327 = vmatprep.subr.mxu0 0.0
      %1328 = vmatpush1.msra.mxu0 %v1072
      %1329 = vmatprep.subr.mxu0 0.0
      %1330 = vmatpush1.msra.mxu0 0.0
      %1331 = vmatprep.subr.mxu0 0.0
      %1332 = vmatpush1.msra.mxu0 0.0
      %1333 = vmatprep.subr.mxu0 0.0
      %1334 = vmatpush1.msra.mxu0 0.0
      %1335 = vmatprep.subr.mxu0 0.0
      %1336 = vmatpush1.msra.mxu0 0.0
      %1337 = vmatprep.subr.mxu0 0.0
      %1338 = vmatpush1.msra.mxu0 0.0
      %1339 = vmatprep.subr.mxu0 0.0
      %1340 = vmatpush1.msra.mxu0 0.0
      %1341 = vmatprep.subr.mxu0 0.0
      %1342 = vmatpush1.msra.mxu0 0.0
      %1343 = vmatprep.subr.mxu0 0.0
      %1344 = vmatpush1.msra.mxu0 0.0
      %1345 = vmatprep.subr.mxu0 0.0
      %1346 = vmatpush1.msra.mxu0 0.0
      %1347 = vmatprep.subr.mxu0 0.0
      %1348 = vmatpush1.msra.mxu0 0.0
      %1349 = vmatprep.subr.mxu0 0.0
      %1350 = vmatpush1.msra.mxu0 0.0
      %1351 = vmatprep.subr.mxu0 0.0
      %1352 = vmatpush1.msra.mxu0 0.0
      %1353 = vmatprep.subr.mxu0 0.0
      %1354 = vmatpush1.msra.mxu0 0.0
      %1355 = vmatprep.subr.mxu0 0.0
      %1356 = vmatpush1.msra.mxu0 0.0
      %1357 = vmatprep.subr.mxu0 0.0
      %1358 = vmatpush1.msra.mxu0 0.0
      %1359 = vmatprep.subr.mxu0 0.0
      %1360 = vmatpush1.msra.mxu0 0.0
      %1361 = vmatprep.mubr.f32.mxu0 0.0
      %1362 = vmatmul.mubr.f32.gmra.mrb[0].mxu0 %v1073
      %v1363 = vpop.f32.mrb[0].mxu0
      %v1364 = vadd.f32 %v1140, %v1363
      %v1365 = vpop.f32.mrb[0].mxu0
      %1366 = vmatprep.mubr.f32.mxu0 0.0
      %1367 = vmatmul.mubr.f32.gmra.mrb[0].mxu0 %v1074
      %v1368 = vpop.f32.mrb[0].mxu0
      %v1369 = vadd.f32 %v1145, %v1368
      %v1370 = vpop.f32.mrb[0].mxu0
      %1371 = vmatprep.mubr.f32.mxu0 0.0
      %1372 = vmatmul.mubr.f32.gmra.mrb[0].mxu0 %v1075
      %v1373 = vpop.f32.mrb[0].mxu0
      %v1374 = vadd.f32 %v1150, %v1373
      %v1375 = vpop.f32.mrb[0].mxu0
      %1376 = vmatprep.mubr.f32.mxu0 0.0
      %1377 = vmatmul.mubr.f32.gmra.mrb[0].mxu0 %v1076
      %v1378 = vpop.f32.mrb[0].mxu0
      %v1379 = vadd.f32 %v1155, %v1378
      %v1380 = vpop.f32.mrb[0].mxu0
      %1381 = vmatprep.mubr.f32.mxu0 0.0
      %1382 = vmatmul.mubr.f32.gmra.mrb[0].mxu0 %v1077
      %v1383 = vpop.f32.mrb[0].mxu0
      %v1384 = vadd.f32 %v1160, %v1383
      %v1385 = vpop.f32.mrb[0].mxu0
      %1386 = vmatprep.mubr.f32.mxu0 0.0
      %1387 = vmatmul.mubr.f32.gmra.mrb[0].mxu0 %v1078
      %v1388 = vpop.f32.mrb[0].mxu0
      %v1389 = vadd.f32 %v1165, %v1388
      %v1390 = vpop.f32.mrb[0].mxu0
      %1391 = vmatprep.mubr.f32.mxu0 0.0
      %1392 = vmatmul.mubr.f32.gmra.mrb[0].mxu0 %v1079
      %v1393 = vpop.f32.mrb[0].mxu0
      %v1394 = vadd.f32 %v1170, %v1393
      %v1395 = vpop.f32.mrb[0].mxu0
      %1396 = vmatprep.mubr.f32.mxu0 0.0
      %1397 = vmatmul.mubr.f32.gmra.mrb[0].mxu0 %v1080
      %v1398 = vpop.f32.mrb[0].mxu0
      %v1399 = vadd.f32 %v1175, %v1398
      %v1400 = vpop.f32.mrb[0].mxu0
      %1401 = vmatprep.mubr.f32.mxu0 0.0
      %1402 = vmatmul.mubr.f32.gmra.mrb[0].mxu0 %v1081
      %v1403 = vpop.f32.mrb[0].mxu0
      %v1404 = vadd.f32 %v1180, %v1403
      %v1405 = vpop.f32.mrb[0].mxu0
      %1406 = vmatprep.mubr.f32.mxu0 0.0
      %1407 = vmatmul.mubr.f32.gmra.mrb[0].mxu0 %v1082
      %v1408 = vpop.f32.mrb[0].mxu0
      %v1409 = vadd.f32 %v1185, %v1408
      %v1410 = vpop.f32.mrb[0].mxu0
      %1411 = vmatprep.mubr.f32.mxu0 0.0
      %1412 = vmatmul.mubr.f32.gmra.mrb[0].mxu0 %v1083
      %v1413 = vpop.f32.mrb[0].mxu0
      %v1414 = vadd.f32 %v1190, %v1413
      %v1415 = vpop.f32.mrb[0].mxu0
      %1416 = vmatprep.mubr.f32.mxu0 0.0
      %1417 = vmatmul.mubr.f32.gmra.mrb[0].mxu0 %v1084
      %v1418 = vpop.f32.mrb[0].mxu0
      %v1419 = vadd.f32 %v1195, %v1418
      %v1420 = vpop.f32.mrb[0].mxu0
      %1421 = vmatprep.mubr.f32.mxu0 0.0
      %1422 = vmatmul.mubr.f32.gmra.mrb[0].mxu0 %v1085
      %v1423 = vpop.f32.mrb[0].mxu0
      %v1424 = vadd.f32 %v1200, %v1423
      %v1425 = vpop.f32.mrb[0].mxu0
      %1426 = vmatprep.mubr.f32.mxu0 0.0
      %1427 = vmatmul.mubr.f32.gmra.mrb[0].mxu0 %v1086
      %v1428 = vpop.f32.mrb[0].mxu0
      %v1429 = vadd.f32 %v1205, %v1428
      %v1430 = vpop.f32.mrb[0].mxu0
      %1431 = vmatprep.mubr.f32.mxu0 0.0
      %1432 = vmatmul.mubr.f32.gmra.mrb[0].mxu0 %v1087
      %v1433 = vpop.f32.mrb[0].mxu0
      %v1434 = vadd.f32 %v1210, %v1433
      %v1435 = vpop.f32.mrb[0].mxu0
      %1436 = vmatprep.mubr.f32.mxu0 0.0
      %1437 = vmatmul.mubr.f32.gmra.mrb[0].mxu0 %v1088
      %v1438 = vpop.f32.mrb[0].mxu0
      %v1439 = vadd.f32 %v1215, %v1438
      %v1440 = vpop.f32.mrb[0].mxu0
      %1441 = vmatprep.mubr.f32.mxu0 0.0
      %1442 = vmatmul.mubr.f32.gmra.mrb[0].mxu0 %v1089
      %v1443 = vpop.f32.mrb[0].mxu0
      %v1444 = vadd.f32 %v1220, %v1443
      %v1445 = vpop.f32.mrb[0].mxu0
      %1446 = vmatprep.mubr.f32.mxu0 0.0
      %1447 = vmatmul.mubr.f32.gmra.mrb[0].mxu0 %v1090
      %v1448 = vpop.f32.mrb[0].mxu0
      %v1449 = vadd.f32 %v1225, %v1448
      %v1450 = vpop.f32.mrb[0].mxu0
      %1451 = vmatprep.mubr.f32.mxu0 0.0
      %1452 = vmatmul.mubr.f32.gmra.mrb[0].mxu0 %v1091
      %v1453 = vpop.f32.mrb[0].mxu0
      %v1454 = vadd.f32 %v1230, %v1453
      %v1455 = vpop.f32.mrb[0].mxu0
      %1456 = vmatprep.mubr.f32.mxu0 0.0
      %1457 = vmatmul.mubr.f32.gmra.mrb[0].mxu0 %v1092
      %v1458 = vpop.f32.mrb[0].mxu0
      %v1459 = vadd.f32 %v1235, %v1458
      %v1460 = vpop.f32.mrb[0].mxu0
      %1461 = vmatprep.mubr.f32.mxu0 0.0
      %1462 = vmatmul.mubr.f32.gmra.mrb[0].mxu0 %v1093
      %v1463 = vpop.f32.mrb[0].mxu0
      %v1464 = vadd.f32 %v1240, %v1463
      %v1465 = vpop.f32.mrb[0].mxu0
      %1466 = vmatprep.mubr.f32.mxu0 0.0
      %1467 = vmatmul.mubr.f32.gmra.mrb[0].mxu0 %v1094
      %v1468 = vpop.f32.mrb[0].mxu0
      %v1469 = vadd.f32 %v1245, %v1468
      %v1470 = vpop.f32.mrb[0].mxu0
      %1471 = vmatprep.mubr.f32.mxu0 0.0
      %1472 = vmatmul.mubr.f32.gmra.mrb[0].mxu0 %v1095
      %v1473 = vpop.f32.mrb[0].mxu0
      %v1474 = vadd.f32 %v1250, %v1473
      %v1475 = vpop.f32.mrb[0].mxu0
      %1476 = vmatprep.mubr.f32.mxu0 0.0
      %1477 = vmatmul.mubr.f32.gmra.mrb[0].mxu0 %v1096
      %v1478 = vpop.f32.mrb[0].mxu0
      %v1479 = vadd.f32 %v1255, %v1478
      %v1480 = vpop.f32.mrb[0].mxu0
      %1481 = vmatprep.mubr.f32.mxu0 0.0
      %1482 = vmatmul.mubr.f32.gmra.mrb[0].mxu0 %v1097
      %v1483 = vpop.f32.mrb[0].mxu0
      %v1484 = vadd.f32 %v1260, %v1483
      %v1485 = vpop.f32.mrb[0].mxu0
      %1486 = vmatprep.mubr.f32.mxu0 0.0
      %1487 = vmatmul.mubr.f32.gmra.mrb[0].mxu0 %v1098
      %v1488 = vpop.f32.mrb[0].mxu0
      %v1489 = vadd.f32 %v1265, %v1488
      %v1490 = vpop.f32.mrb[0].mxu0
      %1491 = vmatprep.mubr.f32.mxu0 0.0
      %1492 = vmatmul.mubr.f32.gmra.mrb[0].mxu0 %v1099
      %v1493 = vpop.f32.mrb[0].mxu0
      %v1494 = vadd.f32 %v1270, %v1493
      %v1495 = vpop.f32.mrb[0].mxu0
      %1496 = vmatprep.mubr.f32.mxu0 0.0
      %1497 = vmatmul.mubr.f32.gmra.mrb[0].mxu0 %v1100
      %v1498 = vpop.f32.mrb[0].mxu0
      %v1499 = vadd.f32 %v1275, %v1498
      %v1500 = vpop.f32.mrb[0].mxu0
      %1501 = vmatprep.mubr.f32.mxu0 0.0
      %1502 = vmatmul.mubr.f32.gmra.mrb[0].mxu0 %v1101
      %v1503 = vpop.f32.mrb[0].mxu0
      %v1504 = vadd.f32 %v1280, %v1503
      %v1505 = vpop.f32.mrb[0].mxu0
      %1506 = vmatprep.mubr.f32.mxu0 0.0
      %1507 = vmatmul.mubr.f32.gmra.mrb[0].mxu0 %v1102
      %v1508 = vpop.f32.mrb[0].mxu0
      %v1509 = vadd.f32 %v1285, %v1508
      %v1510 = vpop.f32.mrb[0].mxu0
      %1511 = vmatprep.mubr.f32.mxu0 0.0
      %1512 = vmatmul.mubr.f32.gmra.mrb[0].mxu0 %v1103
      %v1513 = vpop.f32.mrb[0].mxu0
      %v1514 = vadd.f32 %v1290, %v1513
      %v1515 = vpop.f32.mrb[0].mxu0
      %1516 = vmatprep.mubr.f32.mxu0 0.0
      %1517 = vmatmul.mubr.f32.gmra.mrb[0].mxu0 %v1104
      %v1518 = vpop.f32.mrb[0].mxu0
      %v1519 = vadd.f32 %v1295, %v1518
      %v1520 = vpop.f32.mrb[0].mxu0
      %1521 = vdwg.mxu0
      %v1522 = vmax.f32 %v1364, 0.0
      %v1523 = vmax.f32 %v1369, 0.0
      %v1524 = vmax.f32 %v1374, 0.0
      %v1525 = vmax.f32 %v1379, 0.0
      %v1526 = vmax.f32 %v1384, 0.0
      %v1527 = vmax.f32 %v1389, 0.0
      %v1528 = vmax.f32 %v1394, 0.0
      %v1529 = vmax.f32 %v1399, 0.0
      %v1530 = vmax.f32 %v1404, 0.0
      %v1531 = vmax.f32 %v1409, 0.0
      %v1532 = vmax.f32 %v1414, 0.0
      %v1533 = vmax.f32 %v1419, 0.0
      %v1534 = vmax.f32 %v1424, 0.0
      %v1535 = vmax.f32 %v1429, 0.0
      %v1536 = vmax.f32 %v1434, 0.0
      %v1537 = vmax.f32 %v1439, 0.0
      %v1538 = vmax.f32 %v1444, 0.0
      %v1539 = vmax.f32 %v1449, 0.0
      %v1540 = vmax.f32 %v1454, 0.0
      %v1541 = vmax.f32 %v1459, 0.0
      %v1542 = vmax.f32 %v1464, 0.0
      %v1543 = vmax.f32 %v1469, 0.0
      %v1544 = vmax.f32 %v1474, 0.0
      %v1545 = vmax.f32 %v1479, 0.0
      %v1546 = vmax.f32 %v1484, 0.0
      %v1547 = vmax.f32 %v1489, 0.0
      %v1548 = vmax.f32 %v1494, 0.0
      %v1549 = vmax.f32 %v1499, 0.0
      %v1550 = vmax.f32 %v1504, 0.0
      %v1551 = vmax.f32 %v1509, 0.0
      %v1552 = vmax.f32 %v1514, 0.0
      %v1553 = vmax.f32 %v1519, 0.0
      %1554 = vmax.xlane.f32.xlu0 %v1522
      %v1555 = vpop.xlane.xlu0 %1554
      %1556 = vmax.xlane.f32.xlu0 %v1523
      %v1557 = vpop.xlane.xlu0 %1556
      %1558 = vmax.xlane.f32.xlu0 %v1524
      %v1559 = vpop.xlane.xlu0 %1558
      %1560 = vmax.xlane.f32.xlu0 %v1525
      %v1561 = vpop.xlane.xlu0 %1560
      %1562 = vmax.xlane.f32.xlu0 %v1526
      %v1563 = vpop.xlane.xlu0 %1562
      %1564 = vmax.xlane.f32.xlu0 %v1527
      %v1565 = vpop.xlane.xlu0 %1564
      %1566 = vmax.xlane.f32.xlu0 %v1528
      %v1567 = vpop.xlane.xlu0 %1566
      %1568 = vmax.xlane.f32.xlu0 %v1529
      %v1569 = vpop.xlane.xlu0 %1568
      %1570 = vmax.xlane.f32.xlu0 %v1530
      %v1571 = vpop.xlane.xlu0 %1570
      %1572 = vmax.xlane.f32.xlu0 %v1531
      %v1573 = vpop.xlane.xlu0 %1572
      %1574 = vmax.xlane.f32.xlu0 %v1532
      %v1575 = vpop.xlane.xlu0 %1574
      %1576 = vmax.xlane.f32.xlu0 %v1533
      %v1577 = vpop.xlane.xlu0 %1576
      %1578 = vmax.xlane.f32.xlu0 %v1534
      %v1579 = vpop.xlane.xlu0 %1578
      %1580 = vmax.xlane.f32.xlu0 %v1535
      %v1581 = vpop.xlane.xlu0 %1580
      %1582 = vmax.xlane.f32.xlu0 %v1536
      %v1583 = vpop.xlane.xlu0 %1582
      %1584 = vmax.xlane.f32.xlu0 %v1537
      %v1585 = vpop.xlane.xlu0 %1584
      %1586 = vmax.xlane.f32.xlu0 %v1538
      %v1587 = vpop.xlane.xlu0 %1586
      %1588 = vmax.xlane.f32.xlu0 %v1539
      %v1589 = vpop.xlane.xlu0 %1588
      %1590 = vmax.xlane.f32.xlu0 %v1540
      %v1591 = vpop.xlane.xlu0 %1590
      %1592 = vmax.xlane.f32.xlu0 %v1541
      %v1593 = vpop.xlane.xlu0 %1592
      %1594 = vmax.xlane.f32.xlu0 %v1542
      %v1595 = vpop.xlane.xlu0 %1594
      %1596 = vmax.xlane.f32.xlu0 %v1543
      %v1597 = vpop.xlane.xlu0 %1596
      %1598 = vmax.xlane.f32.xlu0 %v1544
      %v1599 = vpop.xlane.xlu0 %1598
      %1600 = vmax.xlane.f32.xlu0 %v1545
      %v1601 = vpop.xlane.xlu0 %1600
      %1602 = vmax.xlane.f32.xlu0 %v1546
      %v1603 = vpop.xlane.xlu0 %1602
      %1604 = vmax.xlane.f32.xlu0 %v1547
      %v1605 = vpop.xlane.xlu0 %1604
      %1606 = vmax.xlane.f32.xlu0 %v1548
      %v1607 = vpop.xlane.xlu0 %1606
      %1608 = vmax.xlane.f32.xlu0 %v1549
      %v1609 = vpop.xlane.xlu0 %1608
      %1610 = vmax.xlane.f32.xlu0 %v1550
      %v1611 = vpop.xlane.xlu0 %1610
      %1612 = vmax.xlane.f32.xlu0 %v1551
      %v1613 = vpop.xlane.xlu0 %1612
      %1614 = vmax.xlane.f32.xlu0 %v1552
      %v1615 = vpop.xlane.xlu0 %1614
      %1616 = vmax.xlane.f32.xlu0 %v1553
      %v1617 = vpop.xlane.xlu0 %1616
      %s1618 = scalar_lea.vmem %s544, 4
      %v1619 = vld [vmem:[%s1618] sm:$0x7]
      %v1621 = vsel %vm634, %v1619, 0
      %1623 = vmatprep.subr.mxu0 0.0
      %1624 = vmatpush1.msra.mxu0 %v1621
      %1625 = vmatprep.subr.mxu0 0.0
      %1626 = vmatpush1.msra.mxu0 0.0
      %1627 = vmatprep.subr.mxu0 0.0
      %1628 = vmatpush1.msra.mxu0 0.0
      %1629 = vmatprep.subr.mxu0 0.0
      %1630 = vmatpush1.msra.mxu0 0.0
      %1631 = vmatprep.subr.mxu0 0.0
      %1632 = vmatpush1.msra.mxu0 0.0
      %1633 = vmatprep.subr.mxu0 0.0
      %1634 = vmatpush1.msra.mxu0 0.0
      %1635 = vmatprep.subr.mxu0 0.0
      %1636 = vmatpush1.msra.mxu0 0.0
      %1637 = vmatprep.subr.mxu0 0.0
      %1638 = vmatpush1.msra.mxu0 0.0
      %1639 = vmatprep.subr.mxu0 0.0
      %1640 = vmatpush1.msra.mxu0 0.0
      %1641 = vmatprep.subr.mxu0 0.0
      %1642 = vmatpush1.msra.mxu0 0.0
      %1643 = vmatprep.subr.mxu0 0.0
      %1644 = vmatpush1.msra.mxu0 0.0
      %1645 = vmatprep.subr.mxu0 0.0
      %1646 = vmatpush1.msra.mxu0 0.0
      %1647 = vmatprep.subr.mxu0 0.0
      %1648 = vmatpush1.msra.mxu0 0.0
      %1649 = vmatprep.subr.mxu0 0.0
      %1650 = vmatpush1.msra.mxu0 0.0
      %1651 = vmatprep.subr.mxu0 0.0
      %1652 = vmatpush1.msra.mxu0 0.0
      %1653 = vmatprep.subr.mxu0 0.0
      %1654 = vmatpush1.msra.mxu0 0.0
      %1655 = vmatprep.subr.mxu0 0.0
      %1656 = vmatpush1.msra.mxu0 0.0
      %1657 = vmatprep.subr.mxu0 0.0
      %1658 = vmatpush1.msra.mxu0 0.0
      %1659 = vmatprep.subr.mxu0 0.0
      %1660 = vmatpush1.msra.mxu0 0.0
      %1661 = vmatprep.subr.mxu0 0.0
      %1662 = vmatpush1.msra.mxu0 0.0
      %1663 = vmatprep.subr.mxu0 0.0
      %1664 = vmatpush1.msra.mxu0 0.0
      %1665 = vmatprep.subr.mxu0 0.0
      %1666 = vmatpush1.msra.mxu0 0.0
      %1667 = vmatprep.subr.mxu0 0.0
      %1668 = vmatpush1.msra.mxu0 0.0
      %1669 = vmatprep.subr.mxu0 0.0
      %1670 = vmatpush1.msra.mxu0 0.0
      %1671 = vmatprep.subr.mxu0 0.0
      %1672 = vmatpush1.msra.mxu0 0.0
      %1673 = vmatprep.subr.mxu0 0.0
      %1674 = vmatpush1.msra.mxu0 0.0
      %1675 = vmatprep.subr.mxu0 0.0
      %1676 = vmatpush1.msra.mxu0 0.0
      %1677 = vmatprep.subr.mxu0 0.0
      %1678 = vmatpush1.msra.mxu0 0.0
      %1679 = vmatprep.subr.mxu0 0.0
      %1680 = vmatpush1.msra.mxu0 0.0
      %1681 = vmatprep.subr.mxu0 0.0
      %1682 = vmatpush1.msra.mxu0 0.0
      %1683 = vmatprep.subr.mxu0 0.0
      %1684 = vmatpush1.msra.mxu0 0.0
      %1685 = vmatprep.subr.mxu0 0.0
      %1686 = vmatpush1.msra.mxu0 0.0
      %1687 = vmatprep.mubr.f32.mxu0 0.0
      %1688 = vmatmul.mubr.f32.gmra.mrb[0].mxu0 %v611
      %v1689 = vpop.f32.mrb[0].mxu0
      %v1690 = vadd.f32 %v572, %v1689
      %v1691 = vpop.f32.mrb[0].mxu0
      %1692 = vmatprep.mubr.f32.mxu0 0.0
      %1693 = vmatmul.mubr.f32.gmra.mrb[0].mxu0 %v614
      %v1694 = vpop.f32.mrb[0].mxu0
      %v1695 = vadd.f32 %v577, %v1694
      %v1696 = vpop.f32.mrb[0].mxu0
      %1697 = vmatprep.mubr.f32.mxu0 0.0
      %1698 = vmatmul.mubr.f32.gmra.mrb[0].mxu0 %v617
      %v1699 = vpop.f32.mrb[0].mxu0
      %v1700 = vadd.f32 %v582, %v1699
      %v1701 = vpop.f32.mrb[0].mxu0
      %1702 = vmatprep.mubr.f32.mxu0 0.0
      %1703 = vmatmul.mubr.f32.gmra.mrb[0].mxu0 %v620
      %v1704 = vpop.f32.mrb[0].mxu0
      %v1705 = vadd.f32 %v587, %v1704
      %v1706 = vpop.f32.mrb[0].mxu0
      %1707 = vmatprep.mubr.f32.mxu0 0.0
      %1708 = vmatmul.mubr.f32.gmra.mrb[0].mxu0 %v623
      %v1709 = vpop.f32.mrb[0].mxu0
      %v1710 = vadd.f32 %v592, %v1709
      %v1711 = vpop.f32.mrb[0].mxu0
      %1712 = vmatprep.mubr.f32.mxu0 0.0
      %1713 = vmatmul.mubr.f32.gmra.mrb[0].mxu0 %v626
      %v1714 = vpop.f32.mrb[0].mxu0
      %v1715 = vadd.f32 %v597, %v1714
      %v1716 = vpop.f32.mrb[0].mxu0
      %1717 = vmatprep.mubr.f32.mxu0 0.0
      %1718 = vmatmul.mubr.f32.gmra.mrb[0].mxu0 %v629
      %v1719 = vpop.f32.mrb[0].mxu0
      %v1720 = vadd.f32 %v602, %v1719
      %v1721 = vpop.f32.mrb[0].mxu0
      %1722 = vmatprep.mubr.f32.mxu0 0.0
      %1723 = vmatmul.mubr.f32.gmra.mrb[0].mxu0 %v632
      %v1724 = vpop.f32.mrb[0].mxu0
      %v1725 = vadd.f32 %v607, %v1724
      %v1726 = vpop.f32.mrb[0].mxu0
      %1727 = vdwg.mxu0
      %v1728 = vmax.f32 %v1690, 0.0
      %v1729 = vmax.f32 %v1695, 0.0
      %v1730 = vmax.f32 %v1700, 0.0
      %v1731 = vmax.f32 %v1705, 0.0
      %v1732 = vmax.f32 %v1710, 0.0
      %v1733 = vmax.f32 %v1715, 0.0
      %v1734 = vmax.f32 %v1720, 0.0
      %v1735 = vmax.f32 %v1725, 0.0
      %1736 = vmatprep.subr.mxu0 0.0
      %1737 = vmatpush1.msra.mxu0 %v1728
      %1738 = vmatprep.subr.mxu0 0.0
      %1739 = vmatpush1.msra.mxu0 %v1729
      %1740 = vmatprep.subr.mxu0 0.0
      %1741 = vmatpush1.msra.mxu0 %v1730
      %1742 = vmatprep.subr.mxu0 0.0
      %1743 = vmatpush1.msra.mxu0 %v1731
      %1744 = vmatprep.subr.mxu0 0.0
      %1745 = vmatpush1.msra.mxu0 %v1732
      %1746 = vmatprep.subr.mxu0 0.0
      %1747 = vmatpush1.msra.mxu0 %v1733
      %1748 = vmatprep.subr.mxu0 0.0
      %1749 = vmatpush1.msra.mxu0 %v1734
      %1750 = vmatprep.subr.mxu0 0.0
      %1751 = vmatpush1.msra.mxu0 %v1735
      %1752 = vmatprep.subr.mxu0 0.0
      %1753 = vmatpush1.msra.mxu0 0.0
      %1754 = vmatprep.subr.mxu0 0.0
      %1755 = vmatpush1.msra.mxu0 0.0
      %1756 = vmatprep.subr.mxu0 0.0
      %1757 = vmatpush1.msra.mxu0 0.0
      %1758 = vmatprep.subr.mxu0 0.0
      %1759 = vmatpush1.msra.mxu0 0.0
      %1760 = vmatprep.subr.mxu0 0.0
      %1761 = vmatpush1.msra.mxu0 0.0
      %1762 = vmatprep.subr.mxu0 0.0
      %1763 = vmatpush1.msra.mxu0 0.0
      %1764 = vmatprep.subr.mxu0 0.0
      %1765 = vmatpush1.msra.mxu0 0.0
      %1766 = vmatprep.subr.mxu0 0.0
      %1767 = vmatpush1.msra.mxu0 0.0
      %1768 = vmatprep.subr.mxu0 0.0
      %1769 = vmatpush1.msra.mxu0 0.0
      %1770 = vmatprep.subr.mxu0 0.0
      %1771 = vmatpush1.msra.mxu0 0.0
      %1772 = vmatprep.subr.mxu0 0.0
      %1773 = vmatpush1.msra.mxu0 0.0
      %1774 = vmatprep.subr.mxu0 0.0
      %1775 = vmatpush1.msra.mxu0 0.0
      %1776 = vmatprep.subr.mxu0 0.0
      %1777 = vmatpush1.msra.mxu0 0.0
      %1778 = vmatprep.subr.mxu0 0.0
      %1779 = vmatpush1.msra.mxu0 0.0
      %1780 = vmatprep.subr.mxu0 0.0
      %1781 = vmatpush1.msra.mxu0 0.0
      %1782 = vmatprep.subr.mxu0 0.0
      %1783 = vmatpush1.msra.mxu0 0.0
      %1784 = vmatprep.subr.mxu0 0.0
      %1785 = vmatpush1.msra.mxu0 0.0
      %1786 = vmatprep.subr.mxu0 0.0
      %1787 = vmatpush1.msra.mxu0 0.0
      %1788 = vmatprep.subr.mxu0 0.0
      %1789 = vmatpush1.msra.mxu0 0.0
      %1790 = vmatprep.subr.mxu0 0.0
      %1791 = vmatpush1.msra.mxu0 0.0
      %1792 = vmatprep.subr.mxu0 0.0
      %1793 = vmatpush1.msra.mxu0 0.0
      %1794 = vmatprep.subr.mxu0 0.0
      %1795 = vmatpush1.msra.mxu0 0.0
      %1796 = vmatprep.subr.mxu0 0.0
      %1797 = vmatpush1.msra.mxu0 0.0
      %1798 = vmatprep.subr.mxu0 0.0
      %1799 = vmatpush1.msra.mxu0 0.0
      %1800 = vmatprep.mubr.f32.mxu0 0.0
      %1801 = vmatmul.mubr.f32.gmra.mrb[0].mxu0 %v865
      %v1802 = vpop.f32.mrb[0].mxu0
      %v1803 = vadd.f32 %v786, %v1802
      %v1804 = vpop.f32.mrb[0].mxu0
      %1805 = vmatprep.mubr.f32.mxu0 0.0
      %1806 = vmatmul.mubr.f32.gmra.mrb[0].mxu0 %v868
      %v1807 = vpop.f32.mrb[0].mxu0
      %v1808 = vadd.f32 %v791, %v1807
      %v1809 = vpop.f32.mrb[0].mxu0
      %1810 = vmatprep.mubr.f32.mxu0 0.0
      %1811 = vmatmul.mubr.f32.gmra.mrb[0].mxu0 %v871
      %v1812 = vpop.f32.mrb[0].mxu0
      %v1813 = vadd.f32 %v796, %v1812
      %v1814 = vpop.f32.mrb[0].mxu0
      %1815 = vmatprep.mubr.f32.mxu0 0.0
      %1816 = vmatmul.mubr.f32.gmra.mrb[0].mxu0 %v874
      %v1817 = vpop.f32.mrb[0].mxu0
      %v1818 = vadd.f32 %v801, %v1817
      %v1819 = vpop.f32.mrb[0].mxu0
      %1820 = vmatprep.mubr.f32.mxu0 0.0
      %1821 = vmatmul.mubr.f32.gmra.mrb[0].mxu0 %v877
      %v1822 = vpop.f32.mrb[0].mxu0
      %v1823 = vadd.f32 %v806, %v1822
      %v1824 = vpop.f32.mrb[0].mxu0
      %1825 = vmatprep.mubr.f32.mxu0 0.0
      %1826 = vmatmul.mubr.f32.gmra.mrb[0].mxu0 %v880
      %v1827 = vpop.f32.mrb[0].mxu0
      %v1828 = vadd.f32 %v811, %v1827
      %v1829 = vpop.f32.mrb[0].mxu0
      %1830 = vmatprep.mubr.f32.mxu0 0.0
      %1831 = vmatmul.mubr.f32.gmra.mrb[0].mxu0 %v883
      %v1832 = vpop.f32.mrb[0].mxu0
      %v1833 = vadd.f32 %v816, %v1832
      %v1834 = vpop.f32.mrb[0].mxu0
      %1835 = vmatprep.mubr.f32.mxu0 0.0
      %1836 = vmatmul.mubr.f32.gmra.mrb[0].mxu0 %v886
      %v1837 = vpop.f32.mrb[0].mxu0
      %v1838 = vadd.f32 %v821, %v1837
      %v1839 = vpop.f32.mrb[0].mxu0
      %1840 = vmatprep.mubr.f32.mxu0 0.0
      %1841 = vmatmul.mubr.f32.gmra.mrb[0].mxu0 %v889
      %v1842 = vpop.f32.mrb[0].mxu0
      %v1843 = vadd.f32 %v826, %v1842
      %v1844 = vpop.f32.mrb[0].mxu0
      %1845 = vmatprep.mubr.f32.mxu0 0.0
      %1846 = vmatmul.mubr.f32.gmra.mrb[0].mxu0 %v892
      %v1847 = vpop.f32.mrb[0].mxu0
      %v1848 = vadd.f32 %v831, %v1847
      %v1849 = vpop.f32.mrb[0].mxu0
      %1850 = vmatprep.mubr.f32.mxu0 0.0
      %1851 = vmatmul.mubr.f32.gmra.mrb[0].mxu0 %v895
      %v1852 = vpop.f32.mrb[0].mxu0
      %v1853 = vadd.f32 %v836, %v1852
      %v1854 = vpop.f32.mrb[0].mxu0
      %1855 = vmatprep.mubr.f32.mxu0 0.0
      %1856 = vmatmul.mubr.f32.gmra.mrb[0].mxu0 %v898
      %v1857 = vpop.f32.mrb[0].mxu0
      %v1858 = vadd.f32 %v841, %v1857
      %v1859 = vpop.f32.mrb[0].mxu0
      %1860 = vmatprep.mubr.f32.mxu0 0.0
      %1861 = vmatmul.mubr.f32.gmra.mrb[0].mxu0 %v901
      %v1862 = vpop.f32.mrb[0].mxu0
      %v1863 = vadd.f32 %v846, %v1862
      %v1864 = vpop.f32.mrb[0].mxu0
      %1865 = vmatprep.mubr.f32.mxu0 0.0
      %1866 = vmatmul.mubr.f32.gmra.mrb[0].mxu0 %v904
      %v1867 = vpop.f32.mrb[0].mxu0
      %v1868 = vadd.f32 %v851, %v1867
      %v1869 = vpop.f32.mrb[0].mxu0
      %1870 = vmatprep.mubr.f32.mxu0 0.0
      %1871 = vmatmul.mubr.f32.gmra.mrb[0].mxu0 %v907
      %v1872 = vpop.f32.mrb[0].mxu0
      %v1873 = vadd.f32 %v856, %v1872
      %v1874 = vpop.f32.mrb[0].mxu0
      %1875 = vmatprep.mubr.f32.mxu0 0.0
      %1876 = vmatmul.mubr.f32.gmra.mrb[0].mxu0 %v910
      %v1877 = vpop.f32.mrb[0].mxu0
      %v1878 = vadd.f32 %v861, %v1877
      %v1879 = vpop.f32.mrb[0].mxu0
      %1880 = vdwg.mxu0
      %v1881 = vmax.f32 %v1803, 0.0
      %v1882 = vmax.f32 %v1808, 0.0
      %v1883 = vmax.f32 %v1813, 0.0
      %v1884 = vmax.f32 %v1818, 0.0
      %v1885 = vmax.f32 %v1823, 0.0
      %v1886 = vmax.f32 %v1828, 0.0
      %v1887 = vmax.f32 %v1833, 0.0
      %v1888 = vmax.f32 %v1838, 0.0
      %v1889 = vmax.f32 %v1843, 0.0
      %v1890 = vmax.f32 %v1848, 0.0
      %v1891 = vmax.f32 %v1853, 0.0
      %v1892 = vmax.f32 %v1858, 0.0
      %v1893 = vmax.f32 %v1863, 0.0
      %v1894 = vmax.f32 %v1868, 0.0
      %v1895 = vmax.f32 %v1873, 0.0
      %v1896 = vmax.f32 %v1878, 0.0
      %1897 = vmatprep.subr.mxu0 0.0
      %1898 = vmatpush1.msra.mxu0 %v1881
      %1899 = vmatprep.subr.mxu0 0.0
      %1900 = vmatpush1.msra.mxu0 %v1882
      %1901 = vmatprep.subr.mxu0 0.0
      %1902 = vmatpush1.msra.mxu0 %v1883
      %1903 = vmatprep.subr.mxu0 0.0
      %1904 = vmatpush1.msra.mxu0 %v1884
      %1905 = vmatprep.subr.mxu0 0.0
      %1906 = vmatpush1.msra.mxu0 %v1885
      %1907 = vmatprep.subr.mxu0 0.0
      %1908 = vmatpush1.msra.mxu0 %v1886
      %1909 = vmatprep.subr.mxu0 0.0
      %1910 = vmatpush1.msra.mxu0 %v1887
      %1911 = vmatprep.subr.mxu0 0.0
      %1912 = vmatpush1.msra.mxu0 %v1888
      %1913 = vmatprep.subr.mxu0 0.0
      %1914 = vmatpush1.msra.mxu0 %v1889
      %1915 = vmatprep.subr.mxu0 0.0
      %1916 = vmatpush1.msra.mxu0 %v1890
      %1917 = vmatprep.subr.mxu0 0.0
      %1918 = vmatpush1.msra.mxu0 %v1891
      %1919 = vmatprep.subr.mxu0 0.0
      %1920 = vmatpush1.msra.mxu0 %v1892
      %1921 = vmatprep.subr.mxu0 0.0
      %1922 = vmatpush1.msra.mxu0 %v1893
      %1923 = vmatprep.subr.mxu0 0.0
      %1924 = vmatpush1.msra.mxu0 %v1894
      %1925 = vmatprep.subr.mxu0 0.0
      %1926 = vmatpush1.msra.mxu0 %v1895
      %1927 = vmatprep.subr.mxu0 0.0
      %1928 = vmatpush1.msra.mxu0 %v1896
      %1929 = vmatprep.subr.mxu0 0.0
      %1930 = vmatpush1.msra.mxu0 0.0
      %1931 = vmatprep.subr.mxu0 0.0
      %1932 = vmatpush1.msra.mxu0 0.0
      %1933 = vmatprep.subr.mxu0 0.0
      %1934 = vmatpush1.msra.mxu0 0.0
      %1935 = vmatprep.subr.mxu0 0.0
      %1936 = vmatpush1.msra.mxu0 0.0
      %1937 = vmatprep.subr.mxu0 0.0
      %1938 = vmatpush1.msra.mxu0 0.0
      %1939 = vmatprep.subr.mxu0 0.0
      %1940 = vmatpush1.msra.mxu0 0.0
      %1941 = vmatprep.subr.mxu0 0.0
      %1942 = vmatpush1.msra.mxu0 0.0
      %1943 = vmatprep.subr.mxu0 0.0
      %1944 = vmatpush1.msra.mxu0 0.0
      %1945 = vmatprep.subr.mxu0 0.0
      %1946 = vmatpush1.msra.mxu0 0.0
      %1947 = vmatprep.subr.mxu0 0.0
      %1948 = vmatpush1.msra.mxu0 0.0
      %1949 = vmatprep.subr.mxu0 0.0
      %1950 = vmatpush1.msra.mxu0 0.0
      %1951 = vmatprep.subr.mxu0 0.0
      %1952 = vmatpush1.msra.mxu0 0.0
      %1953 = vmatprep.subr.mxu0 0.0
      %1954 = vmatpush1.msra.mxu0 0.0
      %1955 = vmatprep.subr.mxu0 0.0
      %1956 = vmatpush1.msra.mxu0 0.0
      %1957 = vmatprep.subr.mxu0 0.0
      %1958 = vmatpush1.msra.mxu0 0.0
      %1959 = vmatprep.subr.mxu0 0.0
      %1960 = vmatpush1.msra.mxu0 0.0
      %1961 = vmatprep.mubr.f32.mxu0 0.0
      %1962 = vmatmul.mubr.f32.gmra.mrb[0].mxu0 %v1073
      %v1963 = vpop.f32.mrb[0].mxu0
      %v1964 = vadd.f32 %v1140, %v1963
      %v1965 = vpop.f32.mrb[0].mxu0
      %1966 = vmatprep.mubr.f32.mxu0 0.0
      %1967 = vmatmul.mubr.f32.gmra.mrb[0].mxu0 %v1074
      %v1968 = vpop.f32.mrb[0].mxu0
      %v1969 = vadd.f32 %v1145, %v1968
      %v1970 = vpop.f32.mrb[0].mxu0
      %1971 = vmatprep.mubr.f32.mxu0 0.0
      %1972 = vmatmul.mubr.f32.gmra.mrb[0].mxu0 %v1075
      %v1973 = vpop.f32.mrb[0].mxu0
      %v1974 = vadd.f32 %v1150, %v1973
      %v1975 = vpop.f32.mrb[0].mxu0
      %1976 = vmatprep.mubr.f32.mxu0 0.0
      %1977 = vmatmul.mubr.f32.gmra.mrb[0].mxu0 %v1076
      %v1978 = vpop.f32.mrb[0].mxu0
      %v1979 = vadd.f32 %v1155, %v1978
      %v1980 = vpop.f32.mrb[0].mxu0
      %1981 = vmatprep.mubr.f32.mxu0 0.0
      %1982 = vmatmul.mubr.f32.gmra.mrb[0].mxu0 %v1077
      %v1983 = vpop.f32.mrb[0].mxu0
      %v1984 = vadd.f32 %v1160, %v1983
      %v1985 = vpop.f32.mrb[0].mxu0
      %1986 = vmatprep.mubr.f32.mxu0 0.0
      %1987 = vmatmul.mubr.f32.gmra.mrb[0].mxu0 %v1078
      %v1988 = vpop.f32.mrb[0].mxu0
      %v1989 = vadd.f32 %v1165, %v1988
      %v1990 = vpop.f32.mrb[0].mxu0
      %1991 = vmatprep.mubr.f32.mxu0 0.0
      %1992 = vmatmul.mubr.f32.gmra.mrb[0].mxu0 %v1079
      %v1993 = vpop.f32.mrb[0].mxu0
      %v1994 = vadd.f32 %v1170, %v1993
      %v1995 = vpop.f32.mrb[0].mxu0
      %1996 = vmatprep.mubr.f32.mxu0 0.0
      %1997 = vmatmul.mubr.f32.gmra.mrb[0].mxu0 %v1080
      %v1998 = vpop.f32.mrb[0].mxu0
      %v1999 = vadd.f32 %v1175, %v1998
      %v2000 = vpop.f32.mrb[0].mxu0
      %2001 = vmatprep.mubr.f32.mxu0 0.0
      %2002 = vmatmul.mubr.f32.gmra.mrb[0].mxu0 %v1081
      %v2003 = vpop.f32.mrb[0].mxu0
      %v2004 = vadd.f32 %v1180, %v2003
      %v2005 = vpop.f32.mrb[0].mxu0
      %2006 = vmatprep.mubr.f32.mxu0 0.0
      %2007 = vmatmul.mubr.f32.gmra.mrb[0].mxu0 %v1082
      %v2008 = vpop.f32.mrb[0].mxu0
      %v2009 = vadd.f32 %v1185, %v2008
      %v2010 = vpop.f32.mrb[0].mxu0
      %2011 = vmatprep.mubr.f32.mxu0 0.0
      %2012 = vmatmul.mubr.f32.gmra.mrb[0].mxu0 %v1083
      %v2013 = vpop.f32.mrb[0].mxu0
      %v2014 = vadd.f32 %v1190, %v2013
      %v2015 = vpop.f32.mrb[0].mxu0
      %2016 = vmatprep.mubr.f32.mxu0 0.0
      %2017 = vmatmul.mubr.f32.gmra.mrb[0].mxu0 %v1084
      %v2018 = vpop.f32.mrb[0].mxu0
      %v2019 = vadd.f32 %v1195, %v2018
      %v2020 = vpop.f32.mrb[0].mxu0
      %2021 = vmatprep.mubr.f32.mxu0 0.0
      %2022 = vmatmul.mubr.f32.gmra.mrb[0].mxu0 %v1085
      %v2023 = vpop.f32.mrb[0].mxu0
      %v2024 = vadd.f32 %v1200, %v2023
      %v2025 = vpop.f32.mrb[0].mxu0
      %2026 = vmatprep.mubr.f32.mxu0 0.0
      %2027 = vmatmul.mubr.f32.gmra.mrb[0].mxu0 %v1086
      %v2028 = vpop.f32.mrb[0].mxu0
      %v2029 = vadd.f32 %v1205, %v2028
      %v2030 = vpop.f32.mrb[0].mxu0
      %2031 = vmatprep.mubr.f32.mxu0 0.0
      %2032 = vmatmul.mubr.f32.gmra.mrb[0].mxu0 %v1087
      %v2033 = vpop.f32.mrb[0].mxu0
      %v2034 = vadd.f32 %v1210, %v2033
      %v2035 = vpop.f32.mrb[0].mxu0
      %2036 = vmatprep.mubr.f32.mxu0 0.0
      %2037 = vmatmul.mubr.f32.gmra.mrb[0].mxu0 %v1088
      %v2038 = vpop.f32.mrb[0].mxu0
      %v2039 = vadd.f32 %v1215, %v2038
      %v2040 = vpop.f32.mrb[0].mxu0
      %2041 = vmatprep.mubr.f32.mxu0 0.0
      %2042 = vmatmul.mubr.f32.gmra.mrb[0].mxu0 %v1089
      %v2043 = vpop.f32.mrb[0].mxu0
      %v2044 = vadd.f32 %v1220, %v2043
      %v2045 = vpop.f32.mrb[0].mxu0
      %2046 = vmatprep.mubr.f32.mxu0 0.0
      %2047 = vmatmul.mubr.f32.gmra.mrb[0].mxu0 %v1090
      %v2048 = vpop.f32.mrb[0].mxu0
      %v2049 = vadd.f32 %v1225, %v2048
      %v2050 = vpop.f32.mrb[0].mxu0
      %2051 = vmatprep.mubr.f32.mxu0 0.0
      %2052 = vmatmul.mubr.f32.gmra.mrb[0].mxu0 %v1091
      %v2053 = vpop.f32.mrb[0].mxu0
      %v2054 = vadd.f32 %v1230, %v2053
      %v2055 = vpop.f32.mrb[0].mxu0
      %2056 = vmatprep.mubr.f32.mxu0 0.0
      %2057 = vmatmul.mubr.f32.gmra.mrb[0].mxu0 %v1092
      %v2058 = vpop.f32.mrb[0].mxu0
      %v2059 = vadd.f32 %v1235, %v2058
      %v2060 = vpop.f32.mrb[0].mxu0
      %2061 = vmatprep.mubr.f32.mxu0 0.0
      %2062 = vmatmul.mubr.f32.gmra.mrb[0].mxu0 %v1093
      %v2063 = vpop.f32.mrb[0].mxu0
      %v2064 = vadd.f32 %v1240, %v2063
      %v2065 = vpop.f32.mrb[0].mxu0
      %2066 = vmatprep.mubr.f32.mxu0 0.0
      %2067 = vmatmul.mubr.f32.gmra.mrb[0].mxu0 %v1094
      %v2068 = vpop.f32.mrb[0].mxu0
      %v2069 = vadd.f32 %v1245, %v2068
      %v2070 = vpop.f32.mrb[0].mxu0
      %2071 = vmatprep.mubr.f32.mxu0 0.0
      %2072 = vmatmul.mubr.f32.gmra.mrb[0].mxu0 %v1095
      %v2073 = vpop.f32.mrb[0].mxu0
      %v2074 = vadd.f32 %v1250, %v2073
      %v2075 = vpop.f32.mrb[0].mxu0
      %2076 = vmatprep.mubr.f32.mxu0 0.0
      %2077 = vmatmul.mubr.f32.gmra.mrb[0].mxu0 %v1096
      %v2078 = vpop.f32.mrb[0].mxu0
      %v2079 = vadd.f32 %v1255, %v2078
      %v2080 = vpop.f32.mrb[0].mxu0
      %2081 = vmatprep.mubr.f32.mxu0 0.0
      %2082 = vmatmul.mubr.f32.gmra.mrb[0].mxu0 %v1097
      %v2083 = vpop.f32.mrb[0].mxu0
      %v2084 = vadd.f32 %v1260, %v2083
      %v2085 = vpop.f32.mrb[0].mxu0
      %2086 = vmatprep.mubr.f32.mxu0 0.0
      %2087 = vmatmul.mubr.f32.gmra.mrb[0].mxu0 %v1098
      %v2088 = vpop.f32.mrb[0].mxu0
      %v2089 = vadd.f32 %v1265, %v2088
      %v2090 = vpop.f32.mrb[0].mxu0
      %2091 = vmatprep.mubr.f32.mxu0 0.0
      %2092 = vmatmul.mubr.f32.gmra.mrb[0].mxu0 %v1099
      %v2093 = vpop.f32.mrb[0].mxu0
      %v2094 = vadd.f32 %v1270, %v2093
      %v2095 = vpop.f32.mrb[0].mxu0
      %2096 = vmatprep.mubr.f32.mxu0 0.0
      %2097 = vmatmul.mubr.f32.gmra.mrb[0].mxu0 %v1100
      %v2098 = vpop.f32.mrb[0].mxu0
      %v2099 = vadd.f32 %v1275, %v2098
      %v2100 = vpop.f32.mrb[0].mxu0
      %2101 = vmatprep.mubr.f32.mxu0 0.0
      %2102 = vmatmul.mubr.f32.gmra.mrb[0].mxu0 %v1101
      %v2103 = vpop.f32.mrb[0].mxu0
      %v2104 = vadd.f32 %v1280, %v2103
      %v2105 = vpop.f32.mrb[0].mxu0
      %2106 = vmatprep.mubr.f32.mxu0 0.0
      %2107 = vmatmul.mubr.f32.gmra.mrb[0].mxu0 %v1102
      %v2108 = vpop.f32.mrb[0].mxu0
      %v2109 = vadd.f32 %v1285, %v2108
      %v2110 = vpop.f32.mrb[0].mxu0
      %2111 = vmatprep.mubr.f32.mxu0 0.0
      %2112 = vmatmul.mubr.f32.gmra.mrb[0].mxu0 %v1103
      %v2113 = vpop.f32.mrb[0].mxu0
      %v2114 = vadd.f32 %v1290, %v2113
      %v2115 = vpop.f32.mrb[0].mxu0
      %2116 = vmatprep.mubr.f32.mxu0 0.0
      %2117 = vmatmul.mubr.f32.gmra.mrb[0].mxu0 %v1104
      %v2118 = vpop.f32.mrb[0].mxu0
      %v2119 = vadd.f32 %v1295, %v2118
      %v2120 = vpop.f32.mrb[0].mxu0
      %2121 = vdwg.mxu0
      %v2122 = vmax.f32 %v1964, 0.0
      %v2123 = vmax.f32 %v1969, 0.0
      %v2124 = vmax.f32 %v1974, 0.0
      %v2125 = vmax.f32 %v1979, 0.0
      %v2126 = vmax.f32 %v1984, 0.0
      %v2127 = vmax.f32 %v1989, 0.0
      %v2128 = vmax.f32 %v1994, 0.0
      %v2129 = vmax.f32 %v1999, 0.0
      %v2130 = vmax.f32 %v2004, 0.0
      %v2131 = vmax.f32 %v2009, 0.0
      %v2132 = vmax.f32 %v2014, 0.0
      %v2133 = vmax.f32 %v2019, 0.0
      %v2134 = vmax.f32 %v2024, 0.0
      %v2135 = vmax.f32 %v2029, 0.0
      %v2136 = vmax.f32 %v2034, 0.0
      %v2137 = vmax.f32 %v2039, 0.0
      %v2138 = vmax.f32 %v2044, 0.0
      %v2139 = vmax.f32 %v2049, 0.0
      %v2140 = vmax.f32 %v2054, 0.0
      %v2141 = vmax.f32 %v2059, 0.0
      %v2142 = vmax.f32 %v2064, 0.0
      %v2143 = vmax.f32 %v2069, 0.0
      %v2144 = vmax.f32 %v2074, 0.0
      %v2145 = vmax.f32 %v2079, 0.0
      %v2146 = vmax.f32 %v2084, 0.0
      %v2147 = vmax.f32 %v2089, 0.0
      %v2148 = vmax.f32 %v2094, 0.0
      %v2149 = vmax.f32 %v2099, 0.0
      %v2150 = vmax.f32 %v2104, 0.0
      %v2151 = vmax.f32 %v2109, 0.0
      %v2152 = vmax.f32 %v2114, 0.0
      %v2153 = vmax.f32 %v2119, 0.0
      %2154 = vmax.xlane.f32.xlu0 %v2122
      %v2155 = vpop.xlane.xlu0 %2154
      %2156 = vmax.xlane.f32.xlu0 %v2123
      %v2157 = vpop.xlane.xlu0 %2156
      %2158 = vmax.xlane.f32.xlu0 %v2124
      %v2159 = vpop.xlane.xlu0 %2158
      %2160 = vmax.xlane.f32.xlu0 %v2125
      %v2161 = vpop.xlane.xlu0 %2160
      %2162 = vmax.xlane.f32.xlu0 %v2126
      %v2163 = vpop.xlane.xlu0 %2162
      %2164 = vmax.xlane.f32.xlu0 %v2127
      %v2165 = vpop.xlane.xlu0 %2164
      %2166 = vmax.xlane.f32.xlu0 %v2128
      %v2167 = vpop.xlane.xlu0 %2166
      %2168 = vmax.xlane.f32.xlu0 %v2129
      %v2169 = vpop.xlane.xlu0 %2168
      %2170 = vmax.xlane.f32.xlu0 %v2130
      %v2171 = vpop.xlane.xlu0 %2170
      %2172 = vmax.xlane.f32.xlu0 %v2131
      %v2173 = vpop.xlane.xlu0 %2172
      %2174 = vmax.xlane.f32.xlu0 %v2132
      %v2175 = vpop.xlane.xlu0 %2174
      %2176 = vmax.xlane.f32.xlu0 %v2133
      %v2177 = vpop.xlane.xlu0 %2176
      %2178 = vmax.xlane.f32.xlu0 %v2134
      %v2179 = vpop.xlane.xlu0 %2178
      %2180 = vmax.xlane.f32.xlu0 %v2135
      %v2181 = vpop.xlane.xlu0 %2180
      %2182 = vmax.xlane.f32.xlu0 %v2136
      %v2183 = vpop.xlane.xlu0 %2182
      %2184 = vmax.xlane.f32.xlu0 %v2137
      %v2185 = vpop.xlane.xlu0 %2184
      %2186 = vmax.xlane.f32.xlu0 %v2138
      %v2187 = vpop.xlane.xlu0 %2186
      %2188 = vmax.xlane.f32.xlu0 %v2139
      %v2189 = vpop.xlane.xlu0 %2188
      %2190 = vmax.xlane.f32.xlu0 %v2140
      %v2191 = vpop.xlane.xlu0 %2190
      %2192 = vmax.xlane.f32.xlu0 %v2141
      %v2193 = vpop.xlane.xlu0 %2192
      %2194 = vmax.xlane.f32.xlu0 %v2142
      %v2195 = vpop.xlane.xlu0 %2194
      %2196 = vmax.xlane.f32.xlu0 %v2143
      %v2197 = vpop.xlane.xlu0 %2196
      %2198 = vmax.xlane.f32.xlu0 %v2144
      %v2199 = vpop.xlane.xlu0 %2198
      %2200 = vmax.xlane.f32.xlu0 %v2145
      %v2201 = vpop.xlane.xlu0 %2200
      %2202 = vmax.xlane.f32.xlu0 %v2146
      %v2203 = vpop.xlane.xlu0 %2202
      %2204 = vmax.xlane.f32.xlu0 %v2147
      %v2205 = vpop.xlane.xlu0 %2204
      %2206 = vmax.xlane.f32.xlu0 %v2148
      %v2207 = vpop.xlane.xlu0 %2206
      %2208 = vmax.xlane.f32.xlu0 %v2149
      %v2209 = vpop.xlane.xlu0 %2208
      %2210 = vmax.xlane.f32.xlu0 %v2150
      %v2211 = vpop.xlane.xlu0 %2210
      %2212 = vmax.xlane.f32.xlu0 %v2151
      %v2213 = vpop.xlane.xlu0 %2212
      %2214 = vmax.xlane.f32.xlu0 %v2152
      %v2215 = vpop.xlane.xlu0 %2214
      %2216 = vmax.xlane.f32.xlu0 %v2153
      %v2217 = vpop.xlane.xlu0 %2216
      %vm2218 = vcmask 7168
      %v2219 = vsel %vm2218, %v1555, %v2155
      %v2220 = vsel %vm2218, %v1557, %v2157
      %v2221 = vsel %vm2218, %v1559, %v2159
      %v2222 = vsel %vm2218, %v1561, %v2161
      %v2223 = vsel %vm2218, %v1563, %v2163
      %v2224 = vsel %vm2218, %v1565, %v2165
      %v2225 = vsel %vm2218, %v1567, %v2167
      %v2226 = vsel %vm2218, %v1569, %v2169
      %v2227 = vsel %vm2218, %v1571, %v2171
      %v2228 = vsel %vm2218, %v1573, %v2173
      %v2229 = vsel %vm2218, %v1575, %v2175
      %v2230 = vsel %vm2218, %v1577, %v2177
      %v2231 = vsel %vm2218, %v1579, %v2179
      %v2232 = vsel %vm2218, %v1581, %v2181
      %v2233 = vsel %vm2218, %v1583, %v2183
      %v2234 = vsel %vm2218, %v1585, %v2185
      %v2235 = vsel %vm2218, %v1587, %v2187
      %v2236 = vsel %vm2218, %v1589, %v2189
      %v2237 = vsel %vm2218, %v1591, %v2191
      %v2238 = vsel %vm2218, %v1593, %v2193
      %v2239 = vsel %vm2218, %v1595, %v2195
      %v2240 = vsel %vm2218, %v1597, %v2197
      %v2241 = vsel %vm2218, %v1599, %v2199
      %v2242 = vsel %vm2218, %v1601, %v2201
      %v2243 = vsel %vm2218, %v1603, %v2203
      %v2244 = vsel %vm2218, %v1605, %v2205
      %v2245 = vsel %vm2218, %v1607, %v2207
      %v2246 = vsel %vm2218, %v1609, %v2209
      %v2247 = vsel %vm2218, %v1611, %v2211
      %v2248 = vsel %vm2218, %v1613, %v2213
      %v2249 = vsel %vm2218, %v1615, %v2215
      %v2250 = vsel %vm2218, %v1617, %v2217
      %v2251 = vld [vmem:[%s7] sm:$0xff]
      %v2252 = vld [vmem:[%s7 + $0x8] sm:$0xff]
      %v2253 = vld [vmem:[%s7 + $0x10] sm:$0xff]
      %v2254 = vld [vmem:[%s7 + $0x18] sm:$0xff]
      %v2255 = vld [vmem:[%s7 + $0x20] sm:$0xff]
      %v2256 = vld [vmem:[%s7 + $0x28] sm:$0xff]
      %v2257 = vld [vmem:[%s7 + $0x30] sm:$0xff]
      %v2258 = vld [vmem:[%s7 + $0x38] sm:$0xff]
      %v2259 = vld [vmem:[%s7 + $0x40] sm:$0xff]
      %v2260 = vld [vmem:[%s7 + $0x48] sm:$0xff]
      %v2261 = vld [vmem:[%s7 + $0x50] sm:$0xff]
      %v2262 = vld [vmem:[%s7 + $0x58] sm:$0xff]
      %v2263 = vld [vmem:[%s7 + $0x60] sm:$0xff]
      %v2264 = vld [vmem:[%s7 + $0x68] sm:$0xff]
      %v2265 = vld [vmem:[%s7 + $0x70] sm:$0xff]
      %v2266 = vld [vmem:[%s7 + $0x78] sm:$0xff]
      %v2267 = vld [vmem:[%s7 + $0x80] sm:$0xff]
      %v2268 = vld [vmem:[%s7 + $0x88] sm:$0xff]
      %v2269 = vld [vmem:[%s7 + $0x90] sm:$0xff]
      %v2270 = vld [vmem:[%s7 + $0x98] sm:$0xff]
      %v2271 = vld [vmem:[%s7 + $0xa0] sm:$0xff]
      %v2272 = vld [vmem:[%s7 + $0xa8] sm:$0xff]
      %v2273 = vld [vmem:[%s7 + $0xb0] sm:$0xff]
      %v2274 = vld [vmem:[%s7 + $0xb8] sm:$0xff]
      %v2275 = vld [vmem:[%s7 + $0xc0] sm:$0xff]
      %v2276 = vld [vmem:[%s7 + $0xc8] sm:$0xff]
      %v2277 = vld [vmem:[%s7 + $0xd0] sm:$0xff]
      %v2278 = vld [vmem:[%s7 + $0xd8] sm:$0xff]
      %v2279 = vld [vmem:[%s7 + $0xe0] sm:$0xff]
      %v2280 = vld [vmem:[%s7 + $0xe8] sm:$0xff]
      %v2281 = vld [vmem:[%s7 + $0xf0] sm:$0xff]
      %v2282 = vld [vmem:[%s7 + $0xf8] sm:$0xff]
      %v2283 = vld [vmem:[%s8] sm:$0xff]
      %v2284 = vld [vmem:[%s8 + $0x8] sm:$0xff]
      %v2285 = vld [vmem:[%s8 + $0x10] sm:$0xff]
      %v2286 = vld [vmem:[%s8 + $0x18] sm:$0xff]
      %v2287 = vld [vmem:[%s8 + $0x20] sm:$0xff]
      %v2288 = vld [vmem:[%s8 + $0x28] sm:$0xff]
      %v2289 = vld [vmem:[%s8 + $0x30] sm:$0xff]
      %v2290 = vld [vmem:[%s8 + $0x38] sm:$0xff]
      %v2291 = vld [vmem:[%s8 + $0x40] sm:$0xff]
      %v2292 = vld [vmem:[%s8 + $0x48] sm:$0xff]
      %v2293 = vld [vmem:[%s8 + $0x50] sm:$0xff]
      %v2294 = vld [vmem:[%s8 + $0x58] sm:$0xff]
      %v2295 = vld [vmem:[%s8 + $0x60] sm:$0xff]
      %v2296 = vld [vmem:[%s8 + $0x68] sm:$0xff]
      %v2297 = vld [vmem:[%s8 + $0x70] sm:$0xff]
      %v2298 = vld [vmem:[%s8 + $0x78] sm:$0xff]
      %2300 = vset.pattern.permute.xlu0 0
      %2301 = vperm.xlu0 %2300, %v2283
      %v2302 = vpop.permute.xlu0 %2301
      %2305 = vset.pattern.permute.xlu0 0
      %2306 = vperm.xlu0 %2305, %v2284
      %v2307 = vpop.permute.xlu0 %2306
      %2310 = vset.pattern.permute.xlu0 0
      %2311 = vperm.xlu0 %2310, %v2285
      %v2312 = vpop.permute.xlu0 %2311
      %2315 = vset.pattern.permute.xlu0 0
      %2316 = vperm.xlu0 %2315, %v2286
      %v2317 = vpop.permute.xlu0 %2316
      %2320 = vset.pattern.permute.xlu0 0
      %2321 = vperm.xlu0 %2320, %v2287
      %v2322 = vpop.permute.xlu0 %2321
      %2325 = vset.pattern.permute.xlu0 0
      %2326 = vperm.xlu0 %2325, %v2288
      %v2327 = vpop.permute.xlu0 %2326
      %2330 = vset.pattern.permute.xlu0 0
      %2331 = vperm.xlu0 %2330, %v2289
      %v2332 = vpop.permute.xlu0 %2331
      %2335 = vset.pattern.permute.xlu0 0
      %2336 = vperm.xlu0 %2335, %v2290
      %v2337 = vpop.permute.xlu0 %2336
      %2340 = vset.pattern.permute.xlu0 0
      %2341 = vperm.xlu0 %2340, %v2291
      %v2342 = vpop.permute.xlu0 %2341
      %2345 = vset.pattern.permute.xlu0 0
      %2346 = vperm.xlu0 %2345, %v2292
      %v2347 = vpop.permute.xlu0 %2346
      %2350 = vset.pattern.permute.xlu0 0
      %2351 = vperm.xlu0 %2350, %v2293
      %v2352 = vpop.permute.xlu0 %2351
      %2355 = vset.pattern.permute.xlu0 0
      %2356 = vperm.xlu0 %2355, %v2294
      %v2357 = vpop.permute.xlu0 %2356
      %2360 = vset.pattern.permute.xlu0 0
      %2361 = vperm.xlu0 %2360, %v2295
      %v2362 = vpop.permute.xlu0 %2361
      %2365 = vset.pattern.permute.xlu0 0
      %2366 = vperm.xlu0 %2365, %v2296
      %v2367 = vpop.permute.xlu0 %2366
      %2370 = vset.pattern.permute.xlu0 0
      %2371 = vperm.xlu0 %2370, %v2297
      %v2372 = vpop.permute.xlu0 %2371
      %2375 = vset.pattern.permute.xlu0 0
      %2376 = vperm.xlu0 %2375, %v2298
      %v2377 = vpop.permute.xlu0 %2376
      %2379 = vmatprep.subr.mxu0 0.0
      %2380 = vmatpush1.msra.mxu0 %v2219
      %2381 = vmatprep.subr.mxu0 0.0
      %2382 = vmatpush1.msra.mxu0 %v2220
      %2383 = vmatprep.subr.mxu0 0.0
      %2384 = vmatpush1.msra.mxu0 %v2221
      %2385 = vmatprep.subr.mxu0 0.0
      %2386 = vmatpush1.msra.mxu0 %v2222
      %2387 = vmatprep.subr.mxu0 0.0
      %2388 = vmatpush1.msra.mxu0 %v2223
      %2389 = vmatprep.subr.mxu0 0.0
      %2390 = vmatpush1.msra.mxu0 %v2224
      %2391 = vmatprep.subr.mxu0 0.0
      %2392 = vmatpush1.msra.mxu0 %v2225
      %2393 = vmatprep.subr.mxu0 0.0
      %2394 = vmatpush1.msra.mxu0 %v2226
      %2395 = vmatprep.subr.mxu0 0.0
      %2396 = vmatpush1.msra.mxu0 %v2227
      %2397 = vmatprep.subr.mxu0 0.0
      %2398 = vmatpush1.msra.mxu0 %v2228
      %2399 = vmatprep.subr.mxu0 0.0
      %2400 = vmatpush1.msra.mxu0 %v2229
      %2401 = vmatprep.subr.mxu0 0.0
      %2402 = vmatpush1.msra.mxu0 %v2230
      %2403 = vmatprep.subr.mxu0 0.0
      %2404 = vmatpush1.msra.mxu0 %v2231
      %2405 = vmatprep.subr.mxu0 0.0
      %2406 = vmatpush1.msra.mxu0 %v2232
      %2407 = vmatprep.subr.mxu0 0.0
      %2408 = vmatpush1.msra.mxu0 %v2233
      %2409 = vmatprep.subr.mxu0 0.0
      %2410 = vmatpush1.msra.mxu0 %v2234
      %2411 = vmatprep.subr.mxu0 0.0
      %2412 = vmatpush1.msra.mxu0 %v2235
      %2413 = vmatprep.subr.mxu0 0.0
      %2414 = vmatpush1.msra.mxu0 %v2236
      %2415 = vmatprep.subr.mxu0 0.0
      %2416 = vmatpush1.msra.mxu0 %v2237
      %2417 = vmatprep.subr.mxu0 0.0
      %2418 = vmatpush1.msra.mxu0 %v2238
      %2419 = vmatprep.subr.mxu0 0.0
      %2420 = vmatpush1.msra.mxu0 %v2239
      %2421 = vmatprep.subr.mxu0 0.0
      %2422 = vmatpush1.msra.mxu0 %v2240
      %2423 = vmatprep.subr.mxu0 0.0
      %2424 = vmatpush1.msra.mxu0 %v2241
      %2425 = vmatprep.subr.mxu0 0.0
      %2426 = vmatpush1.msra.mxu0 %v2242
      %2427 = vmatprep.subr.mxu0 0.0
      %2428 = vmatpush1.msra.mxu0 %v2243
      %2429 = vmatprep.subr.mxu0 0.0
      %2430 = vmatpush1.msra.mxu0 %v2244
      %2431 = vmatprep.subr.mxu0 0.0
      %2432 = vmatpush1.msra.mxu0 %v2245
      %2433 = vmatprep.subr.mxu0 0.0
      %2434 = vmatpush1.msra.mxu0 %v2246
      %2435 = vmatprep.subr.mxu0 0.0
      %2436 = vmatpush1.msra.mxu0 %v2247
      %2437 = vmatprep.subr.mxu0 0.0
      %2438 = vmatpush1.msra.mxu0 %v2248
      %2439 = vmatprep.subr.mxu0 0.0
      %2440 = vmatpush1.msra.mxu0 %v2249
      %2441 = vmatprep.subr.mxu0 0.0
      %2442 = vmatpush1.msra.mxu0 %v2250
      %2443 = vmatprep.mubr.f32.mxu0 %v2252
      %2444 = vmatmul.mubr.f32.gmra.mrb[0].mxu0 %v2251
      %v2445 = vpop.f32.mrb[0].mxu0
      %v2446 = vadd.f32 %v2302, %v2445
      %v2447 = vpop.f32.mrb[0].mxu0
      %2448 = vmatprep.mubr.f32.mxu0 %v2254
      %2449 = vmatmul.mubr.f32.gmra.mrb[0].mxu0 %v2253
      %v2450 = vpop.f32.mrb[0].mxu0
      %v2451 = vadd.f32 %v2307, %v2450
      %v2452 = vpop.f32.mrb[0].mxu0
      %2453 = vmatprep.mubr.f32.mxu0 %v2256
      %2454 = vmatmul.mubr.f32.gmra.mrb[0].mxu0 %v2255
      %v2455 = vpop.f32.mrb[0].mxu0
      %v2456 = vadd.f32 %v2312, %v2455
      %v2457 = vpop.f32.mrb[0].mxu0
      %2458 = vmatprep.mubr.f32.mxu0 %v2258
      %2459 = vmatmul.mubr.f32.gmra.mrb[0].mxu0 %v2257
      %v2460 = vpop.f32.mrb[0].mxu0
      %v2461 = vadd.f32 %v2317, %v2460
      %v2462 = vpop.f32.mrb[0].mxu0
      %2463 = vmatprep.mubr.f32.mxu0 %v2260
      %2464 = vmatmul.mubr.f32.gmra.mrb[0].mxu0 %v2259
      %v2465 = vpop.f32.mrb[0].mxu0
      %v2466 = vadd.f32 %v2322, %v2465
      %v2467 = vpop.f32.mrb[0].mxu0
      %2468 = vmatprep.mubr.f32.mxu0 %v2262
      %2469 = vmatmul.mubr.f32.gmra.mrb[0].mxu0 %v2261
      %v2470 = vpop.f32.mrb[0].mxu0
      %v2471 = vadd.f32 %v2327, %v2470
      %v2472 = vpop.f32.mrb[0].mxu0
      %2473 = vmatprep.mubr.f32.mxu0 %v2264
      %2474 = vmatmul.mubr.f32.gmra.mrb[0].mxu0 %v2263
      %v2475 = vpop.f32.mrb[0].mxu0
      %v2476 = vadd.f32 %v2332, %v2475
      %v2477 = vpop.f32.mrb[0].mxu0
      %2478 = vmatprep.mubr.f32.mxu0 %v2266
      %2479 = vmatmul.mubr.f32.gmra.mrb[0].mxu0 %v2265
      %v2480 = vpop.f32.mrb[0].mxu0
      %v2481 = vadd.f32 %v2337, %v2480
      %v2482 = vpop.f32.mrb[0].mxu0
      %2483 = vmatprep.mubr.f32.mxu0 %v2268
      %2484 = vmatmul.mubr.f32.gmra.mrb[0].mxu0 %v2267
      %v2485 = vpop.f32.mrb[0].mxu0
      %v2486 = vadd.f32 %v2342, %v2485
      %v2487 = vpop.f32.mrb[0].mxu0
      %2488 = vmatprep.mubr.f32.mxu0 %v2270
      %2489 = vmatmul.mubr.f32.gmra.mrb[0].mxu0 %v2269
      %v2490 = vpop.f32.mrb[0].mxu0
      %v2491 = vadd.f32 %v2347, %v2490
      %v2492 = vpop.f32.mrb[0].mxu0
      %2493 = vmatprep.mubr.f32.mxu0 %v2272
      %2494 = vmatmul.mubr.f32.gmra.mrb[0].mxu0 %v2271
      %v2495 = vpop.f32.mrb[0].mxu0
      %v2496 = vadd.f32 %v2352, %v2495
      %v2497 = vpop.f32.mrb[0].mxu0
      %2498 = vmatprep.mubr.f32.mxu0 %v2274
      %2499 = vmatmul.mubr.f32.gmra.mrb[0].mxu0 %v2273
      %v2500 = vpop.f32.mrb[0].mxu0
      %v2501 = vadd.f32 %v2357, %v2500
      %v2502 = vpop.f32.mrb[0].mxu0
      %2503 = vmatprep.mubr.f32.mxu0 %v2276
      %2504 = vmatmul.mubr.f32.gmra.mrb[0].mxu0 %v2275
      %v2505 = vpop.f32.mrb[0].mxu0
      %v2506 = vadd.f32 %v2362, %v2505
      %v2507 = vpop.f32.mrb[0].mxu0
      %2508 = vmatprep.mubr.f32.mxu0 %v2278
      %2509 = vmatmul.mubr.f32.gmra.mrb[0].mxu0 %v2277
      %v2510 = vpop.f32.mrb[0].mxu0
      %v2511 = vadd.f32 %v2367, %v2510
      %v2512 = vpop.f32.mrb[0].mxu0
      %2513 = vmatprep.mubr.f32.mxu0 %v2280
      %2514 = vmatmul.mubr.f32.gmra.mrb[0].mxu0 %v2279
      %v2515 = vpop.f32.mrb[0].mxu0
      %v2516 = vadd.f32 %v2372, %v2515
      %v2517 = vpop.f32.mrb[0].mxu0
      %2518 = vmatprep.mubr.f32.mxu0 %v2282
      %2519 = vmatmul.mubr.f32.gmra.mrb[0].mxu0 %v2281
      %v2520 = vpop.f32.mrb[0].mxu0
      %v2521 = vadd.f32 %v2377, %v2520
      %v2522 = vpop.f32.mrb[0].mxu0
      %2523 = vdwg.mxu0
      %v2524 = vmax.f32 %v2446, 0.0
      %v2525 = vmax.f32 %v2451, 0.0
      %v2526 = vmax.f32 %v2456, 0.0
      %v2527 = vmax.f32 %v2461, 0.0
      %v2528 = vmax.f32 %v2466, 0.0
      %v2529 = vmax.f32 %v2471, 0.0
      %v2530 = vmax.f32 %v2476, 0.0
      %v2531 = vmax.f32 %v2481, 0.0
      %v2532 = vmax.f32 %v2486, 0.0
      %v2533 = vmax.f32 %v2491, 0.0
      %v2534 = vmax.f32 %v2496, 0.0
      %v2535 = vmax.f32 %v2501, 0.0
      %v2536 = vmax.f32 %v2506, 0.0
      %v2537 = vmax.f32 %v2511, 0.0
      %v2538 = vmax.f32 %v2516, 0.0
      %v2539 = vmax.f32 %v2521, 0.0
      %v2540 = vld [vmem:[%s9] sm:$0xff]
      %v2541 = vld [vmem:[%s9 + $0x8] sm:$0xff]
      %v2542 = vld [vmem:[%s9 + $0x10] sm:$0xff]
      %v2543 = vld [vmem:[%s9 + $0x18] sm:$0xff]
      %v2544 = vld [vmem:[%s9 + $0x20] sm:$0xff]
      %v2545 = vld [vmem:[%s9 + $0x28] sm:$0xff]
      %v2546 = vld [vmem:[%s9 + $0x30] sm:$0xff]
      %v2547 = vld [vmem:[%s9 + $0x38] sm:$0xff]
      %v2548 = vld [vmem:[%s10] sm:$0xff]
      %v2549 = vld [vmem:[%s10 + $0x8] sm:$0xff]
      %v2550 = vld [vmem:[%s10 + $0x10] sm:$0xff]
      %v2551 = vld [vmem:[%s10 + $0x18] sm:$0xff]
      %v2552 = vld [vmem:[%s10 + $0x20] sm:$0xff]
      %v2553 = vld [vmem:[%s10 + $0x28] sm:$0xff]
      %v2554 = vld [vmem:[%s10 + $0x30] sm:$0xff]
      %v2555 = vld [vmem:[%s10 + $0x38] sm:$0xff]
      %2557 = vset.pattern.permute.xlu0 0
      %2558 = vperm.xlu0 %2557, %v2548
      %v2559 = vpop.permute.xlu0 %2558
      %2562 = vset.pattern.permute.xlu0 0
      %2563 = vperm.xlu0 %2562, %v2549
      %v2564 = vpop.permute.xlu0 %2563
      %2567 = vset.pattern.permute.xlu0 0
      %2568 = vperm.xlu0 %2567, %v2550
      %v2569 = vpop.permute.xlu0 %2568
      %2572 = vset.pattern.permute.xlu0 0
      %2573 = vperm.xlu0 %2572, %v2551
      %v2574 = vpop.permute.xlu0 %2573
      %2577 = vset.pattern.permute.xlu0 0
      %2578 = vperm.xlu0 %2577, %v2552
      %v2579 = vpop.permute.xlu0 %2578
      %2582 = vset.pattern.permute.xlu0 0
      %2583 = vperm.xlu0 %2582, %v2553
      %v2584 = vpop.permute.xlu0 %2583
      %2587 = vset.pattern.permute.xlu0 0
      %2588 = vperm.xlu0 %2587, %v2554
      %v2589 = vpop.permute.xlu0 %2588
      %2592 = vset.pattern.permute.xlu0 0
      %2593 = vperm.xlu0 %2592, %v2555
      %v2594 = vpop.permute.xlu0 %2593
      %2596 = vmatprep.subr.mxu0 0.0
      %2597 = vmatpush1.msra.mxu0 %v2524
      %2598 = vmatprep.subr.mxu0 0.0
      %2599 = vmatpush1.msra.mxu0 %v2525
      %2600 = vmatprep.subr.mxu0 0.0
      %2601 = vmatpush1.msra.mxu0 %v2526
      %2602 = vmatprep.subr.mxu0 0.0
      %2603 = vmatpush1.msra.mxu0 %v2527
      %2604 = vmatprep.subr.mxu0 0.0
      %2605 = vmatpush1.msra.mxu0 %v2528
      %2606 = vmatprep.subr.mxu0 0.0
      %2607 = vmatpush1.msra.mxu0 %v2529
      %2608 = vmatprep.subr.mxu0 0.0
      %2609 = vmatpush1.msra.mxu0 %v2530
      %2610 = vmatprep.subr.mxu0 0.0
      %2611 = vmatpush1.msra.mxu0 %v2531
      %2612 = vmatprep.subr.mxu0 0.0
      %2613 = vmatpush1.msra.mxu0 %v2532
      %2614 = vmatprep.subr.mxu0 0.0
      %2615 = vmatpush1.msra.mxu0 %v2533
      %2616 = vmatprep.subr.mxu0 0.0
      %2617 = vmatpush1.msra.mxu0 %v2534
      %2618 = vmatprep.subr.mxu0 0.0
      %2619 = vmatpush1.msra.mxu0 %v2535
      %2620 = vmatprep.subr.mxu0 0.0
      %2621 = vmatpush1.msra.mxu0 %v2536
      %2622 = vmatprep.subr.mxu0 0.0
      %2623 = vmatpush1.msra.mxu0 %v2537
      %2624 = vmatprep.subr.mxu0 0.0
      %2625 = vmatpush1.msra.mxu0 %v2538
      %2626 = vmatprep.subr.mxu0 0.0
      %2627 = vmatpush1.msra.mxu0 %v2539
      %2628 = vmatprep.subr.mxu0 0.0
      %2629 = vmatpush1.msra.mxu0 0.0
      %2630 = vmatprep.subr.mxu0 0.0
      %2631 = vmatpush1.msra.mxu0 0.0
      %2632 = vmatprep.subr.mxu0 0.0
      %2633 = vmatpush1.msra.mxu0 0.0
      %2634 = vmatprep.subr.mxu0 0.0
      %2635 = vmatpush1.msra.mxu0 0.0
      %2636 = vmatprep.subr.mxu0 0.0
      %2637 = vmatpush1.msra.mxu0 0.0
      %2638 = vmatprep.subr.mxu0 0.0
      %2639 = vmatpush1.msra.mxu0 0.0
      %2640 = vmatprep.subr.mxu0 0.0
      %2641 = vmatpush1.msra.mxu0 0.0
      %2642 = vmatprep.subr.mxu0 0.0
      %2643 = vmatpush1.msra.mxu0 0.0
      %2644 = vmatprep.subr.mxu0 0.0
      %2645 = vmatpush1.msra.mxu0 0.0
      %2646 = vmatprep.subr.mxu0 0.0
      %2647 = vmatpush1.msra.mxu0 0.0
      %2648 = vmatprep.subr.mxu0 0.0
      %2649 = vmatpush1.msra.mxu0 0.0
      %2650 = vmatprep.subr.mxu0 0.0
      %2651 = vmatpush1.msra.mxu0 0.0
      %2652 = vmatprep.subr.mxu0 0.0
      %2653 = vmatpush1.msra.mxu0 0.0
      %2654 = vmatprep.subr.mxu0 0.0
      %2655 = vmatpush1.msra.mxu0 0.0
      %2656 = vmatprep.subr.mxu0 0.0
      %2657 = vmatpush1.msra.mxu0 0.0
      %2658 = vmatprep.subr.mxu0 0.0
      %2659 = vmatpush1.msra.mxu0 0.0
      %2660 = vmatprep.mubr.f32.mxu0 0.0
      %2661 = vmatmul.mubr.f32.gmra.mrb[0].mxu0 %v2540
      %v2662 = vpop.f32.mrb[0].mxu0
      %v2663 = vadd.f32 %v2559, %v2662
      %v2664 = vpop.f32.mrb[0].mxu0
      %2665 = vmatprep.mubr.f32.mxu0 0.0
      %2666 = vmatmul.mubr.f32.gmra.mrb[0].mxu0 %v2541
      %v2667 = vpop.f32.mrb[0].mxu0
      %v2668 = vadd.f32 %v2564, %v2667
      %v2669 = vpop.f32.mrb[0].mxu0
      %2670 = vmatprep.mubr.f32.mxu0 0.0
      %2671 = vmatmul.mubr.f32.gmra.mrb[0].mxu0 %v2542
      %v2672 = vpop.f32.mrb[0].mxu0
      %v2673 = vadd.f32 %v2569, %v2672
      %v2674 = vpop.f32.mrb[0].mxu0
      %2675 = vmatprep.mubr.f32.mxu0 0.0
      %2676 = vmatmul.mubr.f32.gmra.mrb[0].mxu0 %v2543
      %v2677 = vpop.f32.mrb[0].mxu0
      %v2678 = vadd.f32 %v2574, %v2677
      %v2679 = vpop.f32.mrb[0].mxu0
      %2680 = vmatprep.mubr.f32.mxu0 0.0
      %2681 = vmatmul.mubr.f32.gmra.mrb[0].mxu0 %v2544
      %v2682 = vpop.f32.mrb[0].mxu0
      %v2683 = vadd.f32 %v2579, %v2682
      %v2684 = vpop.f32.mrb[0].mxu0
      %2685 = vmatprep.mubr.f32.mxu0 0.0
      %2686 = vmatmul.mubr.f32.gmra.mrb[0].mxu0 %v2545
      %v2687 = vpop.f32.mrb[0].mxu0
      %v2688 = vadd.f32 %v2584, %v2687
      %v2689 = vpop.f32.mrb[0].mxu0
      %2690 = vmatprep.mubr.f32.mxu0 0.0
      %2691 = vmatmul.mubr.f32.gmra.mrb[0].mxu0 %v2546
      %v2692 = vpop.f32.mrb[0].mxu0
      %v2693 = vadd.f32 %v2589, %v2692
      %v2694 = vpop.f32.mrb[0].mxu0
      %2695 = vmatprep.mubr.f32.mxu0 0.0
      %2696 = vmatmul.mubr.f32.gmra.mrb[0].mxu0 %v2547
      %v2697 = vpop.f32.mrb[0].mxu0
      %v2698 = vadd.f32 %v2594, %v2697
      %v2699 = vpop.f32.mrb[0].mxu0
      %2700 = vdwg.mxu0
      %v2701 = vmax.f32 %v2663, 0.0
      %v2702 = vmax.f32 %v2668, 0.0
      %v2703 = vmax.f32 %v2673, 0.0
      %v2704 = vmax.f32 %v2678, 0.0
      %v2705 = vmax.f32 %v2683, 0.0
      %v2706 = vmax.f32 %v2688, 0.0
      %v2707 = vmax.f32 %v2693, 0.0
      %v2708 = vmax.f32 %v2698, 0.0
      %v2709 = vld [vmem:[%s11] sm:$0x7]
      %v2710 = vld [vmem:[%s12] sm:$0x7]
      %2712 = vset.pattern.permute.xlu0 0
      %2713 = vperm.xlu0 %2712, %v2710
      %v2714 = vpop.permute.xlu0 %2713
      %v2717 = vsel %vm863, %v2709, 0
      %2719 = vmatprep.subr.mxu0 0.0
      %2720 = vmatpush1.msra.mxu0 %v2701
      %2721 = vmatprep.subr.mxu0 0.0
      %2722 = vmatpush1.msra.mxu0 %v2702
      %2723 = vmatprep.subr.mxu0 0.0
      %2724 = vmatpush1.msra.mxu0 %v2703
      %2725 = vmatprep.subr.mxu0 0.0
      %2726 = vmatpush1.msra.mxu0 %v2704
      %2727 = vmatprep.subr.mxu0 0.0
      %2728 = vmatpush1.msra.mxu0 %v2705
      %2729 = vmatprep.subr.mxu0 0.0
      %2730 = vmatpush1.msra.mxu0 %v2706
      %2731 = vmatprep.subr.mxu0 0.0
      %2732 = vmatpush1.msra.mxu0 %v2707
      %2733 = vmatprep.subr.mxu0 0.0
      %2734 = vmatpush1.msra.mxu0 %v2708
      %2735 = vmatprep.subr.mxu0 0.0
      %2736 = vmatpush1.msra.mxu0 0.0
      %2737 = vmatprep.subr.mxu0 0.0
      %2738 = vmatpush1.msra.mxu0 0.0
      %2739 = vmatprep.subr.mxu0 0.0
      %2740 = vmatpush1.msra.mxu0 0.0
      %2741 = vmatprep.subr.mxu0 0.0
      %2742 = vmatpush1.msra.mxu0 0.0
      %2743 = vmatprep.subr.mxu0 0.0
      %2744 = vmatpush1.msra.mxu0 0.0
      %2745 = vmatprep.subr.mxu0 0.0
      %2746 = vmatpush1.msra.mxu0 0.0
      %2747 = vmatprep.subr.mxu0 0.0
      %2748 = vmatpush1.msra.mxu0 0.0
      %2749 = vmatprep.subr.mxu0 0.0
      %2750 = vmatpush1.msra.mxu0 0.0
      %2751 = vmatprep.subr.mxu0 0.0
      %2752 = vmatpush1.msra.mxu0 0.0
      %2753 = vmatprep.subr.mxu0 0.0
      %2754 = vmatpush1.msra.mxu0 0.0
      %2755 = vmatprep.subr.mxu0 0.0
      %2756 = vmatpush1.msra.mxu0 0.0
      %2757 = vmatprep.subr.mxu0 0.0
      %2758 = vmatpush1.msra.mxu0 0.0
      %2759 = vmatprep.subr.mxu0 0.0
      %2760 = vmatpush1.msra.mxu0 0.0
      %2761 = vmatprep.subr.mxu0 0.0
      %2762 = vmatpush1.msra.mxu0 0.0
      %2763 = vmatprep.subr.mxu0 0.0
      %2764 = vmatpush1.msra.mxu0 0.0
      %2765 = vmatprep.subr.mxu0 0.0
      %2766 = vmatpush1.msra.mxu0 0.0
      %2767 = vmatprep.subr.mxu0 0.0
      %2768 = vmatpush1.msra.mxu0 0.0
      %2769 = vmatprep.subr.mxu0 0.0
      %2770 = vmatpush1.msra.mxu0 0.0
      %2771 = vmatprep.subr.mxu0 0.0
      %2772 = vmatpush1.msra.mxu0 0.0
      %2773 = vmatprep.subr.mxu0 0.0
      %2774 = vmatpush1.msra.mxu0 0.0
      %2775 = vmatprep.subr.mxu0 0.0
      %2776 = vmatpush1.msra.mxu0 0.0
      %2777 = vmatprep.subr.mxu0 0.0
      %2778 = vmatpush1.msra.mxu0 0.0
      %2779 = vmatprep.subr.mxu0 0.0
      %2780 = vmatpush1.msra.mxu0 0.0
      %2781 = vmatprep.subr.mxu0 0.0
      %2782 = vmatpush1.msra.mxu0 0.0
      %2783 = vmatprep.mubr.f32.mxu0 0.0
      %2784 = vmatmul.mubr.f32.gmra.mrb[0].mxu0 %v2717
      %v2785 = vpop.f32.mrb[0].mxu0
      %v2786 = vadd.f32 %v2714, %v2785
      %v2787 = vpop.f32.mrb[0].mxu0
      %2788 = vdwg.mxu0
      %v2789 = vld [vmem:[%s13] sm:$0x7]
      %v2790 = vld [vmem:[%s14] sm:$0x7]
      %2792 = vset.pattern.permute.xlu0 0
      %2793 = vperm.xlu0 %2792, %v2790
      %v2794 = vpop.permute.xlu0 %2793
      %v2797 = vsel %vm863, %v2789, 0
      %2799 = vmatprep.subr.mxu0 0.0
      %2800 = vmatpush1.msra.mxu0 %v2701
      %2801 = vmatprep.subr.mxu0 0.0
      %2802 = vmatpush1.msra.mxu0 %v2702
      %2803 = vmatprep.subr.mxu0 0.0
      %2804 = vmatpush1.msra.mxu0 %v2703
      %2805 = vmatprep.subr.mxu0 0.0
      %2806 = vmatpush1.msra.mxu0 %v2704
      %2807 = vmatprep.subr.mxu0 0.0
      %2808 = vmatpush1.msra.mxu0 %v2705
      %2809 = vmatprep.subr.mxu0 0.0
      %2810 = vmatpush1.msra.mxu0 %v2706
      %2811 = vmatprep.subr.mxu0 0.0
      %2812 = vmatpush1.msra.mxu0 %v2707
      %2813 = vmatprep.subr.mxu0 0.0
      %2814 = vmatpush1.msra.mxu0 %v2708
      %2815 = vmatprep.subr.mxu0 0.0
      %2816 = vmatpush1.msra.mxu0 0.0
      %2817 = vmatprep.subr.mxu0 0.0
      %2818 = vmatpush1.msra.mxu0 0.0
      %2819 = vmatprep.subr.mxu0 0.0
      %2820 = vmatpush1.msra.mxu0 0.0
      %2821 = vmatprep.subr.mxu0 0.0
      %2822 = vmatpush1.msra.mxu0 0.0
      %2823 = vmatprep.subr.mxu0 0.0
      %2824 = vmatpush1.msra.mxu0 0.0
      %2825 = vmatprep.subr.mxu0 0.0
      %2826 = vmatpush1.msra.mxu0 0.0
      %2827 = vmatprep.subr.mxu0 0.0
      %2828 = vmatpush1.msra.mxu0 0.0
      %2829 = vmatprep.subr.mxu0 0.0
      %2830 = vmatpush1.msra.mxu0 0.0
      %2831 = vmatprep.subr.mxu0 0.0
      %2832 = vmatpush1.msra.mxu0 0.0
      %2833 = vmatprep.subr.mxu0 0.0
      %2834 = vmatpush1.msra.mxu0 0.0
      %2835 = vmatprep.subr.mxu0 0.0
      %2836 = vmatpush1.msra.mxu0 0.0
      %2837 = vmatprep.subr.mxu0 0.0
      %2838 = vmatpush1.msra.mxu0 0.0
      %2839 = vmatprep.subr.mxu0 0.0
      %2840 = vmatpush1.msra.mxu0 0.0
      %2841 = vmatprep.subr.mxu0 0.0
      %2842 = vmatpush1.msra.mxu0 0.0
      %2843 = vmatprep.subr.mxu0 0.0
      %2844 = vmatpush1.msra.mxu0 0.0
      %2845 = vmatprep.subr.mxu0 0.0
      %2846 = vmatpush1.msra.mxu0 0.0
      %2847 = vmatprep.subr.mxu0 0.0
      %2848 = vmatpush1.msra.mxu0 0.0
      %2849 = vmatprep.subr.mxu0 0.0
      %2850 = vmatpush1.msra.mxu0 0.0
      %2851 = vmatprep.subr.mxu0 0.0
      %2852 = vmatpush1.msra.mxu0 0.0
      %2853 = vmatprep.subr.mxu0 0.0
      %2854 = vmatpush1.msra.mxu0 0.0
      %2855 = vmatprep.subr.mxu0 0.0
      %2856 = vmatpush1.msra.mxu0 0.0
      %2857 = vmatprep.subr.mxu0 0.0
      %2858 = vmatpush1.msra.mxu0 0.0
      %2859 = vmatprep.subr.mxu0 0.0
      %2860 = vmatpush1.msra.mxu0 0.0
      %2861 = vmatprep.subr.mxu0 0.0
      %2862 = vmatpush1.msra.mxu0 0.0
      %2863 = vmatprep.mubr.f32.mxu0 0.0
      %2864 = vmatmul.mubr.f32.gmra.mrb[0].mxu0 %v2797
      %v2865 = vpop.f32.mrb[0].mxu0
      %v2866 = vadd.f32 %v2794, %v2865
      %v2867 = vpop.f32.mrb[0].mxu0
      %2868 = vdwg.mxu0
      %v2869 = vmul.f32 %v2786, %v2786
      %vm2870 = vcmask 10240
      %v2871 = vsel %vm2870, %v2869, 0.0
      %v2872 = vrot.slane %v2871, 4
      %v2873 = vadd.f32 %v2871, %v2872
      %v2874 = vrot.slane %v2873, 2
      %v2875 = vadd.f32 %v2873, %v2874
      %v2876 = vrot.slane %v2875, 1
      %v2877 = vadd.f32 %v2875, %v2876
      %v2878 = vrsqrt.pop %v2877
      %v2879 = vmul.f32 %v2877, %v2878
      %vm2880 = vcmp.eq.f32.partialorder %v2877, inf
      %v2881 = vsel %vm2880, %v2877, %v2879
      %vm2882 = vcmp.eq.f32.partialorder %v2877, 0.0
      %v2883 = vand.u32 %v2877, 2147483648
      %v2884 = vsel %vm2882, %v2883, %v2881
      %v2885 = vmax.f32 %v2884, 1e-12
      %v2886 = vrcp.pop %v2885
      %v2887 = vmul.f32 %v2786, %v2886
      %v2888 = vmul.f32 %v2887, %v2866
      %v2889 = vsel %vm2870, %v2888, 0.0
      %v2890 = vrot.slane %v2889, 4
      %v2891 = vadd.f32 %v2889, %v2890
      %v2892 = vrot.slane %v2891, 2
      %v2893 = vadd.f32 %v2891, %v2892
      %v2894 = vrot.slane %v2893, 1
      %v2895 = vadd.f32 %v2893, %v2894
      %v2896 = vmul.f32 %v2895, %v2887
      %v2897 = vsub.f32 %v2866, %v2896
      %v2898 = vmul.f32 %v2897, %v2897
      %v2899 = vsel %vm2870, %v2898, 0.0
      %v2900 = vrot.slane %v2899, 4
      %v2901 = vadd.f32 %v2899, %v2900
      %v2902 = vrot.slane %v2901, 2
      %v2903 = vadd.f32 %v2901, %v2902
      %v2904 = vrot.slane %v2903, 1
      %v2905 = vadd.f32 %v2903, %v2904
      %v2906 = vrsqrt.pop %v2905
      %v2907 = vmul.f32 %v2905, %v2906
      %vm2908 = vcmp.eq.f32.partialorder %v2905, inf
      %v2909 = vsel %vm2908, %v2905, %v2907
      %vm2910 = vcmp.eq.f32.partialorder %v2905, 0.0
      %v2911 = vand.u32 %v2905, 2147483648
      %v2912 = vsel %vm2910, %v2911, %v2909
      %v2913 = vmax.f32 %v2912, 1e-12
      %v2914 = vrcp.pop %v2913
      %v2915 = vmul.f32 %v2897, %v2914
      %v2916 = vld [vmem:[%s15] sm:$0x7]
      %v2918 = vsel %vm609, %v2916, 0
      %v2921 = vsel %vm634, %v2887, 0
      %2923 = vmatprep.subr.mxu0 0.0
      %2924 = vmatpush1.msra.mxu0 %v2921
      %2925 = vmatprep.subr.mxu0 0.0
      %2926 = vmatpush1.msra.mxu0 0.0
      %2927 = vmatprep.subr.mxu0 0.0
      %2928 = vmatpush1.msra.mxu0 0.0
      %2929 = vmatprep.subr.mxu0 0.0
      %2930 = vmatpush1.msra.mxu0 0.0
      %2931 = vmatprep.subr.mxu0 0.0
      %2932 = vmatpush1.msra.mxu0 0.0
      %2933 = vmatprep.subr.mxu0 0.0
      %2934 = vmatpush1.msra.mxu0 0.0
      %2935 = vmatprep.subr.mxu0 0.0
      %2936 = vmatpush1.msra.mxu0 0.0
      %2937 = vmatprep.subr.mxu0 0.0
      %2938 = vmatpush1.msra.mxu0 0.0
      %2939 = vmatprep.subr.mxu0 0.0
      %2940 = vmatpush1.msra.mxu0 0.0
      %2941 = vmatprep.subr.mxu0 0.0
      %2942 = vmatpush1.msra.mxu0 0.0
      %2943 = vmatprep.subr.mxu0 0.0
      %2944 = vmatpush1.msra.mxu0 0.0
      %2945 = vmatprep.subr.mxu0 0.0
      %2946 = vmatpush1.msra.mxu0 0.0
      %2947 = vmatprep.subr.mxu0 0.0
      %2948 = vmatpush1.msra.mxu0 0.0
      %2949 = vmatprep.subr.mxu0 0.0
      %2950 = vmatpush1.msra.mxu0 0.0
      %2951 = vmatprep.subr.mxu0 0.0
      %2952 = vmatpush1.msra.mxu0 0.0
      %2953 = vmatprep.subr.mxu0 0.0
      %2954 = vmatpush1.msra.mxu0 0.0
      %2955 = vmatprep.subr.mxu0 0.0
      %2956 = vmatpush1.msra.mxu0 0.0
      %2957 = vmatprep.subr.mxu0 0.0
      %2958 = vmatpush1.msra.mxu0 0.0
      %2959 = vmatprep.subr.mxu0 0.0
      %2960 = vmatpush1.msra.mxu0 0.0
      %2961 = vmatprep.subr.mxu0 0.0
      %2962 = vmatpush1.msra.mxu0 0.0
      %2963 = vmatprep.subr.mxu0 0.0
      %2964 = vmatpush1.msra.mxu0 0.0
      %2965 = vmatprep.subr.mxu0 0.0
      %2966 = vmatpush1.msra.mxu0 0.0
      %2967 = vmatprep.subr.mxu0 0.0
      %2968 = vmatpush1.msra.mxu0 0.0
      %2969 = vmatprep.subr.mxu0 0.0
      %2970 = vmatpush1.msra.mxu0 0.0
      %2971 = vmatprep.subr.mxu0 0.0
      %2972 = vmatpush1.msra.mxu0 0.0
      %2973 = vmatprep.subr.mxu0 0.0
      %2974 = vmatpush1.msra.mxu0 0.0
      %2975 = vmatprep.subr.mxu0 0.0
      %2976 = vmatpush1.msra.mxu0 0.0
      %2977 = vmatprep.subr.mxu0 0.0
      %2978 = vmatpush1.msra.mxu0 0.0
      %2979 = vmatprep.subr.mxu0 0.0
      %2980 = vmatpush1.msra.mxu0 0.0
      %2981 = vmatprep.subr.mxu0 0.0
      %2982 = vmatpush1.msra.mxu0 0.0
      %2983 = vmatprep.subr.mxu0 0.0
      %2984 = vmatpush1.msra.mxu0 0.0
      %2985 = vmatprep.subr.mxu0 0.0
      %2986 = vmatpush1.msra.mxu0 0.0
      %2987 = vmatprep.mubr.f32.mxu0 0.0
      %2988 = vmatmul.mubr.f32.gmra.mrb[0].mxu0 %v2918
      %v2989 = vpop.f32.mrb[0].mxu0
      %v2990 = vadd.f32 0.0, %v2989
      %v2991 = vpop.f32.mrb[0].mxu0
      %2992 = vdwg.mxu0
      %v2993 = vld [vmem:[%s16] sm:$0x7]
      %v2995 = vsel %vm609, %v2993, 0
      %2997 = vmatprep.subr.mxu0 0.0
      %2998 = vmatpush1.msra.mxu0 %v2921
      %2999 = vmatprep.subr.mxu0 0.0
      %3000 = vmatpush1.msra.mxu0 0.0
      %3001 = vmatprep.subr.mxu0 0.0
      %3002 = vmatpush1.msra.mxu0 0.0
      %3003 = vmatprep.subr.mxu0 0.0
      %3004 = vmatpush1.msra.mxu0 0.0
      %3005 = vmatprep.subr.mxu0 0.0
      %3006 = vmatpush1.msra.mxu0 0.0
      %3007 = vmatprep.subr.mxu0 0.0
      %3008 = vmatpush1.msra.mxu0 0.0
      %3009 = vmatprep.subr.mxu0 0.0
      %3010 = vmatpush1.msra.mxu0 0.0
      %3011 = vmatprep.subr.mxu0 0.0
      %3012 = vmatpush1.msra.mxu0 0.0
      %3013 = vmatprep.subr.mxu0 0.0
      %3014 = vmatpush1.msra.mxu0 0.0
      %3015 = vmatprep.subr.mxu0 0.0
      %3016 = vmatpush1.msra.mxu0 0.0
      %3017 = vmatprep.subr.mxu0 0.0
      %3018 = vmatpush1.msra.mxu0 0.0
      %3019 = vmatprep.subr.mxu0 0.0
      %3020 = vmatpush1.msra.mxu0 0.0
      %3021 = vmatprep.subr.mxu0 0.0
      %3022 = vmatpush1.msra.mxu0 0.0
      %3023 = vmatprep.subr.mxu0 0.0
      %3024 = vmatpush1.msra.mxu0 0.0
      %3025 = vmatprep.subr.mxu0 0.0
      %3026 = vmatpush1.msra.mxu0 0.0
      %3027 = vmatprep.subr.mxu0 0.0
      %3028 = vmatpush1.msra.mxu0 0.0
      %3029 = vmatprep.subr.mxu0 0.0
      %3030 = vmatpush1.msra.mxu0 0.0
      %3031 = vmatprep.subr.mxu0 0.0
      %3032 = vmatpush1.msra.mxu0 0.0
      %3033 = vmatprep.subr.mxu0 0.0
      %3034 = vmatpush1.msra.mxu0 0.0
      %3035 = vmatprep.subr.mxu0 0.0
      %3036 = vmatpush1.msra.mxu0 0.0
      %3037 = vmatprep.subr.mxu0 0.0
      %3038 = vmatpush1.msra.mxu0 0.0
      %3039 = vmatprep.subr.mxu0 0.0
      %3040 = vmatpush1.msra.mxu0 0.0
      %3041 = vmatprep.subr.mxu0 0.0
      %3042 = vmatpush1.msra.mxu0 0.0
      %3043 = vmatprep.subr.mxu0 0.0
      %3044 = vmatpush1.msra.mxu0 0.0
      %3045 = vmatprep.subr.mxu0 0.0
      %3046 = vmatpush1.msra.mxu0 0.0
      %3047 = vmatprep.subr.mxu0 0.0
      %3048 = vmatpush1.msra.mxu0 0.0
      %3049 = vmatprep.subr.mxu0 0.0
      %3050 = vmatpush1.msra.mxu0 0.0
      %3051 = vmatprep.subr.mxu0 0.0
      %3052 = vmatpush1.msra.mxu0 0.0
      %3053 = vmatprep.subr.mxu0 0.0
      %3054 = vmatpush1.msra.mxu0 0.0
      %3055 = vmatprep.subr.mxu0 0.0
      %3056 = vmatpush1.msra.mxu0 0.0
      %3057 = vmatprep.subr.mxu0 0.0
      %3058 = vmatpush1.msra.mxu0 0.0
      %3059 = vmatprep.subr.mxu0 0.0
      %3060 = vmatpush1.msra.mxu0 0.0
      %3061 = vmatprep.mubr.f32.mxu0 0.0
      %3062 = vmatmul.mubr.f32.gmra.mrb[0].mxu0 %v2995
      %v3063 = vpop.f32.mrb[0].mxu0
      %v3064 = vadd.f32 0.0, %v3063
      %v3065 = vpop.f32.mrb[0].mxu0
      %3066 = vdwg.mxu0
      %v3068 = vsel %vm634, %v2915, 0
      %3070 = vmatprep.subr.mxu0 0.0
      %3071 = vmatpush1.msra.mxu0 %v3068
      %3072 = vmatprep.subr.mxu0 0.0
      %3073 = vmatpush1.msra.mxu0 0.0
      %3074 = vmatprep.subr.mxu0 0.0
      %3075 = vmatpush1.msra.mxu0 0.0
      %3076 = vmatprep.subr.mxu0 0.0
      %3077 = vmatpush1.msra.mxu0 0.0
      %3078 = vmatprep.subr.mxu0 0.0
      %3079 = vmatpush1.msra.mxu0 0.0
      %3080 = vmatprep.subr.mxu0 0.0
      %3081 = vmatpush1.msra.mxu0 0.0
      %3082 = vmatprep.subr.mxu0 0.0
      %3083 = vmatpush1.msra.mxu0 0.0
      %3084 = vmatprep.subr.mxu0 0.0
      %3085 = vmatpush1.msra.mxu0 0.0
      %3086 = vmatprep.subr.mxu0 0.0
      %3087 = vmatpush1.msra.mxu0 0.0
      %3088 = vmatprep.subr.mxu0 0.0
      %3089 = vmatpush1.msra.mxu0 0.0
      %3090 = vmatprep.subr.mxu0 0.0
      %3091 = vmatpush1.msra.mxu0 0.0
      %3092 = vmatprep.subr.mxu0 0.0
      %3093 = vmatpush1.msra.mxu0 0.0
      %3094 = vmatprep.subr.mxu0 0.0
      %3095 = vmatpush1.msra.mxu0 0.0
      %3096 = vmatprep.subr.mxu0 0.0
      %3097 = vmatpush1.msra.mxu0 0.0
      %3098 = vmatprep.subr.mxu0 0.0
      %3099 = vmatpush1.msra.mxu0 0.0
      %3100 = vmatprep.subr.mxu0 0.0
      %3101 = vmatpush1.msra.mxu0 0.0
      %3102 = vmatprep.subr.mxu0 0.0
      %3103 = vmatpush1.msra.mxu0 0.0
      %3104 = vmatprep.subr.mxu0 0.0
      %3105 = vmatpush1.msra.mxu0 0.0
      %3106 = vmatprep.subr.mxu0 0.0
      %3107 = vmatpush1.msra.mxu0 0.0
      %3108 = vmatprep.subr.mxu0 0.0
      %3109 = vmatpush1.msra.mxu0 0.0
      %3110 = vmatprep.subr.mxu0 0.0
      %3111 = vmatpush1.msra.mxu0 0.0
      %3112 = vmatprep.subr.mxu0 0.0
      %3113 = vmatpush1.msra.mxu0 0.0
      %3114 = vmatprep.subr.mxu0 0.0
      %3115 = vmatpush1.msra.mxu0 0.0
      %3116 = vmatprep.subr.mxu0 0.0
      %3117 = vmatpush1.msra.mxu0 0.0
      %3118 = vmatprep.subr.mxu0 0.0
      %3119 = vmatpush1.msra.mxu0 0.0
      %3120 = vmatprep.subr.mxu0 0.0
      %3121 = vmatpush1.msra.mxu0 0.0
      %3122 = vmatprep.subr.mxu0 0.0
      %3123 = vmatpush1.msra.mxu0 0.0
      %3124 = vmatprep.subr.mxu0 0.0
      %3125 = vmatpush1.msra.mxu0 0.0
      %3126 = vmatprep.subr.mxu0 0.0
      %3127 = vmatpush1.msra.mxu0 0.0
      %3128 = vmatprep.subr.mxu0 0.0
      %3129 = vmatpush1.msra.mxu0 0.0
      %3130 = vmatprep.subr.mxu0 0.0
      %3131 = vmatpush1.msra.mxu0 0.0
      %3132 = vmatprep.subr.mxu0 0.0
      %3133 = vmatpush1.msra.mxu0 0.0
      %3134 = vmatprep.mubr.f32.mxu0 0.0
      %3135 = vmatmul.mubr.f32.gmra.mrb[0].mxu0 %v2918
      %v3136 = vpop.f32.mrb[0].mxu0
      %v3137 = vadd.f32 0.0, %v3136
      %v3138 = vpop.f32.mrb[0].mxu0
      %3139 = vdwg.mxu0
      %3140 = vmatprep.subr.mxu0 0.0
      %3141 = vmatpush1.msra.mxu0 %v3068
      %3142 = vmatprep.subr.mxu0 0.0
      %3143 = vmatpush1.msra.mxu0 0.0
      %3144 = vmatprep.subr.mxu0 0.0
      %3145 = vmatpush1.msra.mxu0 0.0
      %3146 = vmatprep.subr.mxu0 0.0
      %3147 = vmatpush1.msra.mxu0 0.0
      %3148 = vmatprep.subr.mxu0 0.0
      %3149 = vmatpush1.msra.mxu0 0.0
      %3150 = vmatprep.subr.mxu0 0.0
      %3151 = vmatpush1.msra.mxu0 0.0
      %3152 = vmatprep.subr.mxu0 0.0
      %3153 = vmatpush1.msra.mxu0 0.0
      %3154 = vmatprep.subr.mxu0 0.0
      %3155 = vmatpush1.msra.mxu0 0.0
      %3156 = vmatprep.subr.mxu0 0.0
      %3157 = vmatpush1.msra.mxu0 0.0
      %3158 = vmatprep.subr.mxu0 0.0
      %3159 = vmatpush1.msra.mxu0 0.0
      %3160 = vmatprep.subr.mxu0 0.0
      %3161 = vmatpush1.msra.mxu0 0.0
      %3162 = vmatprep.subr.mxu0 0.0
      %3163 = vmatpush1.msra.mxu0 0.0
      %3164 = vmatprep.subr.mxu0 0.0
      %3165 = vmatpush1.msra.mxu0 0.0
      %3166 = vmatprep.subr.mxu0 0.0
      %3167 = vmatpush1.msra.mxu0 0.0
      %3168 = vmatprep.subr.mxu0 0.0
      %3169 = vmatpush1.msra.mxu0 0.0
      %3170 = vmatprep.subr.mxu0 0.0
      %3171 = vmatpush1.msra.mxu0 0.0
      %3172 = vmatprep.subr.mxu0 0.0
      %3173 = vmatpush1.msra.mxu0 0.0
      %3174 = vmatprep.subr.mxu0 0.0
      %3175 = vmatpush1.msra.mxu0 0.0
      %3176 = vmatprep.subr.mxu0 0.0
      %3177 = vmatpush1.msra.mxu0 0.0
      %3178 = vmatprep.subr.mxu0 0.0
      %3179 = vmatpush1.msra.mxu0 0.0
      %3180 = vmatprep.subr.mxu0 0.0
      %3181 = vmatpush1.msra.mxu0 0.0
      %3182 = vmatprep.subr.mxu0 0.0
      %3183 = vmatpush1.msra.mxu0 0.0
      %3184 = vmatprep.subr.mxu0 0.0
      %3185 = vmatpush1.msra.mxu0 0.0
      %3186 = vmatprep.subr.mxu0 0.0
      %3187 = vmatpush1.msra.mxu0 0.0
      %3188 = vmatprep.subr.mxu0 0.0
      %3189 = vmatpush1.msra.mxu0 0.0
      %3190 = vmatprep.subr.mxu0 0.0
      %3191 = vmatpush1.msra.mxu0 0.0
      %3192 = vmatprep.subr.mxu0 0.0
      %3193 = vmatpush1.msra.mxu0 0.0
      %3194 = vmatprep.subr.mxu0 0.0
      %3195 = vmatpush1.msra.mxu0 0.0
      %3196 = vmatprep.subr.mxu0 0.0
      %3197 = vmatpush1.msra.mxu0 0.0
      %3198 = vmatprep.subr.mxu0 0.0
      %3199 = vmatpush1.msra.mxu0 0.0
      %3200 = vmatprep.subr.mxu0 0.0
      %3201 = vmatpush1.msra.mxu0 0.0
      %3202 = vmatprep.subr.mxu0 0.0
      %3203 = vmatpush1.msra.mxu0 0.0
      %3204 = vmatprep.mubr.f32.mxu0 0.0
      %3205 = vmatmul.mubr.f32.gmra.mrb[0].mxu0 %v2995
      %v3206 = vpop.f32.mrb[0].mxu0
      %v3207 = vadd.f32 0.0, %v3206
      %v3208 = vpop.f32.mrb[0].mxu0
      %3209 = vdwg.mxu0
      %v3210 = vmul.f32 %v2990, %v3207
      %v3211 = vmul.f32 %v3064, %v3137
      %v3212 = vsub.f32 %v3210, %v3211
      %3213 = vset.pattern.permute.xlu0 0
      %3214 = vperm.xlu0 %3213, %v2887
      %v3215 = vpop.permute.xlu0 %3214
      %v3217 = vlaneseq
      %v3218 = vshrl.u32 %v3217, 7
      %v3219 = vsub.s32 0, %v3218
      %v3220 = vrot.slane %v552, %v3219
      %v3221 = vmul.f32 %v3215, %v3220
      %3222 = vset.pattern.permute.xlu0 0
      %3223 = vperm.xlu0 %3222, %v2915
      %v3224 = vpop.permute.xlu0 %3223
      %v3226 = vlaneseq
      %v3227 = vshrl.u32 %v3226, 7
      %v3228 = vsub.s32 1, %v3227
      %v3229 = vrot.slane %v552, %v3228
      %v3230 = vmul.f32 %v3224, %v3229
      %v3231 = vadd.f32 %v3221, %v3230
      %3233 = vset.pattern.permute.xlu0 0
      %3234 = vperm.xlu0 %3233, %v3212
      %v3235 = vpop.permute.xlu0 %3234
      %v3237 = vlaneseq
      %v3238 = vshrl.u32 %v3237, 7
      %v3239 = vsub.s32 2, %v3238
      %v3240 = vrot.slane %v552, %v3239
      %v3241 = vmul.f32 %v3235, %v3240
      %v3242 = vadd.f32 %v3231, %v3241
      %3243 = vst [vmem:[%s550] sm:$0x7] %v3242
      %v3244 = vld [vmem:[%s1618] sm:$0x7]
      %3245 = vset.pattern.permute.xlu0 1
      %3246 = vperm.xlu0 %3245, %v2887
      %v3247 = vpop.permute.xlu0 %3246
      %v3249 = vlaneseq
      %v3250 = vshrl.u32 %v3249, 7
      %v3251 = vsub.s32 0, %v3250
      %v3252 = vrot.slane %v3244, %v3251
      %v3253 = vmul.f32 %v3247, %v3252
      %3254 = vset.pattern.permute.xlu0 1
      %3255 = vperm.xlu0 %3254, %v2915
      %v3256 = vpop.permute.xlu0 %3255
      %v3258 = vlaneseq
      %v3259 = vshrl.u32 %v3258, 7
      %v3260 = vsub.s32 1, %v3259
      %v3261 = vrot.slane %v3244, %v3260
      %v3262 = vmul.f32 %v3256, %v3261
      %v3263 = vadd.f32 %v3253, %v3262
      %3264 = vset.pattern.permute.xlu0 1
      %3265 = vperm.xlu0 %3264, %v3212
      %v3266 = vpop.permute.xlu0 %3265
      %v3268 = vlaneseq
      %v3269 = vshrl.u32 %v3268, 7
      %v3270 = vsub.s32 2, %v3269
      %v3271 = vrot.slane %v3244, %v3270
      %v3272 = vmul.f32 %v3266, %v3271
      %v3273 = vadd.f32 %v3263, %v3272
      %s3274 = scalar_lea.vmem %s550, 4
      %3275 = vst [vmem:[%s3274] sm:$0x7] %v3273
      %s3276 = smul.u32 2, %s28
      %p3277 = scmp.lt.s32.totalorder %s3276, 3
      %s3278 = scalar_select %p3277, %s3276, 3
      %s3279 = smul.addr %s3278, 4
      %s3280 = scalar_lea.vmem %s17, %s3279
      // Predicated region
      $region89: #{tpu_custom_call.1} parent=87 // pred_check
        %p3281 = pneg %p408
      $region90: #{tpu_custom_call.1} parent=87 // pred_check_branch
        %3283 = sbr.rel (%p3281) target = $region92
      $region91: #{tpu_custom_call.1} parent=87 // pred_region
        %s3284 = smul.u32 2, %s28
      $region92: #{tpu_custom_call.1} parent=87 // pred_fallthru
        _
    $region88: #{tpu_custom_call.1} parent=5 // pred_fallthru
      _
    %p3285 = scmp.le.s32.totalorder 2, %s23
    // Predicated region
    $region93: #{tpu_custom_call.1} parent=5 // pred_check
      %p3286 = pneg %p3285
    $region94: #{tpu_custom_call.1} parent=5 // pred_check_branch
      %3288 = sbr.rel (%p3286) target = $region96
    $region95: #{tpu_custom_call.1} parent=5 // pred_region
      %s3289 = ssub.s32 %s23, 2
      // Predicated region
      $region97: #{tpu_custom_call.1} parent=95 // pred_check
        %p3290 = pneg %p414
      $region98: #{tpu_custom_call.1} parent=95 // pred_check_branch
        %3292 = sbr.rel (%p3290) target = $region100
      $region99: #{tpu_custom_call.1} parent=95 // pred_region
        %s3293 = smul.u32 2, %s29
        %p3294 = scmp.lt.s32.totalorder %s3293, 3
        %s3295 = scalar_select %p3294, %s3293, 3
        %s3296 = smul.addr %s3295, 4
        %s3297 = scalar_lea.vmem %s17, %s3296
      $region100: #{tpu_custom_call.1} parent=95 // pred_fallthru
        _
    $region96: #{tpu_custom_call.1} parent=5 // pred_fallthru
      _
  $region6: #{tpu_custom_call.1} parent=0 // loop_footer
    %s27 = sadd.s32 1, %s23
  $region7: #{tpu_custom_call.1} parent=0 // loop_footer_branch
    %22 = sbr.rel target = $region3
  $region8: #{tpu_custom_call.1} parent=0 // loop_exit
    _

</llo_original>
